<compile_context>
chip_gen: v6e
topology: v6e:2x2x1
jax: 0.10.0
libtpu: 0.0.40
codegen_flags: <defaults>
</compile_context>

<pallas_src>
import math

import jax
import jax.numpy as jnp
from jax.experimental import pallas as pl
from jax.experimental.pallas import tpu as pltpu


def _lstm_kernel(x_ref, u_ref, b_ref, v_ref, out_ref, h_sc, c_sc, xz_sc,
                 hseq_sc):
    """One (batch_tile, seq_chunk) tile of the recurrence.

    x_ref:   (1, T*Bt, I)  x rows for this chunk, ordered (t, b-within-tile)
    u_ref:   (I, 3H)       fused input weights  [U_i | U_c | U_o]
    b_ref:   (1, 3H)       fused bias           [b_i | b_c | b_o]
    v_ref:   (H, 3H)       fused recurrent weights
    out_ref: (Bt, T, H)    hidden states, already in (batch, seq, hidden)
    h_sc/c_sc: (Bt, H)     recurrent carry, persists across seq chunks
    xz_sc:   (T*Bt, 3H)    pre-activations x@U+b for this chunk
    hseq_sc: (T, Bt, H)    per-chunk staging of hidden states
    """
    Bt, H = h_sc.shape
    T = hseq_sc.shape[0]

    # Fresh recurrence at the start of every batch tile's sequence.  Safe with
    # the "parallel" batch-grid axis because each batch tile's seq chunks run
    # in order on one core with their own carry scratch.
    @pl.when(pl.program_id(1) == 0)
    def _():
        h_sc[...] = jnp.zeros_like(h_sc)
        c_sc[...] = jnp.zeros_like(c_sc)

    # Hoisted input projection for the whole chunk: one tall (T*Bt, I)@(I, 3H)
    # MXU matmul with the bias folded in.  No HBM intermediate; x is never
    # touched again on the serial path.
    xz_sc[...] = (
        jnp.dot(x_ref[0], u_ref[...], preferred_element_type=jnp.float32)
        + b_ref[...])

    def step(t, carry):
        h, c = carry
        row = pl.multiple_of(t * Bt, Bt)  # Bt % 8 == 0 -> sublane-aligned slice
        # Single fused recurrent matmul per timestep; gates packed as i|g|o.
        z = xz_sc[pl.ds(row, Bt), :] + jnp.dot(
            h.astype(v_ref.dtype), v_ref[...],
            preferred_element_type=jnp.float32)
        i_t = jax.nn.sigmoid(z[:, 0:H])
        g_t = jnp.tanh(z[:, H:2 * H])
        o_t = jax.nn.sigmoid(z[:, 2 * H:3 * H])
        # (sic) faithful to the reference module: h_t * c_t, not f_t * c_t.
        c_new = h * c + i_t * g_t
        h_new = o_t * jnp.tanh(c_new)
        hseq_sc[t] = h_new
        return h_new, c_new

    h_fin, c_fin = jax.lax.fori_loop(
        0, T, step, (h_sc[...], c_sc[...]), unroll=min(T, 8))
    h_sc[...] = h_fin
    c_sc[...] = c_fin

    # Emit the chunk directly in (batch, seq, hidden) layout.  Static
    # per-timestep sublane writes into the pipelined output block; the HBM
    # writeback is still a single DMA per grid step.
    for t in range(T):
        out_ref[:, t, :] = hseq_sc[t].astype(out_ref.dtype)


def naive_custom_lstm_forward(x, params, *, chunk_t=None, batch_tile=None,
                              weight_dtype=None, vmem_limit_bytes=None):
    """x: (batch, seq, input_size) float32.  Returns (batch, seq, hidden)."""
    B, S, I = x.shape
    H = params["U_i"].shape[1]

    if batch_tile is None:
        batch_tile = B          # >1 batch tiles only pays off on v7x (2 TCs)
    if chunk_t is None:
        chunk_t = S             # for long sequences pass a multiple of 8 (e.g. 64)
    assert S % chunk_t == 0, "chunk_t must divide seq_len"
    assert B % batch_tile == 0, "batch_tile must divide batch"
    assert chunk_t == S or chunk_t % 8 == 0, \
        "chunk_t must equal seq_len or be a multiple of 8 (sublane tiling)"

    n_bt = B // batch_tile
    n_sc = S // chunk_t

    # Fused gate weights (order i | g(cell) | o) and bias.  U_f/V_f/b_f are
    # dead in the reference forward (forget gate unused) and skipped.
    U = jnp.concatenate([params["U_i"], params["U_c"], params["U_o"]], axis=1)
    V = jnp.concatenate([params["V_i"], params["V_c"], params["V_o"]], axis=1)
    b = jnp.concatenate([params["b_i"], params["b_c"], params["b_o"]],
                        axis=0).reshape(1, 3 * H).astype(jnp.float32)

    x_in = x
    if weight_dtype is not None:
        # bf16 MXU inputs on v6e/v7x; accumulation and gate math stay f32.
        x_in = x.astype(weight_dtype)
        U = U.astype(weight_dtype)
        V = V.astype(weight_dtype)

    # Pad the batch tile up to a multiple of 8 sublanes: keeps every
    # per-timestep slice of the pre-activation scratch tile-aligned and gives
    # the recurrent matmul at least 8 MXU rows.  Padded rows are discarded.
    bt_pad = ((batch_tile + 7) // 8) * 8
    if bt_pad != batch_tile:
        x4 = x_in.reshape(n_bt, batch_tile, S, I)
        x4 = jnp.pad(x4, ((0, 0), (0, bt_pad - batch_tile), (0, 0), (0, 0)))
        x_in = x4.reshape(n_bt * bt_pad, S, I)
    B_pad = n_bt * bt_pad

    # Seq-major x, flattened per batch tile so each chunk's input projection
    # is one contiguous tall matmul: rows ordered (t, b-within-tile).
    x_seq = jnp.transpose(x_in, (1, 0, 2)).reshape(S, n_bt, bt_pad, I)
    x_seq = jnp.transpose(x_seq, (1, 0, 2, 3)).reshape(n_bt, S * bt_pad, I)

    itemsize = x_seq.dtype.itemsize
    cost = pl.CostEstimate(
        flops=2 * S * B_pad * (I + H) * 3 * H,
        transcendentals=4 * S * B_pad * H,
        bytes_accessed=(S * B_pad * I * itemsize
                        + (I + H) * 3 * H * itemsize + 3 * H * 4
                        + S * B_pad * H * x.dtype.itemsize))

    def _call(weight_pipeline_mode):
        weight_kw = ({} if weight_pipeline_mode is None
                     else dict(pipeline_mode=weight_pipeline_mode))
        return pl.pallas_call(
            _lstm_kernel,
            out_shape=jax.ShapeDtypeStruct((B_pad, S, H), x.dtype),
            grid_spec=pltpu.PrefetchScalarGridSpec(
                num_scalar_prefetch=0,
                grid=(n_bt, n_sc),  # (parallel batch tiles, sequential chunks)
                in_specs=[
                    # x slab for this (batch tile, seq chunk): rows (t, b).
                    pl.BlockSpec((1, chunk_t * bt_pad, I),
                                 lambda bt, s: (bt, s, 0)),
                    # Constant fused weights / bias: resident in VMEM.
                    pl.BlockSpec((I, 3 * H), lambda bt, s: (0, 0), **weight_kw),
                    pl.BlockSpec((1, 3 * H), lambda bt, s: (0, 0), **weight_kw),
                    pl.BlockSpec((H, 3 * H), lambda bt, s: (0, 0), **weight_kw),
                ],
                out_specs=pl.BlockSpec((bt_pad, chunk_t, H),
                                       lambda bt, s: (bt, s, 0)),
                scratch_shapes=[
                    pltpu.VMEM((bt_pad, H), jnp.float32),                # h carry
                    pltpu.VMEM((bt_pad, H), jnp.float32),                # c carry
                    pltpu.VMEM((chunk_t * bt_pad, 3 * H), jnp.float32),  # x@U+b
                    pltpu.VMEM((chunk_t, bt_pad, H), jnp.float32),       # h stage
                ],
            ),
            compiler_params=pltpu.CompilerParams(
                # seq axis is a true recurrence -> "arbitrary" and last; batch
                # tiles are independent -> "parallel" (megacore on v7x).
                dimension_semantics=("parallel", "arbitrary"),
                vmem_limit_bytes=vmem_limit_bytes),
            cost_estimate=cost,
        )(x_seq, U, b, V)

    try:
        # Constant-index weight blocks only need one VMEM buffer each (halves
        # U/V residency -- matters at large H on v7x's 64 MiB VMEM).
        out = _call(pl.Buffered(1))
    except Exception:
        # Portability fallback for JAX versions without BlockSpec pipeline_mode.
        out = _call(None)

    if bt_pad != batch_tile:
        out = out.reshape(n_bt, bt_pad, S, H)[:, :batch_tile].reshape(B, S, H)
    # Already (batch, seq, hidden); the module's .squeeze() is a no-op here.
    return out


def _init_params(key, input_size, hidden_size):
    stdv = 1.0 / math.sqrt(hidden_size)
    names_shapes = [
        ("U_f", (input_size, hidden_size)), ("V_f", (hidden_size, hidden_size)), ("b_f", (hidden_size,)),
        ("U_i", (input_size, hidden_size)), ("V_i", (hidden_size, hidden_size)), ("b_i", (hidden_size,)),
        ("U_c", (input_size, hidden_size)), ("V_c", (hidden_size, hidden_size)), ("b_c", (hidden_size,)),
        ("U_o", (input_size, hidden_size)), ("V_o", (hidden_size, hidden_size)), ("b_o", (hidden_size,)),
    ]
    params = {}
    keys = jax.random.split(key, len(names_shapes))
    for k, (name, shape) in zip(keys, names_shapes):
        params[name] = jax.random.uniform(
            k, shape, minval=-stdv, maxval=stdv, dtype=jnp.float32)
    return params


def _reference_forward(x, params):
    """Pure-JAX reference reproducing the PyTorch loop exactly."""
    B, S, _ = x.shape
    H = params["U_i"].shape[1]
    h_t = jnp.zeros((B, H), jnp.float32)
    c_t = jnp.zeros((B, H), jnp.float32)
    outs = []
    for t in range(S):
        x_t = x[:, t, :]
        i_t = jax.nn.sigmoid(x_t @ params["U_i"] + h_t @ params["V_i"] + params["b_i"])
        f_t = jax.nn.sigmoid(x_t @ params["U_f"] + h_t @ params["V_f"] + params["b_f"])  # noqa: F841 (dead, as in reference)
        g_t = jnp.tanh(x_t @ params["U_c"] + h_t @ params["V_c"] + params["b_c"])
        o_t = jax.nn.sigmoid(x_t @ params["U_o"] + h_t @ params["V_o"] + params["b_o"])
        c_t = h_t * c_t + i_t * g_t
        h_t = o_t * jnp.tanh(c_t)
        outs.append(h_t)
    return jnp.stack(outs, axis=1)  # (batch, seq, hidden)


if __name__ == "__main__":
    batch, seq, input_size, hidden_size = 2, 16, 16, 32

    key = jax.random.PRNGKey(0)
    k_param, k_x = jax.random.split(key)
    params = _init_params(k_param, input_size, hidden_size)
    x = jax.random.normal(k_x, (batch, seq, input_size), dtype=jnp.float32)

    # chunk_t=8 -> two seq chunks: exercises the cross-chunk h/c carry; the
    # batch of 2 exercises the sublane-padding path (padded to 8 in-kernel).
    out = naive_custom_lstm_forward(x, params, chunk_t=8)
    out = jax.block_until_ready(out)

    ref = _reference_forward(x, params)
    assert out.shape == (batch, seq, hidden_size)
    assert jnp.allclose(out, ref, atol=2e-5, rtol=2e-5), \
        float(jnp.max(jnp.abs(out - ref)))

    print("KERNEL_OK")
</pallas_src>

<mosaic_0001>
module attributes {stable_mosaic.version = 11 : i64} {
  func.func @_lstm_kernel(%arg0: i32, %arg1: i32, %arg2: memref<1x64x16xf32, #tpu.memory_space<vmem>>, %arg3: memref<16x96xf32, #tpu.memory_space<vmem>>, %arg4: memref<1x96xf32, #tpu.memory_space<vmem>>, %arg5: memref<32x96xf32, #tpu.memory_space<vmem>>, %arg6: memref<8x8x32xf32, #tpu.memory_space<vmem>>, %arg7: memref<8x32xf32, #tpu.memory_space<vmem>>, %arg8: memref<8x32xf32, #tpu.memory_space<vmem>>, %arg9: memref<64x96xf32, #tpu.memory_space<vmem>>, %arg10: memref<8x8x32xf32, #tpu.memory_space<vmem>>) attributes {dimension_semantics = [#tpu.dimension_semantics<parallel>, #tpu.dimension_semantics<arbitrary>], iteration_bounds = array<i64: 1, 2>, scalar_prefetch = 0 : i64, scratch_operands = 4 : i64, tpu.core_type = #tpu.core_type<tc>, window_params = [{transform_indices = @transform_0, window_bounds = array<i64: 1, 64, 16>}, {pipeline_mode = #tpu.pipeline_mode<synchronous>, transform_indices = @transform_1, window_bounds = array<i64: 16, 96>}, {pipeline_mode = #tpu.pipeline_mode<synchronous>, transform_indices = @transform_2, window_bounds = array<i64: 1, 96>}, {pipeline_mode = #tpu.pipeline_mode<synchronous>, transform_indices = @transform_3, window_bounds = array<i64: 32, 96>}, {transform_indices = @transform_4, window_bounds = array<i64: 8, 8, 32>}]} {
    %c0_i32 = arith.constant 0 : i32
    %0 = arith.cmpi eq, %arg1, %c0_i32 : i32
    %1 = arith.extui %0 : i1 to i32
    %c0_i32_0 = arith.constant 0 : i32
    %2 = arith.cmpi ne, %1, %c0_i32_0 : i32
    scf.if %2 {
      %cst_131 = arith.constant 0.000000e+00 : f32
      %295 = vector.broadcast %cst_131 : f32 to vector<8x32xf32>
      %c0_132 = arith.constant 0 : index
      %c0_133 = arith.constant 0 : index
      %296 = vector.load %arg7[%c0_132, %c0_133] : memref<8x32xf32, #tpu.memory_space<vmem>>, vector<8x32xf32>
      tpu.vector_store %arg7[%c0_132, %c0_133], %295 {strides = array<i32>} : memref<8x32xf32, #tpu.memory_space<vmem>>, vector<8x32xf32>,
      %cst_134 = arith.constant 0.000000e+00 : f32
      %297 = vector.broadcast %cst_134 : f32 to vector<8x32xf32>
      %c0_135 = arith.constant 0 : index
      %c0_136 = arith.constant 0 : index
      %298 = vector.load %arg8[%c0_135, %c0_136] : memref<8x32xf32, #tpu.memory_space<vmem>>, vector<8x32xf32>
      tpu.vector_store %arg8[%c0_135, %c0_136], %297 {strides = array<i32>} : memref<8x32xf32, #tpu.memory_space<vmem>>, vector<8x32xf32>,
    } else {
    }
    %c0 = arith.constant 0 : index
    %c0_1 = arith.constant 0 : index
    %c0_2 = arith.constant 0 : index
    %3 = vector.load %arg2[%c0, %c0_1, %c0_2] : memref<1x64x16xf32, #tpu.memory_space<vmem>>, vector<1x64x16xf32>
    %4 = vector.shape_cast %3 : vector<1x64x16xf32> to vector<64x16xf32>
    %c0_3 = arith.constant 0 : index
    %c0_4 = arith.constant 0 : index
    %5 = vector.load %arg3[%c0_3, %c0_4] : memref<16x96xf32, #tpu.memory_space<vmem>>, vector<16x96xf32>
    %cst = arith.constant dense<0.000000e+00> : vector<64x96xf32>
    %6 = tpu.matmul %4, %5, %cst {dimension_numbers = #tpu.dot_dimension_numbers<[1], [0], [0], [1], [0, 0, 1, 1], [], []>} : vector<64x16xf32>, vector<16x96xf32>, vector<64x96xf32> -> vector<64x96xf32>
    %c0_5 = arith.constant 0 : index
    %c0_6 = arith.constant 0 : index
    %7 = vector.load %arg4[%c0_5, %c0_6] : memref<1x96xf32, #tpu.memory_space<vmem>>, vector<1x96xf32>
    %8 = vector.broadcast %7 : vector<1x96xf32> to vector<64x96xf32>
    %9 = arith.addf %6, %8 : vector<64x96xf32>
    %c0_7 = arith.constant 0 : index
    %c0_8 = arith.constant 0 : index
    %10 = vector.load %arg9[%c0_7, %c0_8] : memref<64x96xf32, #tpu.memory_space<vmem>>, vector<64x96xf32>
    tpu.vector_store %arg9[%c0_7, %c0_8], %9 {strides = array<i32>} : memref<64x96xf32, #tpu.memory_space<vmem>>, vector<64x96xf32>,
    %c0_9 = arith.constant 0 : index
    %c0_10 = arith.constant 0 : index
    %11 = vector.load %arg7[%c0_9, %c0_10] : memref<8x32xf32, #tpu.memory_space<vmem>>, vector<8x32xf32>
    %c0_11 = arith.constant 0 : index
    %c0_12 = arith.constant 0 : index
    %12 = vector.load %arg8[%c0_11, %c0_12] : memref<8x32xf32, #tpu.memory_space<vmem>>, vector<8x32xf32>
    %c0_i32_13 = arith.constant 0 : i32
    %c8_i32 = arith.constant 8 : i32
    %13 = arith.muli %c0_i32_13, %c8_i32 : i32
    %14 = tpu.assume_multiple %13, 8 : i32
    %15 = arith.index_cast %14 : i32 to index
    %c0_14 = arith.constant 0 : index
    %16 = vector.load %arg9[%15, %c0_14] : memref<64x96xf32, #tpu.memory_space<vmem>>, vector<8x96xf32>
    %c0_15 = arith.constant 0 : index
    %c0_16 = arith.constant 0 : index
    %17 = vector.load %arg5[%c0_15, %c0_16] : memref<32x96xf32, #tpu.memory_space<vmem>>, vector<32x96xf32>
    %cst_17 = arith.constant dense<0.000000e+00> : vector<8x96xf32>
    %18 = tpu.matmul %11, %17, %cst_17 {dimension_numbers = #tpu.dot_dimension_numbers<[1], [0], [0], [1], [0, 0, 1, 1], [], []>} : vector<8x32xf32>, vector<32x96xf32>, vector<8x96xf32> -> vector<8x96xf32>
    %19 = arith.addf %16, %18 : vector<8x96xf32>
    %20 = vector.extract_strided_slice %19 {offsets = [0, 0], sizes = [8, 32], strides = [1, 1]} : vector<8x96xf32> to vector<8x32xf32>
    %21 = arith.negf %20 : vector<8x32xf32>
    %22 = math.exp %21 : vector<8x32xf32>
    %cst_18 = arith.constant 1.000000e+00 : f32
    %23 = vector.broadcast %cst_18 : f32 to vector<8x32xf32>
    %24 = arith.addf %23, %22 : vector<8x32xf32>
    %25 = arith.divf %23, %24 : vector<8x32xf32>
    %26 = vector.extract_strided_slice %19 {offsets = [0, 32], sizes = [8, 32], strides = [1, 1]} : vector<8x96xf32> to vector<8x32xf32>
    %27 = math.tanh %26 : vector<8x32xf32>
    %28 = vector.extract_strided_slice %19 {offsets = [0, 64], sizes = [8, 32], strides = [1, 1]} : vector<8x96xf32> to vector<8x32xf32>
    %29 = arith.negf %28 : vector<8x32xf32>
    %30 = math.exp %29 : vector<8x32xf32>
    %cst_19 = arith.constant 1.000000e+00 : f32
    %31 = vector.broadcast %cst_19 : f32 to vector<8x32xf32>
    %32 = arith.addf %31, %30 : vector<8x32xf32>
    %33 = arith.divf %31, %32 : vector<8x32xf32>
    %34 = arith.mulf %11, %12 : vector<8x32xf32>
    %35 = arith.mulf %25, %27 : vector<8x32xf32>
    %36 = arith.addf %34, %35 : vector<8x32xf32>
    %37 = math.tanh %36 : vector<8x32xf32>
    %38 = arith.mulf %33, %37 : vector<8x32xf32>
    %39 = arith.index_cast %c0_i32_13 : i32 to index
    %c0_20 = arith.constant 0 : index
    %c0_21 = arith.constant 0 : index
    %40 = vector.load %arg10[%39, %c0_20, %c0_21] : memref<8x8x32xf32, #tpu.memory_space<vmem>>, vector<1x8x32xf32>
    %41 = vector.shape_cast %40 : vector<1x8x32xf32> to vector<8x32xf32>
    %42 = vector.shape_cast %38 : vector<8x32xf32> to vector<1x8x32xf32>
    tpu.vector_store %arg10[%39, %c0_20, %c0_21], %42 {strides = array<i32>} : memref<8x8x32xf32, #tpu.memory_space<vmem>>, vector<1x8x32xf32>,
    %c1_i32 = arith.constant 1 : i32
    %c8_i32_22 = arith.constant 8 : i32
    %43 = arith.muli %c1_i32, %c8_i32_22 : i32
    %44 = tpu.assume_multiple %43, 8 : i32
    %45 = arith.index_cast %44 : i32 to index
    %c0_23 = arith.constant 0 : index
    %46 = vector.load %arg9[%45, %c0_23] : memref<64x96xf32, #tpu.memory_space<vmem>>, vector<8x96xf32>
    %c0_24 = arith.constant 0 : index
    %c0_25 = arith.constant 0 : index
    %47 = vector.load %arg5[%c0_24, %c0_25] : memref<32x96xf32, #tpu.memory_space<vmem>>, vector<32x96xf32>
    %cst_26 = arith.constant dense<0.000000e+00> : vector<8x96xf32>
    %48 = tpu.matmul %38, %47, %cst_26 {dimension_numbers = #tpu.dot_dimension_numbers<[1], [0], [0], [1], [0, 0, 1, 1], [], []>} : vector<8x32xf32>, vector<32x96xf32>, vector<8x96xf32> -> vector<8x96xf32>
    %49 = arith.addf %46, %48 : vector<8x96xf32>
    %50 = vector.extract_strided_slice %49 {offsets = [0, 0], sizes = [8, 32], strides = [1, 1]} : vector<8x96xf32> to vector<8x32xf32>
    %51 = arith.negf %50 : vector<8x32xf32>
    %52 = math.exp %51 : vector<8x32xf32>
    %cst_27 = arith.constant 1.000000e+00 : f32
    %53 = vector.broadcast %cst_27 : f32 to vector<8x32xf32>
    %54 = arith.addf %53, %52 : vector<8x32xf32>
    %55 = arith.divf %53, %54 : vector<8x32xf32>
    %56 = vector.extract_strided_slice %49 {offsets = [0, 32], sizes = [8, 32], strides = [1, 1]} : vector<8x96xf32> to vector<8x32xf32>
    %57 = math.tanh %56 : vector<8x32xf32>
    %58 = vector.extract_strided_slice %49 {offsets = [0, 64], sizes = [8, 32], strides = [1, 1]} : vector<8x96xf32> to vector<8x32xf32>
    %59 = arith.negf %58 : vector<8x32xf32>
    %60 = math.exp %59 : vector<8x32xf32>
    %cst_28 = arith.constant 1.000000e+00 : f32
    %61 = vector.broadcast %cst_28 : f32 to vector<8x32xf32>
    %62 = arith.addf %61, %60 : vector<8x32xf32>
    %63 = arith.divf %61, %62 : vector<8x32xf32>
    %64 = arith.mulf %38, %36 : vector<8x32xf32>
    %65 = arith.mulf %55, %57 : vector<8x32xf32>
    %66 = arith.addf %64, %65 : vector<8x32xf32>
    %67 = math.tanh %66 : vector<8x32xf32>
    %68 = arith.mulf %63, %67 : vector<8x32xf32>
    %69 = arith.index_cast %c1_i32 : i32 to index
    %c0_29 = arith.constant 0 : index
    %c0_30 = arith.constant 0 : index
    %70 = vector.load %arg10[%69, %c0_29, %c0_30] : memref<8x8x32xf32, #tpu.memory_space<vmem>>, vector<1x8x32xf32>
    %71 = vector.shape_cast %70 : vector<1x8x32xf32> to vector<8x32xf32>
    %72 = vector.shape_cast %68 : vector<8x32xf32> to vector<1x8x32xf32>
    tpu.vector_store %arg10[%69, %c0_29, %c0_30], %72 {strides = array<i32>} : memref<8x8x32xf32, #tpu.memory_space<vmem>>, vector<1x8x32xf32>,
    %c2_i32 = arith.constant 2 : i32
    %c8_i32_31 = arith.constant 8 : i32
    %73 = arith.muli %c2_i32, %c8_i32_31 : i32
    %74 = tpu.assume_multiple %73, 8 : i32
    %75 = arith.index_cast %74 : i32 to index
    %c0_32 = arith.constant 0 : index
    %76 = vector.load %arg9[%75, %c0_32] : memref<64x96xf32, #tpu.memory_space<vmem>>, vector<8x96xf32>
    %c0_33 = arith.constant 0 : index
    %c0_34 = arith.constant 0 : index
    %77 = vector.load %arg5[%c0_33, %c0_34] : memref<32x96xf32, #tpu.memory_space<vmem>>, vector<32x96xf32>
    %cst_35 = arith.constant dense<0.000000e+00> : vector<8x96xf32>
    %78 = tpu.matmul %68, %77, %cst_35 {dimension_numbers = #tpu.dot_dimension_numbers<[1], [0], [0], [1], [0, 0, 1, 1], [], []>} : vector<8x32xf32>, vector<32x96xf32>, vector<8x96xf32> -> vector<8x96xf32>
    %79 = arith.addf %76, %78 : vector<8x96xf32>
    %80 = vector.extract_strided_slice %79 {offsets = [0, 0], sizes = [8, 32], strides = [1, 1]} : vector<8x96xf32> to vector<8x32xf32>
    %81 = arith.negf %80 : vector<8x32xf32>
    %82 = math.exp %81 : vector<8x32xf32>
    %cst_36 = arith.constant 1.000000e+00 : f32
    %83 = vector.broadcast %cst_36 : f32 to vector<8x32xf32>
    %84 = arith.addf %83, %82 : vector<8x32xf32>
    %85 = arith.divf %83, %84 : vector<8x32xf32>
    %86 = vector.extract_strided_slice %79 {offsets = [0, 32], sizes = [8, 32], strides = [1, 1]} : vector<8x96xf32> to vector<8x32xf32>
    %87 = math.tanh %86 : vector<8x32xf32>
    %88 = vector.extract_strided_slice %79 {offsets = [0, 64], sizes = [8, 32], strides = [1, 1]} : vector<8x96xf32> to vector<8x32xf32>
    %89 = arith.negf %88 : vector<8x32xf32>
    %90 = math.exp %89 : vector<8x32xf32>
    %cst_37 = arith.constant 1.000000e+00 : f32
    %91 = vector.broadcast %cst_37 : f32 to vector<8x32xf32>
    %92 = arith.addf %91, %90 : vector<8x32xf32>
    %93 = arith.divf %91, %92 : vector<8x32xf32>
    %94 = arith.mulf %68, %66 : vector<8x32xf32>
    %95 = arith.mulf %85, %87 : vector<8x32xf32>
    %96 = arith.addf %94, %95 : vector<8x32xf32>
    %97 = math.tanh %96 : vector<8x32xf32>
    %98 = arith.mulf %93, %97 : vector<8x32xf32>
    %99 = arith.index_cast %c2_i32 : i32 to index
    %c0_38 = arith.constant 0 : index
    %c0_39 = arith.constant 0 : index
    %100 = vector.load %arg10[%99, %c0_38, %c0_39] : memref<8x8x32xf32, #tpu.memory_space<vmem>>, vector<1x8x32xf32>
    %101 = vector.shape_cast %100 : vector<1x8x32xf32> to vector<8x32xf32>
    %102 = vector.shape_cast %98 : vector<8x32xf32> to vector<1x8x32xf32>
    tpu.vector_store %arg10[%99, %c0_38, %c0_39], %102 {strides = array<i32>} : memref<8x8x32xf32, #tpu.memory_space<vmem>>, vector<1x8x32xf32>,
    %c3_i32 = arith.constant 3 : i32
    %c8_i32_40 = arith.constant 8 : i32
    %103 = arith.muli %c3_i32, %c8_i32_40 : i32
    %104 = tpu.assume_multiple %103, 8 : i32
    %105 = arith.index_cast %104 : i32 to index
    %c0_41 = arith.constant 0 : index
    %106 = vector.load %arg9[%105, %c0_41] : memref<64x96xf32, #tpu.memory_space<vmem>>, vector<8x96xf32>
    %c0_42 = arith.constant 0 : index
    %c0_43 = arith.constant 0 : index
    %107 = vector.load %arg5[%c0_42, %c0_43] : memref<32x96xf32, #tpu.memory_space<vmem>>, vector<32x96xf32>
    %cst_44 = arith.constant dense<0.000000e+00> : vector<8x96xf32>
    %108 = tpu.matmul %98, %107, %cst_44 {dimension_numbers = #tpu.dot_dimension_numbers<[1], [0], [0], [1], [0, 0, 1, 1], [], []>} : vector<8x32xf32>, vector<32x96xf32>, vector<8x96xf32> -> vector<8x96xf32>
    %109 = arith.addf %106, %108 : vector<8x96xf32>
    %110 = vector.extract_strided_slice %109 {offsets = [0, 0], sizes = [8, 32], strides = [1, 1]} : vector<8x96xf32> to vector<8x32xf32>
    %111 = arith.negf %110 : vector<8x32xf32>
    %112 = math.exp %111 : vector<8x32xf32>
    %cst_45 = arith.constant 1.000000e+00 : f32
    %113 = vector.broadcast %cst_45 : f32 to vector<8x32xf32>
    %114 = arith.addf %113, %112 : vector<8x32xf32>
    %115 = arith.divf %113, %114 : vector<8x32xf32>
    %116 = vector.extract_strided_slice %109 {offsets = [0, 32], sizes = [8, 32], strides = [1, 1]} : vector<8x96xf32> to vector<8x32xf32>
    %117 = math.tanh %116 : vector<8x32xf32>
    %118 = vector.extract_strided_slice %109 {offsets = [0, 64], sizes = [8, 32], strides = [1, 1]} : vector<8x96xf32> to vector<8x32xf32>
    %119 = arith.negf %118 : vector<8x32xf32>
    %120 = math.exp %119 : vector<8x32xf32>
    %cst_46 = arith.constant 1.000000e+00 : f32
    %121 = vector.broadcast %cst_46 : f32 to vector<8x32xf32>
    %122 = arith.addf %121, %120 : vector<8x32xf32>
    %123 = arith.divf %121, %122 : vector<8x32xf32>
    %124 = arith.mulf %98, %96 : vector<8x32xf32>
    %125 = arith.mulf %115, %117 : vector<8x32xf32>
    %126 = arith.addf %124, %125 : vector<8x32xf32>
    %127 = math.tanh %126 : vector<8x32xf32>
    %128 = arith.mulf %123, %127 : vector<8x32xf32>
    %129 = arith.index_cast %c3_i32 : i32 to index
    %c0_47 = arith.constant 0 : index
    %c0_48 = arith.constant 0 : index
    %130 = vector.load %arg10[%129, %c0_47, %c0_48] : memref<8x8x32xf32, #tpu.memory_space<vmem>>, vector<1x8x32xf32>
    %131 = vector.shape_cast %130 : vector<1x8x32xf32> to vector<8x32xf32>
    %132 = vector.shape_cast %128 : vector<8x32xf32> to vector<1x8x32xf32>
    tpu.vector_store %arg10[%129, %c0_47, %c0_48], %132 {strides = array<i32>} : memref<8x8x32xf32, #tpu.memory_space<vmem>>, vector<1x8x32xf32>,
    %c4_i32 = arith.constant 4 : i32
    %c8_i32_49 = arith.constant 8 : i32
    %133 = arith.muli %c4_i32, %c8_i32_49 : i32
    %134 = tpu.assume_multiple %133, 8 : i32
    %135 = arith.index_cast %134 : i32 to index
    %c0_50 = arith.constant 0 : index
    %136 = vector.load %arg9[%135, %c0_50] : memref<64x96xf32, #tpu.memory_space<vmem>>, vector<8x96xf32>
    %c0_51 = arith.constant 0 : index
    %c0_52 = arith.constant 0 : index
    %137 = vector.load %arg5[%c0_51, %c0_52] : memref<32x96xf32, #tpu.memory_space<vmem>>, vector<32x96xf32>
    %cst_53 = arith.constant dense<0.000000e+00> : vector<8x96xf32>
    %138 = tpu.matmul %128, %137, %cst_53 {dimension_numbers = #tpu.dot_dimension_numbers<[1], [0], [0], [1], [0, 0, 1, 1], [], []>} : vector<8x32xf32>, vector<32x96xf32>, vector<8x96xf32> -> vector<8x96xf32>
    %139 = arith.addf %136, %138 : vector<8x96xf32>
    %140 = vector.extract_strided_slice %139 {offsets = [0, 0], sizes = [8, 32], strides = [1, 1]} : vector<8x96xf32> to vector<8x32xf32>
    %141 = arith.negf %140 : vector<8x32xf32>
    %142 = math.exp %141 : vector<8x32xf32>
    %cst_54 = arith.constant 1.000000e+00 : f32
    %143 = vector.broadcast %cst_54 : f32 to vector<8x32xf32>
    %144 = arith.addf %143, %142 : vector<8x32xf32>
    %145 = arith.divf %143, %144 : vector<8x32xf32>
    %146 = vector.extract_strided_slice %139 {offsets = [0, 32], sizes = [8, 32], strides = [1, 1]} : vector<8x96xf32> to vector<8x32xf32>
    %147 = math.tanh %146 : vector<8x32xf32>
    %148 = vector.extract_strided_slice %139 {offsets = [0, 64], sizes = [8, 32], strides = [1, 1]} : vector<8x96xf32> to vector<8x32xf32>
    %149 = arith.negf %148 : vector<8x32xf32>
    %150 = math.exp %149 : vector<8x32xf32>
    %cst_55 = arith.constant 1.000000e+00 : f32
    %151 = vector.broadcast %cst_55 : f32 to vector<8x32xf32>
    %152 = arith.addf %151, %150 : vector<8x32xf32>
    %153 = arith.divf %151, %152 : vector<8x32xf32>
    %154 = arith.mulf %128, %126 : vector<8x32xf32>
    %155 = arith.mulf %145, %147 : vector<8x32xf32>
    %156 = arith.addf %154, %155 : vector<8x32xf32>
    %157 = math.tanh %156 : vector<8x32xf32>
    %158 = arith.mulf %153, %157 : vector<8x32xf32>
    %159 = arith.index_cast %c4_i32 : i32 to index
    %c0_56 = arith.constant 0 : index
    %c0_57 = arith.constant 0 : index
    %160 = vector.load %arg10[%159, %c0_56, %c0_57] : memref<8x8x32xf32, #tpu.memory_space<vmem>>, vector<1x8x32xf32>
    %161 = vector.shape_cast %160 : vector<1x8x32xf32> to vector<8x32xf32>
    %162 = vector.shape_cast %158 : vector<8x32xf32> to vector<1x8x32xf32>
    tpu.vector_store %arg10[%159, %c0_56, %c0_57], %162 {strides = array<i32>} : memref<8x8x32xf32, #tpu.memory_space<vmem>>, vector<1x8x32xf32>,
    %c5_i32 = arith.constant 5 : i32
    %c8_i32_58 = arith.constant 8 : i32
    %163 = arith.muli %c5_i32, %c8_i32_58 : i32
    %164 = tpu.assume_multiple %163, 8 : i32
    %165 = arith.index_cast %164 : i32 to index
    %c0_59 = arith.constant 0 : index
    %166 = vector.load %arg9[%165, %c0_59] : memref<64x96xf32, #tpu.memory_space<vmem>>, vector<8x96xf32>
    %c0_60 = arith.constant 0 : index
    %c0_61 = arith.constant 0 : index
    %167 = vector.load %arg5[%c0_60, %c0_61] : memref<32x96xf32, #tpu.memory_space<vmem>>, vector<32x96xf32>
    %cst_62 = arith.constant dense<0.000000e+00> : vector<8x96xf32>
    %168 = tpu.matmul %158, %167, %cst_62 {dimension_numbers = #tpu.dot_dimension_numbers<[1], [0], [0], [1], [0, 0, 1, 1], [], []>} : vector<8x32xf32>, vector<32x96xf32>, vector<8x96xf32> -> vector<8x96xf32>
    %169 = arith.addf %166, %168 : vector<8x96xf32>
    %170 = vector.extract_strided_slice %169 {offsets = [0, 0], sizes = [8, 32], strides = [1, 1]} : vector<8x96xf32> to vector<8x32xf32>
    %171 = arith.negf %170 : vector<8x32xf32>
    %172 = math.exp %171 : vector<8x32xf32>
    %cst_63 = arith.constant 1.000000e+00 : f32
    %173 = vector.broadcast %cst_63 : f32 to vector<8x32xf32>
    %174 = arith.addf %173, %172 : vector<8x32xf32>
    %175 = arith.divf %173, %174 : vector<8x32xf32>
    %176 = vector.extract_strided_slice %169 {offsets = [0, 32], sizes = [8, 32], strides = [1, 1]} : vector<8x96xf32> to vector<8x32xf32>
    %177 = math.tanh %176 : vector<8x32xf32>
    %178 = vector.extract_strided_slice %169 {offsets = [0, 64], sizes = [8, 32], strides = [1, 1]} : vector<8x96xf32> to vector<8x32xf32>
    %179 = arith.negf %178 : vector<8x32xf32>
    %180 = math.exp %179 : vector<8x32xf32>
    %cst_64 = arith.constant 1.000000e+00 : f32
    %181 = vector.broadcast %cst_64 : f32 to vector<8x32xf32>
    %182 = arith.addf %181, %180 : vector<8x32xf32>
    %183 = arith.divf %181, %182 : vector<8x32xf32>
    %184 = arith.mulf %158, %156 : vector<8x32xf32>
    %185 = arith.mulf %175, %177 : vector<8x32xf32>
    %186 = arith.addf %184, %185 : vector<8x32xf32>
    %187 = math.tanh %186 : vector<8x32xf32>
    %188 = arith.mulf %183, %187 : vector<8x32xf32>
    %189 = arith.index_cast %c5_i32 : i32 to index
    %c0_65 = arith.constant 0 : index
    %c0_66 = arith.constant 0 : index
    %190 = vector.load %arg10[%189, %c0_65, %c0_66] : memref<8x8x32xf32, #tpu.memory_space<vmem>>, vector<1x8x32xf32>
    %191 = vector.shape_cast %190 : vector<1x8x32xf32> to vector<8x32xf32>
    %192 = vector.shape_cast %188 : vector<8x32xf32> to vector<1x8x32xf32>
    tpu.vector_store %arg10[%189, %c0_65, %c0_66], %192 {strides = array<i32>} : memref<8x8x32xf32, #tpu.memory_space<vmem>>, vector<1x8x32xf32>,
    %c6_i32 = arith.constant 6 : i32
    %c8_i32_67 = arith.constant 8 : i32
    %193 = arith.muli %c6_i32, %c8_i32_67 : i32
    %194 = tpu.assume_multiple %193, 8 : i32
    %195 = arith.index_cast %194 : i32 to index
    %c0_68 = arith.constant 0 : index
    %196 = vector.load %arg9[%195, %c0_68] : memref<64x96xf32, #tpu.memory_space<vmem>>, vector<8x96xf32>
    %c0_69 = arith.constant 0 : index
    %c0_70 = arith.constant 0 : index
    %197 = vector.load %arg5[%c0_69, %c0_70] : memref<32x96xf32, #tpu.memory_space<vmem>>, vector<32x96xf32>
    %cst_71 = arith.constant dense<0.000000e+00> : vector<8x96xf32>
    %198 = tpu.matmul %188, %197, %cst_71 {dimension_numbers = #tpu.dot_dimension_numbers<[1], [0], [0], [1], [0, 0, 1, 1], [], []>} : vector<8x32xf32>, vector<32x96xf32>, vector<8x96xf32> -> vector<8x96xf32>
    %199 = arith.addf %196, %198 : vector<8x96xf32>
    %200 = vector.extract_strided_slice %199 {offsets = [0, 0], sizes = [8, 32], strides = [1, 1]} : vector<8x96xf32> to vector<8x32xf32>
    %201 = arith.negf %200 : vector<8x32xf32>
    %202 = math.exp %201 : vector<8x32xf32>
    %cst_72 = arith.constant 1.000000e+00 : f32
    %203 = vector.broadcast %cst_72 : f32 to vector<8x32xf32>
    %204 = arith.addf %203, %202 : vector<8x32xf32>
    %205 = arith.divf %203, %204 : vector<8x32xf32>
    %206 = vector.extract_strided_slice %199 {offsets = [0, 32], sizes = [8, 32], strides = [1, 1]} : vector<8x96xf32> to vector<8x32xf32>
    %207 = math.tanh %206 : vector<8x32xf32>
    %208 = vector.extract_strided_slice %199 {offsets = [0, 64], sizes = [8, 32], strides = [1, 1]} : vector<8x96xf32> to vector<8x32xf32>
    %209 = arith.negf %208 : vector<8x32xf32>
    %210 = math.exp %209 : vector<8x32xf32>
    %cst_73 = arith.constant 1.000000e+00 : f32
    %211 = vector.broadcast %cst_73 : f32 to vector<8x32xf32>
    %212 = arith.addf %211, %210 : vector<8x32xf32>
    %213 = arith.divf %211, %212 : vector<8x32xf32>
    %214 = arith.mulf %188, %186 : vector<8x32xf32>
    %215 = arith.mulf %205, %207 : vector<8x32xf32>
    %216 = arith.addf %214, %215 : vector<8x32xf32>
    %217 = math.tanh %216 : vector<8x32xf32>
    %218 = arith.mulf %213, %217 : vector<8x32xf32>
    %219 = arith.index_cast %c6_i32 : i32 to index
    %c0_74 = arith.constant 0 : index
    %c0_75 = arith.constant 0 : index
    %220 = vector.load %arg10[%219, %c0_74, %c0_75] : memref<8x8x32xf32, #tpu.memory_space<vmem>>, vector<1x8x32xf32>
    %221 = vector.shape_cast %220 : vector<1x8x32xf32> to vector<8x32xf32>
    %222 = vector.shape_cast %218 : vector<8x32xf32> to vector<1x8x32xf32>
    tpu.vector_store %arg10[%219, %c0_74, %c0_75], %222 {strides = array<i32>} : memref<8x8x32xf32, #tpu.memory_space<vmem>>, vector<1x8x32xf32>,
    %c7_i32 = arith.constant 7 : i32
    %c8_i32_76 = arith.constant 8 : i32
    %223 = arith.muli %c7_i32, %c8_i32_76 : i32
    %224 = tpu.assume_multiple %223, 8 : i32
    %225 = arith.index_cast %224 : i32 to index
    %c0_77 = arith.constant 0 : index
    %226 = vector.load %arg9[%225, %c0_77] : memref<64x96xf32, #tpu.memory_space<vmem>>, vector<8x96xf32>
    %c0_78 = arith.constant 0 : index
    %c0_79 = arith.constant 0 : index
    %227 = vector.load %arg5[%c0_78, %c0_79] : memref<32x96xf32, #tpu.memory_space<vmem>>, vector<32x96xf32>
    %cst_80 = arith.constant dense<0.000000e+00> : vector<8x96xf32>
    %228 = tpu.matmul %218, %227, %cst_80 {dimension_numbers = #tpu.dot_dimension_numbers<[1], [0], [0], [1], [0, 0, 1, 1], [], []>} : vector<8x32xf32>, vector<32x96xf32>, vector<8x96xf32> -> vector<8x96xf32>
    %229 = arith.addf %226, %228 : vector<8x96xf32>
    %230 = vector.extract_strided_slice %229 {offsets = [0, 0], sizes = [8, 32], strides = [1, 1]} : vector<8x96xf32> to vector<8x32xf32>
    %231 = arith.negf %230 : vector<8x32xf32>
    %232 = math.exp %231 : vector<8x32xf32>
    %cst_81 = arith.constant 1.000000e+00 : f32
    %233 = vector.broadcast %cst_81 : f32 to vector<8x32xf32>
    %234 = arith.addf %233, %232 : vector<8x32xf32>
    %235 = arith.divf %233, %234 : vector<8x32xf32>
    %236 = vector.extract_strided_slice %229 {offsets = [0, 32], sizes = [8, 32], strides = [1, 1]} : vector<8x96xf32> to vector<8x32xf32>
    %237 = math.tanh %236 : vector<8x32xf32>
    %238 = vector.extract_strided_slice %229 {offsets = [0, 64], sizes = [8, 32], strides = [1, 1]} : vector<8x96xf32> to vector<8x32xf32>
    %239 = arith.negf %238 : vector<8x32xf32>
    %240 = math.exp %239 : vector<8x32xf32>
    %cst_82 = arith.constant 1.000000e+00 : f32
    %241 = vector.broadcast %cst_82 : f32 to vector<8x32xf32>
    %242 = arith.addf %241, %240 : vector<8x32xf32>
    %243 = arith.divf %241, %242 : vector<8x32xf32>
    %244 = arith.mulf %218, %216 : vector<8x32xf32>
    %245 = arith.mulf %235, %237 : vector<8x32xf32>
    %246 = arith.addf %244, %245 : vector<8x32xf32>
    %247 = math.tanh %246 : vector<8x32xf32>
    %248 = arith.mulf %243, %247 : vector<8x32xf32>
    %249 = arith.index_cast %c7_i32 : i32 to index
    %c0_83 = arith.constant 0 : index
    %c0_84 = arith.constant 0 : index
    %250 = vector.load %arg10[%249, %c0_83, %c0_84] : memref<8x8x32xf32, #tpu.memory_space<vmem>>, vector<1x8x32xf32>
    %251 = vector.shape_cast %250 : vector<1x8x32xf32> to vector<8x32xf32>
    %252 = vector.shape_cast %248 : vector<8x32xf32> to vector<1x8x32xf32>
    tpu.vector_store %arg10[%249, %c0_83, %c0_84], %252 {strides = array<i32>} : memref<8x8x32xf32, #tpu.memory_space<vmem>>, vector<1x8x32xf32>,
    %c8_i32_85 = arith.constant 8 : i32
    %c0_86 = arith.constant 0 : index
    %c0_87 = arith.constant 0 : index
    %253 = vector.load %arg7[%c0_86, %c0_87] : memref<8x32xf32, #tpu.memory_space<vmem>>, vector<8x32xf32>
    tpu.vector_store %arg7[%c0_86, %c0_87], %248 {strides = array<i32>} : memref<8x32xf32, #tpu.memory_space<vmem>>, vector<8x32xf32>,
    %c0_88 = arith.constant 0 : index
    %c0_89 = arith.constant 0 : index
    %254 = vector.load %arg8[%c0_88, %c0_89] : memref<8x32xf32, #tpu.memory_space<vmem>>, vector<8x32xf32>
    tpu.vector_store %arg8[%c0_88, %c0_89], %246 {strides = array<i32>} : memref<8x32xf32, #tpu.memory_space<vmem>>, vector<8x32xf32>,
    %c0_90 = arith.constant 0 : index
    %c0_91 = arith.constant 0 : index
    %c0_92 = arith.constant 0 : index
    %255 = vector.load %arg10[%c0_90, %c0_91, %c0_92] : memref<8x8x32xf32, #tpu.memory_space<vmem>>, vector<1x8x32xf32>
    %256 = vector.shape_cast %255 : vector<1x8x32xf32> to vector<8x32xf32>
    %c0_93 = arith.constant 0 : index
    %c0_94 = arith.constant 0 : index
    %c0_95 = arith.constant 0 : index
    %257 = vector.load %arg6[%c0_93, %c0_94, %c0_95] : memref<8x8x32xf32, #tpu.memory_space<vmem>>, vector<8x1x32xf32>
    %258 = vector.shape_cast %257 : vector<8x1x32xf32> to vector<8x32xf32>
    %259 = vector.shape_cast %256 : vector<8x32xf32> to vector<8x1x32xf32>
    tpu.vector_store %arg6[%c0_93, %c0_94, %c0_95], %259 {strides = array<i32>} : memref<8x8x32xf32, #tpu.memory_space<vmem>>, vector<8x1x32xf32>,
    %c1 = arith.constant 1 : index
    %c0_96 = arith.constant 0 : index
    %c0_97 = arith.constant 0 : index
    %260 = vector.load %arg10[%c1, %c0_96, %c0_97] : memref<8x8x32xf32, #tpu.memory_space<vmem>>, vector<1x8x32xf32>
    %261 = vector.shape_cast %260 : vector<1x8x32xf32> to vector<8x32xf32>
    %c0_98 = arith.constant 0 : index
    %c1_99 = arith.constant 1 : index
    %c0_100 = arith.constant 0 : index
    %262 = vector.load %arg6[%c0_98, %c1_99, %c0_100] : memref<8x8x32xf32, #tpu.memory_space<vmem>>, vector<8x1x32xf32>
    %263 = vector.shape_cast %262 : vector<8x1x32xf32> to vector<8x32xf32>
    %264 = vector.shape_cast %261 : vector<8x32xf32> to vector<8x1x32xf32>
    tpu.vector_store %arg6[%c0_98, %c1_99, %c0_100], %264 {strides = array<i32>} : memref<8x8x32xf32, #tpu.memory_space<vmem>>, vector<8x1x32xf32>,
    %c2 = arith.constant 2 : index
    %c0_101 = arith.constant 0 : index
    %c0_102 = arith.constant 0 : index
    %265 = vector.load %arg10[%c2, %c0_101, %c0_102] : memref<8x8x32xf32, #tpu.memory_space<vmem>>, vector<1x8x32xf32>
    %266 = vector.shape_cast %265 : vector<1x8x32xf32> to vector<8x32xf32>
    %c0_103 = arith.constant 0 : index
    %c2_104 = arith.constant 2 : index
    %c0_105 = arith.constant 0 : index
    %267 = vector.load %arg6[%c0_103, %c2_104, %c0_105] : memref<8x8x32xf32, #tpu.memory_space<vmem>>, vector<8x1x32xf32>
    %268 = vector.shape_cast %267 : vector<8x1x32xf32> to vector<8x32xf32>
    %269 = vector.shape_cast %266 : vector<8x32xf32> to vector<8x1x32xf32>
    tpu.vector_store %arg6[%c0_103, %c2_104, %c0_105], %269 {strides = array<i32>} : memref<8x8x32xf32, #tpu.memory_space<vmem>>, vector<8x1x32xf32>,
    %c3 = arith.constant 3 : index
    %c0_106 = arith.constant 0 : index
    %c0_107 = arith.constant 0 : index
    %270 = vector.load %arg10[%c3, %c0_106, %c0_107] : memref<8x8x32xf32, #tpu.memory_space<vmem>>, vector<1x8x32xf32>
    %271 = vector.shape_cast %270 : vector<1x8x32xf32> to vector<8x32xf32>
    %c0_108 = arith.constant 0 : index
    %c3_109 = arith.constant 3 : index
    %c0_110 = arith.constant 0 : index
    %272 = vector.load %arg6[%c0_108, %c3_109, %c0_110] : memref<8x8x32xf32, #tpu.memory_space<vmem>>, vector<8x1x32xf32>
    %273 = vector.shape_cast %272 : vector<8x1x32xf32> to vector<8x32xf32>
    %274 = vector.shape_cast %271 : vector<8x32xf32> to vector<8x1x32xf32>
    tpu.vector_store %arg6[%c0_108, %c3_109, %c0_110], %274 {strides = array<i32>} : memref<8x8x32xf32, #tpu.memory_space<vmem>>, vector<8x1x32xf32>,
    %c4 = arith.constant 4 : index
    %c0_111 = arith.constant 0 : index
    %c0_112 = arith.constant 0 : index
    %275 = vector.load %arg10[%c4, %c0_111, %c0_112] : memref<8x8x32xf32, #tpu.memory_space<vmem>>, vector<1x8x32xf32>
    %276 = vector.shape_cast %275 : vector<1x8x32xf32> to vector<8x32xf32>
    %c0_113 = arith.constant 0 : index
    %c4_114 = arith.constant 4 : index
    %c0_115 = arith.constant 0 : index
    %277 = vector.load %arg6[%c0_113, %c4_114, %c0_115] : memref<8x8x32xf32, #tpu.memory_space<vmem>>, vector<8x1x32xf32>
    %278 = vector.shape_cast %277 : vector<8x1x32xf32> to vector<8x32xf32>
    %279 = vector.shape_cast %276 : vector<8x32xf32> to vector<8x1x32xf32>
    tpu.vector_store %arg6[%c0_113, %c4_114, %c0_115], %279 {strides = array<i32>} : memref<8x8x32xf32, #tpu.memory_space<vmem>>, vector<8x1x32xf32>,
    %c5 = arith.constant 5 : index
    %c0_116 = arith.constant 0 : index
    %c0_117 = arith.constant 0 : index
    %280 = vector.load %arg10[%c5, %c0_116, %c0_117] : memref<8x8x32xf32, #tpu.memory_space<vmem>>, vector<1x8x32xf32>
    %281 = vector.shape_cast %280 : vector<1x8x32xf32> to vector<8x32xf32>
    %c0_118 = arith.constant 0 : index
    %c5_119 = arith.constant 5 : index
    %c0_120 = arith.constant 0 : index
    %282 = vector.load %arg6[%c0_118, %c5_119, %c0_120] : memref<8x8x32xf32, #tpu.memory_space<vmem>>, vector<8x1x32xf32>
    %283 = vector.shape_cast %282 : vector<8x1x32xf32> to vector<8x32xf32>
    %284 = vector.shape_cast %281 : vector<8x32xf32> to vector<8x1x32xf32>
    tpu.vector_store %arg6[%c0_118, %c5_119, %c0_120], %284 {strides = array<i32>} : memref<8x8x32xf32, #tpu.memory_space<vmem>>, vector<8x1x32xf32>,
    %c6 = arith.constant 6 : index
    %c0_121 = arith.constant 0 : index
    %c0_122 = arith.constant 0 : index
    %285 = vector.load %arg10[%c6, %c0_121, %c0_122] : memref<8x8x32xf32, #tpu.memory_space<vmem>>, vector<1x8x32xf32>
    %286 = vector.shape_cast %285 : vector<1x8x32xf32> to vector<8x32xf32>
    %c0_123 = arith.constant 0 : index
    %c6_124 = arith.constant 6 : index
    %c0_125 = arith.constant 0 : index
    %287 = vector.load %arg6[%c0_123, %c6_124, %c0_125] : memref<8x8x32xf32, #tpu.memory_space<vmem>>, vector<8x1x32xf32>
    %288 = vector.shape_cast %287 : vector<8x1x32xf32> to vector<8x32xf32>
    %289 = vector.shape_cast %286 : vector<8x32xf32> to vector<8x1x32xf32>
    tpu.vector_store %arg6[%c0_123, %c6_124, %c0_125], %289 {strides = array<i32>} : memref<8x8x32xf32, #tpu.memory_space<vmem>>, vector<8x1x32xf32>,
    %c7 = arith.constant 7 : index
    %c0_126 = arith.constant 0 : index
    %c0_127 = arith.constant 0 : index
    %290 = vector.load %arg10[%c7, %c0_126, %c0_127] : memref<8x8x32xf32, #tpu.memory_space<vmem>>, vector<1x8x32xf32>
    %291 = vector.shape_cast %290 : vector<1x8x32xf32> to vector<8x32xf32>
    %c0_128 = arith.constant 0 : index
    %c7_129 = arith.constant 7 : index
    %c0_130 = arith.constant 0 : index
    %292 = vector.load %arg6[%c0_128, %c7_129, %c0_130] : memref<8x8x32xf32, #tpu.memory_space<vmem>>, vector<8x1x32xf32>
    %293 = vector.shape_cast %292 : vector<8x1x32xf32> to vector<8x32xf32>
    %294 = vector.shape_cast %291 : vector<8x32xf32> to vector<8x1x32xf32>
    tpu.vector_store %arg6[%c0_128, %c7_129, %c0_130], %294 {strides = array<i32>} : memref<8x8x32xf32, #tpu.memory_space<vmem>>, vector<8x1x32xf32>,
    return
  }
  func.func @transform_0(%arg0: i32, %arg1: i32) -> (i32, i32, i32) {
    %c0_i32 = arith.constant 0 : i32
    %c0_i32_0 = arith.constant 0 : i32
    return %arg0, %arg1, %c0_i32 : i32, i32, i32
  }
  func.func @transform_1(%arg0: i32, %arg1: i32) -> (i32, i32) {
    %c0_i32 = arith.constant 0 : i32
    %c0_i32_0 = arith.constant 0 : i32
    %c0_i32_1 = arith.constant 0 : i32
    return %c0_i32, %c0_i32_0 : i32, i32
  }
  func.func @transform_2(%arg0: i32, %arg1: i32) -> (i32, i32) {
    %c0_i32 = arith.constant 0 : i32
    %c0_i32_0 = arith.constant 0 : i32
    %c0_i32_1 = arith.constant 0 : i32
    return %c0_i32, %c0_i32_0 : i32, i32
  }
  func.func @transform_3(%arg0: i32, %arg1: i32) -> (i32, i32) {
    %c0_i32 = arith.constant 0 : i32
    %c0_i32_0 = arith.constant 0 : i32
    %c0_i32_1 = arith.constant 0 : i32
    return %c0_i32, %c0_i32_0 : i32, i32
  }
  func.func @transform_4(%arg0: i32, %arg1: i32) -> (i32, i32, i32) {
    %c0_i32 = arith.constant 0 : i32
    %c0_i32_0 = arith.constant 0 : i32
    return %arg0, %arg1, %c0_i32 : i32, i32, i32
  }
}

module attributes {stable_mosaic.version = 11 : i64} {
  func.func @_lstm_kernel(%arg0: i32, %arg1: i32, %arg2: memref<1x64x16xf32, #tpu.memory_space<vmem>>, %arg3: memref<16x96xf32, #tpu.memory_space<vmem>>, %arg4: memref<1x96xf32, #tpu.memory_space<vmem>>, %arg5: memref<32x96xf32, #tpu.memory_space<vmem>>, %arg6: memref<8x8x32xf32, #tpu.memory_space<vmem>>, %arg7: memref<8x32xf32, #tpu.memory_space<vmem>>, %arg8: memref<8x32xf32, #tpu.memory_space<vmem>>, %arg9: memref<64x96xf32, #tpu.memory_space<vmem>>, %arg10: memref<8x8x32xf32, #tpu.memory_space<vmem>>) attributes {dimension_semantics = [#tpu.dimension_semantics<parallel>, #tpu.dimension_semantics<arbitrary>], iteration_bounds = array<i64: 1, 2>, scalar_prefetch = 0 : i64, scratch_operands = 4 : i64, tpu.core_type = #tpu.core_type<tc>, window_params = [{transform_indices = @transform_0, window_bounds = array<i64: 1, 64, 16>}, {pipeline_mode = #tpu.pipeline_mode<synchronous>, transform_indices = @transform_1, window_bounds = array<i64: 16, 96>}, {pipeline_mode = #tpu.pipeline_mode<synchronous>, transform_indices = @transform_2, window_bounds = array<i64: 1, 96>}, {pipeline_mode = #tpu.pipeline_mode<synchronous>, transform_indices = @transform_3, window_bounds = array<i64: 32, 96>}, {transform_indices = @transform_4, window_bounds = array<i64: 8, 8, 32>}]} {
    %c0_i32 = arith.constant 0 : i32
    %0 = arith.cmpi eq, %arg1, %c0_i32 : i32
    %1 = arith.extui %0 : i1 to i32
    %c0_i32_0 = arith.constant 0 : i32
    %2 = arith.cmpi ne, %1, %c0_i32_0 : i32
    scf.if %2 {
      %cst_131 = arith.constant 0.000000e+00 : f32
      %295 = vector.broadcast %cst_131 : f32 to vector<8x32xf32>
      %c0_132 = arith.constant 0 : index
      %c0_133 = arith.constant 0 : index
      %296 = vector.load %arg7[%c0_132, %c0_133] : memref<8x32xf32, #tpu.memory_space<vmem>>, vector<8x32xf32>
      tpu.vector_store %arg7[%c0_132, %c0_133], %295 {strides = array<i32>} : memref<8x32xf32, #tpu.memory_space<vmem>>, vector<8x32xf32>,
      %cst_134 = arith.constant 0.000000e+00 : f32
      %297 = vector.broadcast %cst_134 : f32 to vector<8x32xf32>
      %c0_135 = arith.constant 0 : index
      %c0_136 = arith.constant 0 : index
      %298 = vector.load %arg8[%c0_135, %c0_136] : memref<8x32xf32, #tpu.memory_space<vmem>>, vector<8x32xf32>
      tpu.vector_store %arg8[%c0_135, %c0_136], %297 {strides = array<i32>} : memref<8x32xf32, #tpu.memory_space<vmem>>, vector<8x32xf32>,
    } else {
    }
    %c0 = arith.constant 0 : index
    %c0_1 = arith.constant 0 : index
    %c0_2 = arith.constant 0 : index
    %3 = vector.load %arg2[%c0, %c0_1, %c0_2] : memref<1x64x16xf32, #tpu.memory_space<vmem>>, vector<1x64x16xf32>
    %4 = vector.shape_cast %3 : vector<1x64x16xf32> to vector<64x16xf32>
    %c0_3 = arith.constant 0 : index
    %c0_4 = arith.constant 0 : index
    %5 = vector.load %arg3[%c0_3, %c0_4] : memref<16x96xf32, #tpu.memory_space<vmem>>, vector<16x96xf32>
    %cst = arith.constant dense<0.000000e+00> : vector<64x96xf32>
    %6 = tpu.matmul %4, %5, %cst {dimension_numbers = #tpu.dot_dimension_numbers<[1], [0], [0], [1], [0, 0, 1, 1], [], []>} : vector<64x16xf32>, vector<16x96xf32>, vector<64x96xf32> -> vector<64x96xf32>
    %c0_5 = arith.constant 0 : index
    %c0_6 = arith.constant 0 : index
    %7 = vector.load %arg4[%c0_5, %c0_6] : memref<1x96xf32, #tpu.memory_space<vmem>>, vector<1x96xf32>
    %8 = vector.broadcast %7 : vector<1x96xf32> to vector<64x96xf32>
    %9 = arith.addf %6, %8 : vector<64x96xf32>
    %c0_7 = arith.constant 0 : index
    %c0_8 = arith.constant 0 : index
    %10 = vector.load %arg9[%c0_7, %c0_8] : memref<64x96xf32, #tpu.memory_space<vmem>>, vector<64x96xf32>
    tpu.vector_store %arg9[%c0_7, %c0_8], %9 {strides = array<i32>} : memref<64x96xf32, #tpu.memory_space<vmem>>, vector<64x96xf32>,
    %c0_9 = arith.constant 0 : index
    %c0_10 = arith.constant 0 : index
    %11 = vector.load %arg7[%c0_9, %c0_10] : memref<8x32xf32, #tpu.memory_space<vmem>>, vector<8x32xf32>
    %c0_11 = arith.constant 0 : index
    %c0_12 = arith.constant 0 : index
    %12 = vector.load %arg8[%c0_11, %c0_12] : memref<8x32xf32, #tpu.memory_space<vmem>>, vector<8x32xf32>
    %c0_i32_13 = arith.constant 0 : i32
    %c8_i32 = arith.constant 8 : i32
    %13 = arith.muli %c0_i32_13, %c8_i32 : i32
    %14 = tpu.assume_multiple %13, 8 : i32
    %15 = arith.index_cast %14 : i32 to index
    %c0_14 = arith.constant 0 : index
    %16 = vector.load %arg9[%15, %c0_14] : memref<64x96xf32, #tpu.memory_space<vmem>>, vector<8x96xf32>
    %c0_15 = arith.constant 0 : index
    %c0_16 = arith.constant 0 : index
    %17 = vector.load %arg5[%c0_15, %c0_16] : memref<32x96xf32, #tpu.memory_space<vmem>>, vector<32x96xf32>
    %cst_17 = arith.constant dense<0.000000e+00> : vector<8x96xf32>
    %18 = tpu.matmul %11, %17, %cst_17 {dimension_numbers = #tpu.dot_dimension_numbers<[1], [0], [0], [1], [0, 0, 1, 1], [], []>} : vector<8x32xf32>, vector<32x96xf32>, vector<8x96xf32> -> vector<8x96xf32>
    %19 = arith.addf %16, %18 : vector<8x96xf32>
    %20 = vector.extract_strided_slice %19 {offsets = [0, 0], sizes = [8, 32], strides = [1, 1]} : vector<8x96xf32> to vector<8x32xf32>
    %21 = arith.negf %20 : vector<8x32xf32>
    %22 = math.exp %21 : vector<8x32xf32>
    %cst_18 = arith.constant 1.000000e+00 : f32
    %23 = vector.broadcast %cst_18 : f32 to vector<8x32xf32>
    %24 = arith.addf %23, %22 : vector<8x32xf32>
    %25 = arith.divf %23, %24 : vector<8x32xf32>
    %26 = vector.extract_strided_slice %19 {offsets = [0, 32], sizes = [8, 32], strides = [1, 1]} : vector<8x96xf32> to vector<8x32xf32>
    %27 = math.tanh %26 : vector<8x32xf32>
    %28 = vector.extract_strided_slice %19 {offsets = [0, 64], sizes = [8, 32], strides = [1, 1]} : vector<8x96xf32> to vector<8x32xf32>
    %29 = arith.negf %28 : vector<8x32xf32>
    %30 = math.exp %29 : vector<8x32xf32>
    %cst_19 = arith.constant 1.000000e+00 : f32
    %31 = vector.broadcast %cst_19 : f32 to vector<8x32xf32>
    %32 = arith.addf %31, %30 : vector<8x32xf32>
    %33 = arith.divf %31, %32 : vector<8x32xf32>
    %34 = arith.mulf %11, %12 : vector<8x32xf32>
    %35 = arith.mulf %25, %27 : vector<8x32xf32>
    %36 = arith.addf %34, %35 : vector<8x32xf32>
    %37 = math.tanh %36 : vector<8x32xf32>
    %38 = arith.mulf %33, %37 : vector<8x32xf32>
    %39 = arith.index_cast %c0_i32_13 : i32 to index
    %c0_20 = arith.constant 0 : index
    %c0_21 = arith.constant 0 : index
    %40 = vector.load %arg10[%39, %c0_20, %c0_21] : memref<8x8x32xf32, #tpu.memory_space<vmem>>, vector<1x8x32xf32>
    %41 = vector.shape_cast %40 : vector<1x8x32xf32> to vector<8x32xf32>
    %42 = vector.shape_cast %38 : vector<8x32xf32> to vector<1x8x32xf32>
    tpu.vector_store %arg10[%39, %c0_20, %c0_21], %42 {strides = array<i32>} : memref<8x8x32xf32, #tpu.memory_space<vmem>>, vector<1x8x32xf32>,
    %c1_i32 = arith.constant 1 : i32
    %c8_i32_22 = arith.constant 8 : i32
    %43 = arith.muli %c1_i32, %c8_i32_22 : i32
    %44 = tpu.assume_multiple %43, 8 : i32
    %45 = arith.index_cast %44 : i32 to index
    %c0_23 = arith.constant 0 : index
    %46 = vector.load %arg9[%45, %c0_23] : memref<64x96xf32, #tpu.memory_space<vmem>>, vector<8x96xf32>
    %c0_24 = arith.constant 0 : index
    %c0_25 = arith.constant 0 : index
    %47 = vector.load %arg5[%c0_24, %c0_25] : memref<32x96xf32, #tpu.memory_space<vmem>>, vector<32x96xf32>
    %cst_26 = arith.constant dense<0.000000e+00> : vector<8x96xf32>
    %48 = tpu.matmul %38, %47, %cst_26 {dimension_numbers = #tpu.dot_dimension_numbers<[1], [0], [0], [1], [0, 0, 1, 1], [], []>} : vector<8x32xf32>, vector<32x96xf32>, vector<8x96xf32> -> vector<8x96xf32>
    %49 = arith.addf %46, %48 : vector<8x96xf32>
    %50 = vector.extract_strided_slice %49 {offsets = [0, 0], sizes = [8, 32], strides = [1, 1]} : vector<8x96xf32> to vector<8x32xf32>
    %51 = arith.negf %50 : vector<8x32xf32>
    %52 = math.exp %51 : vector<8x32xf32>
    %cst_27 = arith.constant 1.000000e+00 : f32
    %53 = vector.broadcast %cst_27 : f32 to vector<8x32xf32>
    %54 = arith.addf %53, %52 : vector<8x32xf32>
    %55 = arith.divf %53, %54 : vector<8x32xf32>
    %56 = vector.extract_strided_slice %49 {offsets = [0, 32], sizes = [8, 32], strides = [1, 1]} : vector<8x96xf32> to vector<8x32xf32>
    %57 = math.tanh %56 : vector<8x32xf32>
    %58 = vector.extract_strided_slice %49 {offsets = [0, 64], sizes = [8, 32], strides = [1, 1]} : vector<8x96xf32> to vector<8x32xf32>
    %59 = arith.negf %58 : vector<8x32xf32>
    %60 = math.exp %59 : vector<8x32xf32>
    %cst_28 = arith.constant 1.000000e+00 : f32
    %61 = vector.broadcast %cst_28 : f32 to vector<8x32xf32>
    %62 = arith.addf %61, %60 : vector<8x32xf32>
    %63 = arith.divf %61, %62 : vector<8x32xf32>
    %64 = arith.mulf %38, %36 : vector<8x32xf32>
    %65 = arith.mulf %55, %57 : vector<8x32xf32>
    %66 = arith.addf %64, %65 : vector<8x32xf32>
    %67 = math.tanh %66 : vector<8x32xf32>
    %68 = arith.mulf %63, %67 : vector<8x32xf32>
    %69 = arith.index_cast %c1_i32 : i32 to index
    %c0_29 = arith.constant 0 : index
    %c0_30 = arith.constant 0 : index
    %70 = vector.load %arg10[%69, %c0_29, %c0_30] : memref<8x8x32xf32, #tpu.memory_space<vmem>>, vector<1x8x32xf32>
    %71 = vector.shape_cast %70 : vector<1x8x32xf32> to vector<8x32xf32>
    %72 = vector.shape_cast %68 : vector<8x32xf32> to vector<1x8x32xf32>
    tpu.vector_store %arg10[%69, %c0_29, %c0_30], %72 {strides = array<i32>} : memref<8x8x32xf32, #tpu.memory_space<vmem>>, vector<1x8x32xf32>,
    %c2_i32 = arith.constant 2 : i32
    %c8_i32_31 = arith.constant 8 : i32
    %73 = arith.muli %c2_i32, %c8_i32_31 : i32
    %74 = tpu.assume_multiple %73, 8 : i32
    %75 = arith.index_cast %74 : i32 to index
    %c0_32 = arith.constant 0 : index
    %76 = vector.load %arg9[%75, %c0_32] : memref<64x96xf32, #tpu.memory_space<vmem>>, vector<8x96xf32>
    %c0_33 = arith.constant 0 : index
    %c0_34 = arith.constant 0 : index
    %77 = vector.load %arg5[%c0_33, %c0_34] : memref<32x96xf32, #tpu.memory_space<vmem>>, vector<32x96xf32>
    %cst_35 = arith.constant dense<0.000000e+00> : vector<8x96xf32>
    %78 = tpu.matmul %68, %77, %cst_35 {dimension_numbers = #tpu.dot_dimension_numbers<[1], [0], [0], [1], [0, 0, 1, 1], [], []>} : vector<8x32xf32>, vector<32x96xf32>, vector<8x96xf32> -> vector<8x96xf32>
    %79 = arith.addf %76, %78 : vector<8x96xf32>
    %80 = vector.extract_strided_slice %79 {offsets = [0, 0], sizes = [8, 32], strides = [1, 1]} : vector<8x96xf32> to vector<8x32xf32>
    %81 = arith.negf %80 : vector<8x32xf32>
    %82 = math.exp %81 : vector<8x32xf32>
    %cst_36 = arith.constant 1.000000e+00 : f32
    %83 = vector.broadcast %cst_36 : f32 to vector<8x32xf32>
    %84 = arith.addf %83, %82 : vector<8x32xf32>
    %85 = arith.divf %83, %84 : vector<8x32xf32>
    %86 = vector.extract_strided_slice %79 {offsets = [0, 32], sizes = [8, 32], strides = [1, 1]} : vector<8x96xf32> to vector<8x32xf32>
    %87 = math.tanh %86 : vector<8x32xf32>
    %88 = vector.extract_strided_slice %79 {offsets = [0, 64], sizes = [8, 32], strides = [1, 1]} : vector<8x96xf32> to vector<8x32xf32>
    %89 = arith.negf %88 : vector<8x32xf32>
    %90 = math.exp %89 : vector<8x32xf32>
    %cst_37 = arith.constant 1.000000e+00 : f32
    %91 = vector.broadcast %cst_37 : f32 to vector<8x32xf32>
    %92 = arith.addf %91, %90 : vector<8x32xf32>
    %93 = arith.divf %91, %92 : vector<8x32xf32>
    %94 = arith.mulf %68, %66 : vector<8x32xf32>
    %95 = arith.mulf %85, %87 : vector<8x32xf32>
    %96 = arith.addf %94, %95 : vector<8x32xf32>
    %97 = math.tanh %96 : vector<8x32xf32>
    %98 = arith.mulf %93, %97 : vector<8x32xf32>
    %99 = arith.index_cast %c2_i32 : i32 to index
    %c0_38 = arith.constant 0 : index
    %c0_39 = arith.constant 0 : index
    %100 = vector.load %arg10[%99, %c0_38, %c0_39] : memref<8x8x32xf32, #tpu.memory_space<vmem>>, vector<1x8x32xf32>
    %101 = vector.shape_cast %100 : vector<1x8x32xf32> to vector<8x32xf32>
    %102 = vector.shape_cast %98 : vector<8x32xf32> to vector<1x8x32xf32>
    tpu.vector_store %arg10[%99, %c0_38, %c0_39], %102 {strides = array<i32>} : memref<8x8x32xf32, #tpu.memory_space<vmem>>, vector<1x8x32xf32>,
    %c3_i32 = arith.constant 3 : i32
    %c8_i32_40 = arith.constant 8 : i32
    %103 = arith.muli %c3_i32, %c8_i32_40 : i32
    %104 = tpu.assume_multiple %103, 8 : i32
    %105 = arith.index_cast %104 : i32 to index
    %c0_41 = arith.constant 0 : index
    %106 = vector.load %arg9[%105, %c0_41] : memref<64x96xf32, #tpu.memory_space<vmem>>, vector<8x96xf32>
    %c0_42 = arith.constant 0 : index
    %c0_43 = arith.constant 0 : index
    %107 = vector.load %arg5[%c0_42, %c0_43] : memref<32x96xf32, #tpu.memory_space<vmem>>, vector<32x96xf32>
    %cst_44 = arith.constant dense<0.000000e+00> : vector<8x96xf32>
    %108 = tpu.matmul %98, %107, %cst_44 {dimension_numbers = #tpu.dot_dimension_numbers<[1], [0], [0], [1], [0, 0, 1, 1], [], []>} : vector<8x32xf32>, vector<32x96xf32>, vector<8x96xf32> -> vector<8x96xf32>
    %109 = arith.addf %106, %108 : vector<8x96xf32>
    %110 = vector.extract_strided_slice %109 {offsets = [0, 0], sizes = [8, 32], strides = [1, 1]} : vector<8x96xf32> to vector<8x32xf32>
    %111 = arith.negf %110 : vector<8x32xf32>
    %112 = math.exp %111 : vector<8x32xf32>
    %cst_45 = arith.constant 1.000000e+00 : f32
    %113 = vector.broadcast %cst_45 : f32 to vector<8x32xf32>
    %114 = arith.addf %113, %112 : vector<8x32xf32>
    %115 = arith.divf %113, %114 : vector<8x32xf32>
    %116 = vector.extract_strided_slice %109 {offsets = [0, 32], sizes = [8, 32], strides = [1, 1]} : vector<8x96xf32> to vector<8x32xf32>
    %117 = math.tanh %116 : vector<8x32xf32>
    %118 = vector.extract_strided_slice %109 {offsets = [0, 64], sizes = [8, 32], strides = [1, 1]} : vector<8x96xf32> to vector<8x32xf32>
    %119 = arith.negf %118 : vector<8x32xf32>
    %120 = math.exp %119 : vector<8x32xf32>
    %cst_46 = arith.constant 1.000000e+00 : f32
    %121 = vector.broadcast %cst_46 : f32 to vector<8x32xf32>
    %122 = arith.addf %121, %120 : vector<8x32xf32>
    %123 = arith.divf %121, %122 : vector<8x32xf32>
    %124 = arith.mulf %98, %96 : vector<8x32xf32>
    %125 = arith.mulf %115, %117 : vector<8x32xf32>
    %126 = arith.addf %124, %125 : vector<8x32xf32>
    %127 = math.tanh %126 : vector<8x32xf32>
    %128 = arith.mulf %123, %127 : vector<8x32xf32>
    %129 = arith.index_cast %c3_i32 : i32 to index
    %c0_47 = arith.constant 0 : index
    %c0_48 = arith.constant 0 : index
    %130 = vector.load %arg10[%129, %c0_47, %c0_48] : memref<8x8x32xf32, #tpu.memory_space<vmem>>, vector<1x8x32xf32>
    %131 = vector.shape_cast %130 : vector<1x8x32xf32> to vector<8x32xf32>
    %132 = vector.shape_cast %128 : vector<8x32xf32> to vector<1x8x32xf32>
    tpu.vector_store %arg10[%129, %c0_47, %c0_48], %132 {strides = array<i32>} : memref<8x8x32xf32, #tpu.memory_space<vmem>>, vector<1x8x32xf32>,
    %c4_i32 = arith.constant 4 : i32
    %c8_i32_49 = arith.constant 8 : i32
    %133 = arith.muli %c4_i32, %c8_i32_49 : i32
    %134 = tpu.assume_multiple %133, 8 : i32
    %135 = arith.index_cast %134 : i32 to index
    %c0_50 = arith.constant 0 : index
    %136 = vector.load %arg9[%135, %c0_50] : memref<64x96xf32, #tpu.memory_space<vmem>>, vector<8x96xf32>
    %c0_51 = arith.constant 0 : index
    %c0_52 = arith.constant 0 : index
    %137 = vector.load %arg5[%c0_51, %c0_52] : memref<32x96xf32, #tpu.memory_space<vmem>>, vector<32x96xf32>
    %cst_53 = arith.constant dense<0.000000e+00> : vector<8x96xf32>
    %138 = tpu.matmul %128, %137, %cst_53 {dimension_numbers = #tpu.dot_dimension_numbers<[1], [0], [0], [1], [0, 0, 1, 1], [], []>} : vector<8x32xf32>, vector<32x96xf32>, vector<8x96xf32> -> vector<8x96xf32>
    %139 = arith.addf %136, %138 : vector<8x96xf32>
    %140 = vector.extract_strided_slice %139 {offsets = [0, 0], sizes = [8, 32], strides = [1, 1]} : vector<8x96xf32> to vector<8x32xf32>
    %141 = arith.negf %140 : vector<8x32xf32>
    %142 = math.exp %141 : vector<8x32xf32>
    %cst_54 = arith.constant 1.000000e+00 : f32
    %143 = vector.broadcast %cst_54 : f32 to vector<8x32xf32>
    %144 = arith.addf %143, %142 : vector<8x32xf32>
    %145 = arith.divf %143, %144 : vector<8x32xf32>
    %146 = vector.extract_strided_slice %139 {offsets = [0, 32], sizes = [8, 32], strides = [1, 1]} : vector<8x96xf32> to vector<8x32xf32>
    %147 = math.tanh %146 : vector<8x32xf32>
    %148 = vector.extract_strided_slice %139 {offsets = [0, 64], sizes = [8, 32], strides = [1, 1]} : vector<8x96xf32> to vector<8x32xf32>
    %149 = arith.negf %148 : vector<8x32xf32>
    %150 = math.exp %149 : vector<8x32xf32>
    %cst_55 = arith.constant 1.000000e+00 : f32
    %151 = vector.broadcast %cst_55 : f32 to vector<8x32xf32>
    %152 = arith.addf %151, %150 : vector<8x32xf32>
    %153 = arith.divf %151, %152 : vector<8x32xf32>
    %154 = arith.mulf %128, %126 : vector<8x32xf32>
    %155 = arith.mulf %145, %147 : vector<8x32xf32>
    %156 = arith.addf %154, %155 : vector<8x32xf32>
    %157 = math.tanh %156 : vector<8x32xf32>
    %158 = arith.mulf %153, %157 : vector<8x32xf32>
    %159 = arith.index_cast %c4_i32 : i32 to index
    %c0_56 = arith.constant 0 : index
    %c0_57 = arith.constant 0 : index
    %160 = vector.load %arg10[%159, %c0_56, %c0_57] : memref<8x8x32xf32, #tpu.memory_space<vmem>>, vector<1x8x32xf32>
    %161 = vector.shape_cast %160 : vector<1x8x32xf32> to vector<8x32xf32>
    %162 = vector.shape_cast %158 : vector<8x32xf32> to vector<1x8x32xf32>
    tpu.vector_store %arg10[%159, %c0_56, %c0_57], %162 {strides = array<i32>} : memref<8x8x32xf32, #tpu.memory_space<vmem>>, vector<1x8x32xf32>,
    %c5_i32 = arith.constant 5 : i32
    %c8_i32_58 = arith.constant 8 : i32
    %163 = arith.muli %c5_i32, %c8_i32_58 : i32
    %164 = tpu.assume_multiple %163, 8 : i32
    %165 = arith.index_cast %164 : i32 to index
    %c0_59 = arith.constant 0 : index
    %166 = vector.load %arg9[%165, %c0_59] : memref<64x96xf32, #tpu.memory_space<vmem>>, vector<8x96xf32>
    %c0_60 = arith.constant 0 : index
    %c0_61 = arith.constant 0 : index
    %167 = vector.load %arg5[%c0_60, %c0_61] : memref<32x96xf32, #tpu.memory_space<vmem>>, vector<32x96xf32>
    %cst_62 = arith.constant dense<0.000000e+00> : vector<8x96xf32>
    %168 = tpu.matmul %158, %167, %cst_62 {dimension_numbers = #tpu.dot_dimension_numbers<[1], [0], [0], [1], [0, 0, 1, 1], [], []>} : vector<8x32xf32>, vector<32x96xf32>, vector<8x96xf32> -> vector<8x96xf32>
    %169 = arith.addf %166, %168 : vector<8x96xf32>
    %170 = vector.extract_strided_slice %169 {offsets = [0, 0], sizes = [8, 32], strides = [1, 1]} : vector<8x96xf32> to vector<8x32xf32>
    %171 = arith.negf %170 : vector<8x32xf32>
    %172 = math.exp %171 : vector<8x32xf32>
    %cst_63 = arith.constant 1.000000e+00 : f32
    %173 = vector.broadcast %cst_63 : f32 to vector<8x32xf32>
    %174 = arith.addf %173, %172 : vector<8x32xf32>
    %175 = arith.divf %173, %174 : vector<8x32xf32>
    %176 = vector.extract_strided_slice %169 {offsets = [0, 32], sizes = [8, 32], strides = [1, 1]} : vector<8x96xf32> to vector<8x32xf32>
    %177 = math.tanh %176 : vector<8x32xf32>
    %178 = vector.extract_strided_slice %169 {offsets = [0, 64], sizes = [8, 32], strides = [1, 1]} : vector<8x96xf32> to vector<8x32xf32>
    %179 = arith.negf %178 : vector<8x32xf32>
    %180 = math.exp %179 : vector<8x32xf32>
    %cst_64 = arith.constant 1.000000e+00 : f32
    %181 = vector.broadcast %cst_64 : f32 to vector<8x32xf32>
    %182 = arith.addf %181, %180 : vector<8x32xf32>
    %183 = arith.divf %181, %182 : vector<8x32xf32>
    %184 = arith.mulf %158, %156 : vector<8x32xf32>
    %185 = arith.mulf %175, %177 : vector<8x32xf32>
    %186 = arith.addf %184, %185 : vector<8x32xf32>
    %187 = math.tanh %186 : vector<8x32xf32>
    %188 = arith.mulf %183, %187 : vector<8x32xf32>
    %189 = arith.index_cast %c5_i32 : i32 to index
    %c0_65 = arith.constant 0 : index
    %c0_66 = arith.constant 0 : index
    %190 = vector.load %arg10[%189, %c0_65, %c0_66] : memref<8x8x32xf32, #tpu.memory_space<vmem>>, vector<1x8x32xf32>
    %191 = vector.shape_cast %190 : vector<1x8x32xf32> to vector<8x32xf32>
    %192 = vector.shape_cast %188 : vector<8x32xf32> to vector<1x8x32xf32>
    tpu.vector_store %arg10[%189, %c0_65, %c0_66], %192 {strides = array<i32>} : memref<8x8x32xf32, #tpu.memory_space<vmem>>, vector<1x8x32xf32>,
    %c6_i32 = arith.constant 6 : i32
    %c8_i32_67 = arith.constant 8 : i32
    %193 = arith.muli %c6_i32, %c8_i32_67 : i32
    %194 = tpu.assume_multiple %193, 8 : i32
    %195 = arith.index_cast %194 : i32 to index
    %c0_68 = arith.constant 0 : index
    %196 = vector.load %arg9[%195, %c0_68] : memref<64x96xf32, #tpu.memory_space<vmem>>, vector<8x96xf32>
    %c0_69 = arith.constant 0 : index
    %c0_70 = arith.constant 0 : index
    %197 = vector.load %arg5[%c0_69, %c0_70] : memref<32x96xf32, #tpu.memory_space<vmem>>, vector<32x96xf32>
    %cst_71 = arith.constant dense<0.000000e+00> : vector<8x96xf32>
    %198 = tpu.matmul %188, %197, %cst_71 {dimension_numbers = #tpu.dot_dimension_numbers<[1], [0], [0], [1], [0, 0, 1, 1], [], []>} : vector<8x32xf32>, vector<32x96xf32>, vector<8x96xf32> -> vector<8x96xf32>
    %199 = arith.addf %196, %198 : vector<8x96xf32>
    %200 = vector.extract_strided_slice %199 {offsets = [0, 0], sizes = [8, 32], strides = [1, 1]} : vector<8x96xf32> to vector<8x32xf32>
    %201 = arith.negf %200 : vector<8x32xf32>
    %202 = math.exp %201 : vector<8x32xf32>
    %cst_72 = arith.constant 1.000000e+00 : f32
    %203 = vector.broadcast %cst_72 : f32 to vector<8x32xf32>
    %204 = arith.addf %203, %202 : vector<8x32xf32>
    %205 = arith.divf %203, %204 : vector<8x32xf32>
    %206 = vector.extract_strided_slice %199 {offsets = [0, 32], sizes = [8, 32], strides = [1, 1]} : vector<8x96xf32> to vector<8x32xf32>
    %207 = math.tanh %206 : vector<8x32xf32>
    %208 = vector.extract_strided_slice %199 {offsets = [0, 64], sizes = [8, 32], strides = [1, 1]} : vector<8x96xf32> to vector<8x32xf32>
    %209 = arith.negf %208 : vector<8x32xf32>
    %210 = math.exp %209 : vector<8x32xf32>
    %cst_73 = arith.constant 1.000000e+00 : f32
    %211 = vector.broadcast %cst_73 : f32 to vector<8x32xf32>
    %212 = arith.addf %211, %210 : vector<8x32xf32>
    %213 = arith.divf %211, %212 : vector<8x32xf32>
    %214 = arith.mulf %188, %186 : vector<8x32xf32>
    %215 = arith.mulf %205, %207 : vector<8x32xf32>
    %216 = arith.addf %214, %215 : vector<8x32xf32>
    %217 = math.tanh %216 : vector<8x32xf32>
    %218 = arith.mulf %213, %217 : vector<8x32xf32>
    %219 = arith.index_cast %c6_i32 : i32 to index
    %c0_74 = arith.constant 0 : index
    %c0_75 = arith.constant 0 : index
    %220 = vector.load %arg10[%219, %c0_74, %c0_75] : memref<8x8x32xf32, #tpu.memory_space<vmem>>, vector<1x8x32xf32>
    %221 = vector.shape_cast %220 : vector<1x8x32xf32> to vector<8x32xf32>
    %222 = vector.shape_cast %218 : vector<8x32xf32> to vector<1x8x32xf32>
    tpu.vector_store %arg10[%219, %c0_74, %c0_75], %222 {strides = array<i32>} : memref<8x8x32xf32, #tpu.memory_space<vmem>>, vector<1x8x32xf32>,
    %c7_i32 = arith.constant 7 : i32
    %c8_i32_76 = arith.constant 8 : i32
    %223 = arith.muli %c7_i32, %c8_i32_76 : i32
    %224 = tpu.assume_multiple %223, 8 : i32
    %225 = arith.index_cast %224 : i32 to index
    %c0_77 = arith.constant 0 : index
    %226 = vector.load %arg9[%225, %c0_77] : memref<64x96xf32, #tpu.memory_space<vmem>>, vector<8x96xf32>
    %c0_78 = arith.constant 0 : index
    %c0_79 = arith.constant 0 : index
    %227 = vector.load %arg5[%c0_78, %c0_79] : memref<32x96xf32, #tpu.memory_space<vmem>>, vector<32x96xf32>
    %cst_80 = arith.constant dense<0.000000e+00> : vector<8x96xf32>
    %228 = tpu.matmul %218, %227, %cst_80 {dimension_numbers = #tpu.dot_dimension_numbers<[1], [0], [0], [1], [0, 0, 1, 1], [], []>} : vector<8x32xf32>, vector<32x96xf32>, vector<8x96xf32> -> vector<8x96xf32>
    %229 = arith.addf %226, %228 : vector<8x96xf32>
    %230 = vector.extract_strided_slice %229 {offsets = [0, 0], sizes = [8, 32], strides = [1, 1]} : vector<8x96xf32> to vector<8x32xf32>
    %231 = arith.negf %230 : vector<8x32xf32>
    %232 = math.exp %231 : vector<8x32xf32>
    %cst_81 = arith.constant 1.000000e+00 : f32
    %233 = vector.broadcast %cst_81 : f32 to vector<8x32xf32>
    %234 = arith.addf %233, %232 : vector<8x32xf32>
    %235 = arith.divf %233, %234 : vector<8x32xf32>
    %236 = vector.extract_strided_slice %229 {offsets = [0, 32], sizes = [8, 32], strides = [1, 1]} : vector<8x96xf32> to vector<8x32xf32>
    %237 = math.tanh %236 : vector<8x32xf32>
    %238 = vector.extract_strided_slice %229 {offsets = [0, 64], sizes = [8, 32], strides = [1, 1]} : vector<8x96xf32> to vector<8x32xf32>
    %239 = arith.negf %238 : vector<8x32xf32>
    %240 = math.exp %239 : vector<8x32xf32>
    %cst_82 = arith.constant 1.000000e+00 : f32
    %241 = vector.broadcast %cst_82 : f32 to vector<8x32xf32>
    %242 = arith.addf %241, %240 : vector<8x32xf32>
    %243 = arith.divf %241, %242 : vector<8x32xf32>
    %244 = arith.mulf %218, %216 : vector<8x32xf32>
    %245 = arith.mulf %235, %237 : vector<8x32xf32>
    %246 = arith.addf %244, %245 : vector<8x32xf32>
    %247 = math.tanh %246 : vector<8x32xf32>
    %248 = arith.mulf %243, %247 : vector<8x32xf32>
    %249 = arith.index_cast %c7_i32 : i32 to index
    %c0_83 = arith.constant 0 : index
    %c0_84 = arith.constant 0 : index
    %250 = vector.load %arg10[%249, %c0_83, %c0_84] : memref<8x8x32xf32, #tpu.memory_space<vmem>>, vector<1x8x32xf32>
    %251 = vector.shape_cast %250 : vector<1x8x32xf32> to vector<8x32xf32>
    %252 = vector.shape_cast %248 : vector<8x32xf32> to vector<1x8x32xf32>
    tpu.vector_store %arg10[%249, %c0_83, %c0_84], %252 {strides = array<i32>} : memref<8x8x32xf32, #tpu.memory_space<vmem>>, vector<1x8x32xf32>,
    %c8_i32_85 = arith.constant 8 : i32
    %c0_86 = arith.constant 0 : index
    %c0_87 = arith.constant 0 : index
    %253 = vector.load %arg7[%c0_86, %c0_87] : memref<8x32xf32, #tpu.memory_space<vmem>>, vector<8x32xf32>
    tpu.vector_store %arg7[%c0_86, %c0_87], %248 {strides = array<i32>} : memref<8x32xf32, #tpu.memory_space<vmem>>, vector<8x32xf32>,
    %c0_88 = arith.constant 0 : index
    %c0_89 = arith.constant 0 : index
    %254 = vector.load %arg8[%c0_88, %c0_89] : memref<8x32xf32, #tpu.memory_space<vmem>>, vector<8x32xf32>
    tpu.vector_store %arg8[%c0_88, %c0_89], %246 {strides = array<i32>} : memref<8x32xf32, #tpu.memory_space<vmem>>, vector<8x32xf32>,
    %c0_90 = arith.constant 0 : index
    %c0_91 = arith.constant 0 : index
    %c0_92 = arith.constant 0 : index
    %255 = vector.load %arg10[%c0_90, %c0_91, %c0_92] : memref<8x8x32xf32, #tpu.memory_space<vmem>>, vector<1x8x32xf32>
    %256 = vector.shape_cast %255 : vector<1x8x32xf32> to vector<8x32xf32>
    %c0_93 = arith.constant 0 : index
    %c0_94 = arith.constant 0 : index
    %c0_95 = arith.constant 0 : index
    %257 = vector.load %arg6[%c0_93, %c0_94, %c0_95] : memref<8x8x32xf32, #tpu.memory_space<vmem>>, vector<8x1x32xf32>
    %258 = vector.shape_cast %257 : vector<8x1x32xf32> to vector<8x32xf32>
    %259 = vector.shape_cast %256 : vector<8x32xf32> to vector<8x1x32xf32>
    tpu.vector_store %arg6[%c0_93, %c0_94, %c0_95], %259 {strides = array<i32>} : memref<8x8x32xf32, #tpu.memory_space<vmem>>, vector<8x1x32xf32>,
    %c1 = arith.constant 1 : index
    %c0_96 = arith.constant 0 : index
    %c0_97 = arith.constant 0 : index
    %260 = vector.load %arg10[%c1, %c0_96, %c0_97] : memref<8x8x32xf32, #tpu.memory_space<vmem>>, vector<1x8x32xf32>
    %261 = vector.shape_cast %260 : vector<1x8x32xf32> to vector<8x32xf32>
    %c0_98 = arith.constant 0 : index
    %c1_99 = arith.constant 1 : index
    %c0_100 = arith.constant 0 : index
    %262 = vector.load %arg6[%c0_98, %c1_99, %c0_100] : memref<8x8x32xf32, #tpu.memory_space<vmem>>, vector<8x1x32xf32>
    %263 = vector.shape_cast %262 : vector<8x1x32xf32> to vector<8x32xf32>
    %264 = vector.shape_cast %261 : vector<8x32xf32> to vector<8x1x32xf32>
    tpu.vector_store %arg6[%c0_98, %c1_99, %c0_100], %264 {strides = array<i32>} : memref<8x8x32xf32, #tpu.memory_space<vmem>>, vector<8x1x32xf32>,
    %c2 = arith.constant 2 : index
    %c0_101 = arith.constant 0 : index
    %c0_102 = arith.constant 0 : index
    %265 = vector.load %arg10[%c2, %c0_101, %c0_102] : memref<8x8x32xf32, #tpu.memory_space<vmem>>, vector<1x8x32xf32>
    %266 = vector.shape_cast %265 : vector<1x8x32xf32> to vector<8x32xf32>
    %c0_103 = arith.constant 0 : index
    %c2_104 = arith.constant 2 : index
    %c0_105 = arith.constant 0 : index
    %267 = vector.load %arg6[%c0_103, %c2_104, %c0_105] : memref<8x8x32xf32, #tpu.memory_space<vmem>>, vector<8x1x32xf32>
    %268 = vector.shape_cast %267 : vector<8x1x32xf32> to vector<8x32xf32>
    %269 = vector.shape_cast %266 : vector<8x32xf32> to vector<8x1x32xf32>
    tpu.vector_store %arg6[%c0_103, %c2_104, %c0_105], %269 {strides = array<i32>} : memref<8x8x32xf32, #tpu.memory_space<vmem>>, vector<8x1x32xf32>,
    %c3 = arith.constant 3 : index
    %c0_106 = arith.constant 0 : index
    %c0_107 = arith.constant 0 : index
    %270 = vector.load %arg10[%c3, %c0_106, %c0_107] : memref<8x8x32xf32, #tpu.memory_space<vmem>>, vector<1x8x32xf32>
    %271 = vector.shape_cast %270 : vector<1x8x32xf32> to vector<8x32xf32>
    %c0_108 = arith.constant 0 : index
    %c3_109 = arith.constant 3 : index
    %c0_110 = arith.constant 0 : index
    %272 = vector.load %arg6[%c0_108, %c3_109, %c0_110] : memref<8x8x32xf32, #tpu.memory_space<vmem>>, vector<8x1x32xf32>
    %273 = vector.shape_cast %272 : vector<8x1x32xf32> to vector<8x32xf32>
    %274 = vector.shape_cast %271 : vector<8x32xf32> to vector<8x1x32xf32>
    tpu.vector_store %arg6[%c0_108, %c3_109, %c0_110], %274 {strides = array<i32>} : memref<8x8x32xf32, #tpu.memory_space<vmem>>, vector<8x1x32xf32>,
    %c4 = arith.constant 4 : index
    %c0_111 = arith.constant 0 : index
    %c0_112 = arith.constant 0 : index
    %275 = vector.load %arg10[%c4, %c0_111, %c0_112] : memref<8x8x32xf32, #tpu.memory_space<vmem>>, vector<1x8x32xf32>
    %276 = vector.shape_cast %275 : vector<1x8x32xf32> to vector<8x32xf32>
    %c0_113 = arith.constant 0 : index
    %c4_114 = arith.constant 4 : index
    %c0_115 = arith.constant 0 : index
    %277 = vector.load %arg6[%c0_113, %c4_114, %c0_115] : memref<8x8x32xf32, #tpu.memory_space<vmem>>, vector<8x1x32xf32>
    %278 = vector.shape_cast %277 : vector<8x1x32xf32> to vector<8x32xf32>
    %279 = vector.shape_cast %276 : vector<8x32xf32> to vector<8x1x32xf32>
    tpu.vector_store %arg6[%c0_113, %c4_114, %c0_115], %279 {strides = array<i32>} : memref<8x8x32xf32, #tpu.memory_space<vmem>>, vector<8x1x32xf32>,
    %c5 = arith.constant 5 : index
    %c0_116 = arith.constant 0 : index
    %c0_117 = arith.constant 0 : index
    %280 = vector.load %arg10[%c5, %c0_116, %c0_117] : memref<8x8x32xf32, #tpu.memory_space<vmem>>, vector<1x8x32xf32>
    %281 = vector.shape_cast %280 : vector<1x8x32xf32> to vector<8x32xf32>
    %c0_118 = arith.constant 0 : index
    %c5_119 = arith.constant 5 : index
    %c0_120 = arith.constant 0 : index
    %282 = vector.load %arg6[%c0_118, %c5_119, %c0_120] : memref<8x8x32xf32, #tpu.memory_space<vmem>>, vector<8x1x32xf32>
    %283 = vector.shape_cast %282 : vector<8x1x32xf32> to vector<8x32xf32>
    %284 = vector.shape_cast %281 : vector<8x32xf32> to vector<8x1x32xf32>
    tpu.vector_store %arg6[%c0_118, %c5_119, %c0_120], %284 {strides = array<i32>} : memref<8x8x32xf32, #tpu.memory_space<vmem>>, vector<8x1x32xf32>,
    %c6 = arith.constant 6 : index
    %c0_121 = arith.constant 0 : index
    %c0_122 = arith.constant 0 : index
    %285 = vector.load %arg10[%c6, %c0_121, %c0_122] : memref<8x8x32xf32, #tpu.memory_space<vmem>>, vector<1x8x32xf32>
    %286 = vector.shape_cast %285 : vector<1x8x32xf32> to vector<8x32xf32>
    %c0_123 = arith.constant 0 : index
    %c6_124 = arith.constant 6 : index
    %c0_125 = arith.constant 0 : index
    %287 = vector.load %arg6[%c0_123, %c6_124, %c0_125] : memref<8x8x32xf32, #tpu.memory_space<vmem>>, vector<8x1x32xf32>
    %288 = vector.shape_cast %287 : vector<8x1x32xf32> to vector<8x32xf32>
    %289 = vector.shape_cast %286 : vector<8x32xf32> to vector<8x1x32xf32>
    tpu.vector_store %arg6[%c0_123, %c6_124, %c0_125], %289 {strides = array<i32>} : memref<8x8x32xf32, #tpu.memory_space<vmem>>, vector<8x1x32xf32>,
    %c7 = arith.constant 7 : index
    %c0_126 = arith.constant 0 : index
    %c0_127 = arith.constant 0 : index
    %290 = vector.load %arg10[%c7, %c0_126, %c0_127] : memref<8x8x32xf32, #tpu.memory_space<vmem>>, vector<1x8x32xf32>
    %291 = vector.shape_cast %290 : vector<1x8x32xf32> to vector<8x32xf32>
    %c0_128 = arith.constant 0 : index
    %c7_129 = arith.constant 7 : index
    %c0_130 = arith.constant 0 : index
    %292 = vector.load %arg6[%c0_128, %c7_129, %c0_130] : memref<8x8x32xf32, #tpu.memory_space<vmem>>, vector<8x1x32xf32>
    %293 = vector.shape_cast %292 : vector<8x1x32xf32> to vector<8x32xf32>
    %294 = vector.shape_cast %291 : vector<8x32xf32> to vector<8x1x32xf32>
    tpu.vector_store %arg6[%c0_128, %c7_129, %c0_130], %294 {strides = array<i32>} : memref<8x8x32xf32, #tpu.memory_space<vmem>>, vector<8x1x32xf32>,
    return
  }
  func.func @transform_0(%arg0: i32, %arg1: i32) -> (i32, i32, i32) {
    %c0_i32 = arith.constant 0 : i32
    %c0_i32_0 = arith.constant 0 : i32
    return %arg0, %arg1, %c0_i32 : i32, i32, i32
  }
  func.func @transform_1(%arg0: i32, %arg1: i32) -> (i32, i32) {
    %c0_i32 = arith.constant 0 : i32
    %c0_i32_0 = arith.constant 0 : i32
    %c0_i32_1 = arith.constant 0 : i32
    return %c0_i32, %c0_i32_0 : i32, i32
  }
  func.func @transform_2(%arg0: i32, %arg1: i32) -> (i32, i32) {
    %c0_i32 = arith.constant 0 : i32
    %c0_i32_0 = arith.constant 0 : i32
    %c0_i32_1 = arith.constant 0 : i32
    return %c0_i32, %c0_i32_0 : i32, i32
  }
  func.func @transform_3(%arg0: i32, %arg1: i32) -> (i32, i32) {
    %c0_i32 = arith.constant 0 : i32
    %c0_i32_0 = arith.constant 0 : i32
    %c0_i32_1 = arith.constant 0 : i32
    return %c0_i32, %c0_i32_0 : i32, i32
  }
  func.func @transform_4(%arg0: i32, %arg1: i32) -> (i32, i32, i32) {
    %c0_i32 = arith.constant 0 : i32
    %c0_i32_0 = arith.constant 0 : i32
    return %arg0, %arg1, %c0_i32 : i32, i32, i32
  }
}

</mosaic_0001>

<llo_original>
// kernel: tpu_custom_call.1
$region0: #{tpu_custom_call.1}
  #allocation0 [shape = 'u32[]', space=smem, size = 0x4, offset = 0x4, fixed_abs, tag = 'smem constant byte address 0x4 - core index']
  #allocation1 [shape = 'u32[144,128]{1,0:T(1,128)}', space=vmem, size = 0x12000, scoped, tag = 'internal scratch']
  #allocation2 [shape = 'f32[8,32]{1,0:T(8,128)}', space=vmem, size = 0x1000, scoped, tag = 'scratch operand']
  #allocation3 [shape = 'f32[8,32]{1,0:T(8,128)}', space=vmem, size = 0x1000, scoped, tag = 'scratch operand']
  #allocation4 [shape = 'f32[64,96]{1,0:T(8,128)}', space=vmem, size = 0x8000, scoped, tag = 'scratch operand']
  #allocation5 [shape = 'f32[8,8,32]{2,1,0:T(8,128)}', space=vmem, size = 0x8000, scoped, tag = 'scratch operand']
  %s0 = inlined_call_operand.vmem [shape: f32[1,128,16], index: 0, kind: input, shape index: {}]
  %s1 = inlined_call_operand.vmem [shape: f32[16,96], index: 1, kind: input, shape index: {}]
  %s2 = inlined_call_operand.vmem [shape: f32[1,96], index: 2, kind: input, shape index: {}]
  %s3 = inlined_call_operand.vmem [shape: f32[32,96], index: 3, kind: input, shape index: {}]
  %s4 = inlined_call_operand.hbm [shape: f32[8,16,32], index: 4, kind: output, shape index: {}]
  %s5 = sld [smem:[#allocation0]]
  $region53: #{tpu_custom_call.1} parent=0
    _
  %s7 = ssub.s32 1, %s5
  %s8 = scalar_select 0, %s7, %s5
  $region1: #{tpu_custom_call.1} parent=0
    #allocation6 [shape = 'u8[65536]{0}', space=vmem, size = 0x10000, scoped, tag = 'output window, operand 0']
    #allocation7 [shape = 's32[2]{0}', space=sflag, size = 0x8, scoped, tag = 'scoped memory for tpu_custom_call.1']
    %9 = vsyncpa [#allocation7], 0
    %s10 = scalar_lea.sflag [#allocation7], 1
    %11 = vsyncpa %s10, 0
    loop: start=0, step=1, limit=4
    $region2: #{tpu_custom_call.1} parent=1 // loop_pre_header
      _
    $region3: #{tpu_custom_call.1} parent=1 // loop_header
      %s13 = sphi 0, %s17
      %p14 = scmp.ge.s32.totalorder %s13, 4
      %s20 = sphi 0, %s32
      %s21 = sphi 0, %s28
      %s22 = sphi 0, %s20
      %s23 = sphi 0, %s21
      %s24 = sphi 0, %s22
      %s25 = sphi 0, %s23
      %s37 = sphi 0, %s39
      %s40 = sphi 0, %s37
      %s41 = sphi 0, %s40
      %s57 = sphi 0, %s41
      %s61 = sphi 0, %s61
      %s63 = sphi 0, %s61
      %s64 = sphi 0, %s63
      %s78 = sphi 0, %s64
      %s82 = sphi 0, %s82
      %s84 = sphi 0, %s82
      %s85 = sphi 0, %s84
      %s99 = sphi 0, %s85
      %s103 = sphi 0, %s103
      %s105 = sphi 0, %s103
      %s106 = sphi 0, %s105
      %s120 = sphi 0, %s106
      %s128 = sphi 0, %s130
      %s131 = sphi 0, %s128
      %s132 = sphi 0, %s131
      %s148 = sphi 0, %s132
    $region4: #{tpu_custom_call.1} parent=1 // loop_header_branch
      %16 = sbr.rel (%p14) target = $region8
    $region5: #{tpu_custom_call.1} parent=1 // loop_body
      %s18 = ssub.s32 %s13, 1
      %s19 = ssub.s32 %s13, 2
      %s26 = sadd.s32 1, %s21
      %p27 = scmp.ge.s32.totalorder %s26, 2
      %s28 = scalar_select %p27, 0, %s26
      %s29 = sadd.s32 1, %s20
      %s30 = scalar_select %p27, %s29, %s20
      %p31 = scmp.ge.s32.totalorder %s30, 1
      %s32 = scalar_select %p31, 0, %s30
      %s33 = ssub.s32 %s20, %s32
      %s34 = ssub.s32 %s21, %s28
      %s35 = sor.u32 %s33, %s34
      %p36 = scmp.eq.s32.totalorder %s35, 0
      %s38 = sadd.s32 %s37, 1
      %s39 = scalar_select %p36, %s37, %s38
      %p42 = pneg %p36
      %p43 = scmp.eq.s32.totalorder %s13, 1
      %p44 = por %p42, %p43
      %p45 = scmp.ne.s32.totalorder %s37, %s40
      %p46 = scmp.eq.s32.totalorder %s13, 0
      %p47 = por %p45, %p46
      %p48 = scmp.ne.s32.totalorder %s37, %s40
      %p49 = scmp.eq.s32.totalorder %s18, 1
      %p50 = por %p48, %p49
      %p51 = scmp.ne.s32.totalorder %s40, %s41
      %p52 = scmp.eq.s32.totalorder %s18, 0
      %p53 = por %p51, %p52
      %p54 = scmp.ne.s32.totalorder %s40, %s41
      %p55 = scmp.eq.s32.totalorder %s19, 1
      %p56 = por %p54, %p55
      %p58 = scmp.ne.s32.totalorder %s41, %s57
      %p59 = scmp.eq.s32.totalorder %s19, 0
      %p60 = por %p58, %p59
      %s62 = sadd.s32 %s61, 1
      %p65 = scmp.eq.s32.totalorder %s13, 1
      %p66 = scmp.ne.s32.totalorder %s61, %s63
      %p67 = scmp.eq.s32.totalorder %s13, 0
      %p68 = por %p66, %p67
      %p69 = scmp.ne.s32.totalorder %s61, %s63
      %p70 = scmp.eq.s32.totalorder %s18, 1
      %p71 = por %p69, %p70
      %p72 = scmp.ne.s32.totalorder %s63, %s64
      %p73 = scmp.eq.s32.totalorder %s18, 0
      %p74 = por %p72, %p73
      %p75 = scmp.ne.s32.totalorder %s63, %s64
      %p76 = scmp.eq.s32.totalorder %s19, 1
      %p77 = por %p75, %p76
      %p79 = scmp.ne.s32.totalorder %s64, %s78
      %p80 = scmp.eq.s32.totalorder %s19, 0
      %p81 = por %p79, %p80
      %s83 = sadd.s32 %s82, 1
      %p86 = scmp.eq.s32.totalorder %s13, 1
      %p87 = scmp.ne.s32.totalorder %s82, %s84
      %p88 = scmp.eq.s32.totalorder %s13, 0
      %p89 = por %p87, %p88
      %p90 = scmp.ne.s32.totalorder %s82, %s84
      %p91 = scmp.eq.s32.totalorder %s18, 1
      %p92 = por %p90, %p91
      %p93 = scmp.ne.s32.totalorder %s84, %s85
      %p94 = scmp.eq.s32.totalorder %s18, 0
      %p95 = por %p93, %p94
      %p96 = scmp.ne.s32.totalorder %s84, %s85
      %p97 = scmp.eq.s32.totalorder %s19, 1
      %p98 = por %p96, %p97
      %p100 = scmp.ne.s32.totalorder %s85, %s99
      %p101 = scmp.eq.s32.totalorder %s19, 0
      %p102 = por %p100, %p101
      %s104 = sadd.s32 %s103, 1
      %p107 = scmp.eq.s32.totalorder %s13, 1
      %p108 = scmp.ne.s32.totalorder %s103, %s105
      %p109 = scmp.eq.s32.totalorder %s13, 0
      %p110 = por %p108, %p109
      %p111 = scmp.ne.s32.totalorder %s103, %s105
      %p112 = scmp.eq.s32.totalorder %s18, 1
      %p113 = por %p111, %p112
      %p114 = scmp.ne.s32.totalorder %s105, %s106
      %p115 = scmp.eq.s32.totalorder %s18, 0
      %p116 = por %p114, %p115
      %p117 = scmp.ne.s32.totalorder %s105, %s106
      %p118 = scmp.eq.s32.totalorder %s19, 1
      %p119 = por %p117, %p118
      %p121 = scmp.ne.s32.totalorder %s106, %s120
      %p122 = scmp.eq.s32.totalorder %s19, 0
      %p123 = por %p121, %p122
      %s124 = ssub.s32 %s20, %s32
      %s125 = ssub.s32 %s21, %s28
      %s126 = sor.u32 %s124, %s125
      %p127 = scmp.eq.s32.totalorder %s126, 0
      %s129 = sadd.s32 %s128, 1
      %s130 = scalar_select %p127, %s128, %s129
      %p133 = pneg %p127
      %p134 = scmp.eq.s32.totalorder %s13, 1
      %p135 = por %p133, %p134
      %p136 = scmp.ne.s32.totalorder %s128, %s131
      %p137 = scmp.eq.s32.totalorder %s13, 0
      %p138 = por %p136, %p137
      %p139 = scmp.ne.s32.totalorder %s128, %s131
      %p140 = scmp.eq.s32.totalorder %s18, 1
      %p141 = por %p139, %p140
      %p142 = scmp.ne.s32.totalorder %s131, %s132
      %p143 = scmp.eq.s32.totalorder %s18, 0
      %p144 = por %p142, %p143
      %p145 = scmp.ne.s32.totalorder %s131, %s132
      %p146 = scmp.eq.s32.totalorder %s19, 1
      %p147 = por %p145, %p146
      %p149 = scmp.ne.s32.totalorder %s132, %s148
      %p150 = scmp.eq.s32.totalorder %s19, 0
      %p151 = por %p149, %p150
      %p152 = scmp.le.s32.totalorder 1, %s13
      %p153 = scmp.lt.s32.totalorder %s13, 3
      %p154 = pnand %p152, %p153
      %p155 = pneg %p154
      // Predicated region
      $region9: #{tpu_custom_call.1} parent=5 // pred_check
        _
      $region10: #{tpu_custom_call.1} parent=5 // pred_check_branch
        %157 = sbr.rel (%p154) target = $region12
      $region11: #{tpu_custom_call.1} parent=5 // pred_region
        %s158 = ssub.s32 %s13, 1
        // Predicated region
        $region13: #{tpu_custom_call.1} parent=11 // pred_check
          %p159 = pneg %p74
        $region14: #{tpu_custom_call.1} parent=11 // pred_check_branch
          %161 = sbr.rel (%p159) target = $region16
        $region15: #{tpu_custom_call.1} parent=11 // pred_region
          _
        $region16: #{tpu_custom_call.1} parent=11 // pred_fallthru
          _
        // Predicated region
        $region17: #{tpu_custom_call.1} parent=11 // pred_check
          %p162 = pneg %p95
        $region18: #{tpu_custom_call.1} parent=11 // pred_check_branch
          %164 = sbr.rel (%p162) target = $region20
        $region19: #{tpu_custom_call.1} parent=11 // pred_region
          _
        $region20: #{tpu_custom_call.1} parent=11 // pred_fallthru
          _
        // Predicated region
        $region21: #{tpu_custom_call.1} parent=11 // pred_check
          %p165 = pneg %p116
        $region22: #{tpu_custom_call.1} parent=11 // pred_check_branch
          %167 = sbr.rel (%p165) target = $region24
        $region23: #{tpu_custom_call.1} parent=11 // pred_region
          _
        $region24: #{tpu_custom_call.1} parent=11 // pred_fallthru
          _
      $region12: #{tpu_custom_call.1} parent=5 // pred_fallthru
        _
      %p168 = scmp.lt.s32.totalorder %s13, 2
      // Predicated region
      $region25: #{tpu_custom_call.1} parent=5 // pred_check
        %p169 = pneg %p168
      $region26: #{tpu_custom_call.1} parent=5 // pred_check_branch
        %171 = sbr.rel (%p169) target = $region28
      $region27: #{tpu_custom_call.1} parent=5 // pred_region
        // Predicated region
        $region29: #{tpu_custom_call.1} parent=27 // pred_check
          %p172 = pneg %p47
        $region30: #{tpu_custom_call.1} parent=27 // pred_check_branch
          %174 = sbr.rel (%p172) target = $region32
        $region31: #{tpu_custom_call.1} parent=27 // pred_region
          %s175 = smul.u32 8, %s21
          %p176 = scmp.lt.s32.totalorder %s20, 0
          %s177 = scalar_select %p176, %s20, 0
          %p178 = scmp.lt.s32.totalorder %s175, 15
          %s179 = scalar_select %p178, %s175, 15
          %s180 = smul.addr %s177, 16
          %s181 = sadd.s32 %s179, %s180
          %s182 = smul.addr %s181, 8
          %s183 = scalar_lea.vmem %s0, %s182
          %s184 = smul.u32 8, %s21
        $region32: #{tpu_custom_call.1} parent=27 // pred_fallthru
          _
      $region28: #{tpu_custom_call.1} parent=5 // pred_fallthru
        _
      %p185 = scmp.le.s32.totalorder 1, %s13
      %p186 = scmp.lt.s32.totalorder %s13, 3
      %p187 = pnand %p185, %p186
      %p188 = pneg %p187
      // Predicated region
      $region33: #{tpu_custom_call.1} parent=5 // pred_check
        _
      $region34: #{tpu_custom_call.1} parent=5 // pred_check_branch
        %190 = sbr.rel (%p187) target = $region36
      $region35: #{tpu_custom_call.1} parent=5 // pred_region
        %s191 = ssub.s32 %s13, 1
        %s192 = smul.u32 8, %s23
        %p193 = scmp.lt.s32.totalorder %s22, 0
        %s194 = scalar_select %p193, %s22, 0
        %p195 = scmp.lt.s32.totalorder %s192, 15
        %s196 = scalar_select %p195, %s192, 15
        %s197 = smul.addr %s194, 16
        %s198 = sadd.s32 %s196, %s197
        %s199 = smul.addr %s198, 8
        %s200 = scalar_lea.vmem %s0, %s199
        %p201 = pneg %p53
        %p202 = pneg %p50
        %p203 = pneg %p74
        %p204 = pneg %p71
        %p205 = pneg %p95
        %p206 = pneg %p92
        %p207 = pneg %p116
        %p208 = pneg %p113
        %p209 = pneg %p144
        %p210 = pneg %p141
        %s211 = sand.u32 %s131, 1
        %s212 = scalar_lea.sflag [#allocation7], %s211
        %s213 = sand.u32 %s131, 1
        %s214 = smul.addr %s213, 64
        %s215 = scalar_lea.vmem [#allocation6], %s214
        %s216 = smul.u32 8, %s23
        %p217 = scmp.lt.s32.totalorder %s22, 0
        %s218 = scalar_select %p217, %s22, 0
        %p219 = scmp.lt.s32.totalorder %s216, 15
        %s220 = scalar_select %p219, %s216, 15
        %s221 = smul.addr %s218, 16
        %s222 = sadd.s32 %s220, %s221
        %s223 = smul.addr %s222, 8
        %s224 = scalar_lea.vmem %s0, %s223
        %s225 = smul.u32 8, %s23
        %s226 = smul.u32 8, %s22
        %p227 = scmp.eq.s32.totalorder %s23, 0
        // Predicated region
        $region37: #{tpu_custom_call.1} parent=35 // pred_check
          %p228 = pneg %p227
        $region38: #{tpu_custom_call.1} parent=35 // pred_check_branch
          %230 = sbr.rel (%p228) target = $region40
        $region39: #{tpu_custom_call.1} parent=35 // pred_region
          %vm231 = vcmask 261120
          %232 = vst.msk [vmem:[#allocation2] sm:$0xff] %vm231, 0.0
          %233 = vst.msk [vmem:[#allocation3] sm:$0xff] %vm231, 0.0
        $region40: #{tpu_custom_call.1} parent=35 // pred_fallthru
          _
        %v234 = vld [vmem:[%s224] sm:$0xff]
        %v235 = vld [vmem:[%s224 + $0x8] sm:$0xff]
        %v236 = vld [vmem:[%s224 + $0x10] sm:$0xff]
        %v237 = vld [vmem:[%s224 + $0x18] sm:$0xff]
        %v238 = vld [vmem:[%s224 + $0x20] sm:$0xff]
        %v239 = vld [vmem:[%s224 + $0x28] sm:$0xff]
        %v240 = vld [vmem:[%s224 + $0x30] sm:$0xff]
        %v241 = vld [vmem:[%s224 + $0x38] sm:$0xff]
        %v242 = vld [vmem:[%s1] sm:$0xff]
        %v243 = vld [vmem:[%s1 + $0x8] sm:$0xff]
        %v244 = vld [vmem:[%s2] sm:$0x1]
        %v246 = vlaneseq
        %v247 = vshrl.u32 %v246, 7
        %v248 = vsub.s32 0, %v247
        %v249 = vrot.slane %v244, %v248
        %vm251 = vcmask 130048
        %v253 = vsel %vm251, %v234, 0
        %v256 = vsel %vm251, %v235, 0
        %v259 = vsel %vm251, %v236, 0
        %v262 = vsel %vm251, %v237, 0
        %v265 = vsel %vm251, %v238, 0
        %v268 = vsel %vm251, %v239, 0
        %v271 = vsel %vm251, %v240, 0
        %v274 = vsel %vm251, %v241, 0
        %276 = vmatprep.subr.mxu0 0.0
        %277 = vmatpush1.msra.mxu0 0.0
        %278 = vmatprep.subr.mxu0 0.0
        %279 = vmatpush1.msra.mxu0 0.0
        %280 = vmatprep.subr.mxu0 0.0
        %281 = vmatpush1.msra.mxu0 0.0
        %282 = vmatprep.subr.mxu0 0.0
        %283 = vmatpush1.msra.mxu0 0.0
        %284 = vmatprep.subr.mxu0 0.0
        %285 = vmatpush1.msra.mxu0 0.0
        %286 = vmatprep.subr.mxu0 0.0
        %287 = vmatpush1.msra.mxu0 0.0
        %288 = vmatprep.subr.mxu0 0.0
        %289 = vmatpush1.msra.mxu0 0.0
        %290 = vmatprep.subr.mxu0 0.0
        %291 = vmatpush1.msra.mxu0 0.0
        %292 = vmatprep.subr.mxu0 0.0
        %293 = vmatpush1.msra.mxu0 0.0
        %294 = vmatprep.subr.mxu0 0.0
        %295 = vmatpush1.msra.mxu0 0.0
        %296 = vmatprep.subr.mxu0 0.0
        %297 = vmatpush1.msra.mxu0 0.0
        %298 = vmatprep.subr.mxu0 0.0
        %299 = vmatpush1.msra.mxu0 0.0
        %300 = vmatprep.subr.mxu0 0.0
        %301 = vmatpush1.msra.mxu0 0.0
        %302 = vmatprep.subr.mxu0 0.0
        %303 = vmatpush1.msra.mxu0 0.0
        %304 = vmatprep.subr.mxu0 0.0
        %305 = vmatpush1.msra.mxu0 %v243
        %306 = vmatprep.subr.mxu0 0.0
        %307 = vmatpush1.msra.mxu0 %v242
        %308 = vmatprep.subr.mxu0 0.0
        %309 = vmatpush2.msra.mxu0 0.0
        %310 = vmatprep.subr.mxu0 0.0
        %311 = vmatpush2.msra.mxu0 0.0
        %312 = vmatprep.subr.mxu0 0.0
        %313 = vmatpush2.msra.mxu0 0.0
        %314 = vmatprep.subr.mxu0 0.0
        %315 = vmatpush2.msra.mxu0 0.0
        %316 = vmatprep.subr.mxu0 0.0
        %317 = vmatpush2.msra.mxu0 0.0
        %318 = vmatprep.subr.mxu0 0.0
        %319 = vmatpush2.msra.mxu0 0.0
        %320 = vmatprep.subr.mxu0 0.0
        %321 = vmatpush2.msra.mxu0 0.0
        %322 = vmatprep.subr.mxu0 0.0
        %323 = vmatpush2.msra.mxu0 0.0
        %324 = vmatprep.subr.mxu0 0.0
        %325 = vmatpush2.msra.mxu0 0.0
        %326 = vmatprep.subr.mxu0 0.0
        %327 = vmatpush2.msra.mxu0 0.0
        %328 = vmatprep.subr.mxu0 0.0
        %329 = vmatpush2.msra.mxu0 0.0
        %330 = vmatprep.subr.mxu0 0.0
        %331 = vmatpush2.msra.mxu0 0.0
        %332 = vmatprep.subr.mxu0 0.0
        %333 = vmatpush2.msra.mxu0 0.0
        %334 = vmatprep.subr.mxu0 0.0
        %335 = vmatpush2.msra.mxu0 0.0
        %336 = vmatprep.subr.mxu0 0.0
        %337 = vmatpush2.msra.mxu0 0.0
        %338 = vmatprep.subr.mxu0 0.0
        %339 = vmatpush2.msra.mxu0 0.0
        %340 = vmatprep.mubr.f32.mxu0 0.0
        %341 = vmatmul.mubr.f32.gmra.mxu0 %v253
        %v342 = vpop.f32.mrf.mxu0
        %v343 = vadd.f32 %v249, %v342
        %v344 = vpop.f32.mrf.mxu0
        %345 = vmatprep.mubr.f32.mxu0 0.0
        %346 = vmatmul.mubr.f32.gmra.mxu0 %v256
        %v347 = vpop.f32.mrf.mxu0
        %v348 = vadd.f32 %v249, %v347
        %v349 = vpop.f32.mrf.mxu0
        %350 = vmatprep.mubr.f32.mxu0 0.0
        %351 = vmatmul.mubr.f32.gmra.mxu0 %v259
        %v352 = vpop.f32.mrf.mxu0
        %v353 = vadd.f32 %v249, %v352
        %v354 = vpop.f32.mrf.mxu0
        %355 = vmatprep.mubr.f32.mxu0 0.0
        %356 = vmatmul.mubr.f32.gmra.mxu0 %v262
        %v357 = vpop.f32.mrf.mxu0
        %v358 = vadd.f32 %v249, %v357
        %v359 = vpop.f32.mrf.mxu0
        %360 = vmatprep.mubr.f32.mxu0 0.0
        %361 = vmatmul.mubr.f32.gmra.mxu0 %v265
        %v362 = vpop.f32.mrf.mxu0
        %v363 = vadd.f32 %v249, %v362
        %v364 = vpop.f32.mrf.mxu0
        %365 = vmatprep.mubr.f32.mxu0 0.0
        %366 = vmatmul.mubr.f32.gmra.mxu0 %v268
        %v367 = vpop.f32.mrf.mxu0
        %v368 = vadd.f32 %v249, %v367
        %v369 = vpop.f32.mrf.mxu0
        %370 = vmatprep.mubr.f32.mxu0 0.0
        %371 = vmatmul.mubr.f32.gmra.mxu0 %v271
        %v372 = vpop.f32.mrf.mxu0
        %v373 = vadd.f32 %v249, %v372
        %v374 = vpop.f32.mrf.mxu0
        %375 = vmatprep.mubr.f32.mxu0 0.0
        %376 = vmatmul.mubr.f32.gmra.mxu0 %v274
        %v377 = vpop.f32.mrf.mxu0
        %v378 = vadd.f32 %v249, %v377
        %v379 = vpop.f32.mrf.mxu0
        %380 = vdwg.mxu0
        %vm381 = vcmask 785408
        %382 = vst.msk [vmem:[#allocation4] sm:$0xff] %vm381, %v343
        %383 = vst.msk [vmem:[#allocation4 + $0x8] sm:$0xff] %vm381, %v348
        %384 = vst.msk [vmem:[#allocation4 + $0x10] sm:$0xff] %vm381, %v353
        %385 = vst.msk [vmem:[#allocation4 + $0x18] sm:$0xff] %vm381, %v358
        %386 = vst.msk [vmem:[#allocation4 + $0x20] sm:$0xff] %vm381, %v363
        %387 = vst.msk [vmem:[#allocation4 + $0x28] sm:$0xff] %vm381, %v368
        %388 = vst.msk [vmem:[#allocation4 + $0x30] sm:$0xff] %vm381, %v373
        %389 = vst.msk [vmem:[#allocation4 + $0x38] sm:$0xff] %vm381, %v378
        %v390 = vld [vmem:[#allocation2] sm:$0xff]
        %v391 = vld [vmem:[#allocation3] sm:$0xff]
        %v392 = vld [vmem:[#allocation4] sm:$0xff]
        %v393 = vld [vmem:[%s3] sm:$0xff]
        %v394 = vld [vmem:[%s3 + $0x8] sm:$0xff]
        %v395 = vld [vmem:[%s3 + $0x10] sm:$0xff]
        %v396 = vld [vmem:[%s3 + $0x18] sm:$0xff]
        %vm397 = vcmask 261120
        %v399 = vsel %vm397, %v390, 0
        %401 = vmatprep.subr.mxu0 0.0
        %402 = vmatpush1.msra.mxu0 0.0
        %403 = vmatprep.subr.mxu0 0.0
        %404 = vmatpush1.msra.mxu0 0.0
        %405 = vmatprep.subr.mxu0 0.0
        %406 = vmatpush1.msra.mxu0 0.0
        %407 = vmatprep.subr.mxu0 0.0
        %408 = vmatpush1.msra.mxu0 0.0
        %409 = vmatprep.subr.mxu0 0.0
        %410 = vmatpush1.msra.mxu0 0.0
        %411 = vmatprep.subr.mxu0 0.0
        %412 = vmatpush1.msra.mxu0 0.0
        %413 = vmatprep.subr.mxu0 0.0
        %414 = vmatpush1.msra.mxu0 0.0
        %415 = vmatprep.subr.mxu0 0.0
        %416 = vmatpush1.msra.mxu0 0.0
        %417 = vmatprep.subr.mxu0 0.0
        %418 = vmatpush1.msra.mxu0 0.0
        %419 = vmatprep.subr.mxu0 0.0
        %420 = vmatpush1.msra.mxu0 0.0
        %421 = vmatprep.subr.mxu0 0.0
        %422 = vmatpush1.msra.mxu0 0.0
        %423 = vmatprep.subr.mxu0 0.0
        %424 = vmatpush1.msra.mxu0 0.0
        %425 = vmatprep.subr.mxu0 0.0
        %426 = vmatpush1.msra.mxu0 %v396
        %427 = vmatprep.subr.mxu0 0.0
        %428 = vmatpush1.msra.mxu0 %v395
        %429 = vmatprep.subr.mxu0 0.0
        %430 = vmatpush1.msra.mxu0 %v394
        %431 = vmatprep.subr.mxu0 0.0
        %432 = vmatpush1.msra.mxu0 %v393
        %433 = vmatprep.subr.mxu0 0.0
        %434 = vmatpush2.msra.mxu0 0.0
        %435 = vmatprep.subr.mxu0 0.0
        %436 = vmatpush2.msra.mxu0 0.0
        %437 = vmatprep.subr.mxu0 0.0
        %438 = vmatpush2.msra.mxu0 0.0
        %439 = vmatprep.subr.mxu0 0.0
        %440 = vmatpush2.msra.mxu0 0.0
        %441 = vmatprep.subr.mxu0 0.0
        %442 = vmatpush2.msra.mxu0 0.0
        %443 = vmatprep.subr.mxu0 0.0
        %444 = vmatpush2.msra.mxu0 0.0
        %445 = vmatprep.subr.mxu0 0.0
        %446 = vmatpush2.msra.mxu0 0.0
        %447 = vmatprep.subr.mxu0 0.0
        %448 = vmatpush2.msra.mxu0 0.0
        %449 = vmatprep.subr.mxu0 0.0
        %450 = vmatpush2.msra.mxu0 0.0
        %451 = vmatprep.subr.mxu0 0.0
        %452 = vmatpush2.msra.mxu0 0.0
        %453 = vmatprep.subr.mxu0 0.0
        %454 = vmatpush2.msra.mxu0 0.0
        %455 = vmatprep.subr.mxu0 0.0
        %456 = vmatpush2.msra.mxu0 0.0
        %457 = vmatprep.subr.mxu0 0.0
        %458 = vmatpush2.msra.mxu0 0.0
        %459 = vmatprep.subr.mxu0 0.0
        %460 = vmatpush2.msra.mxu0 0.0
        %461 = vmatprep.subr.mxu0 0.0
        %462 = vmatpush2.msra.mxu0 0.0
        %463 = vmatprep.subr.mxu0 0.0
        %464 = vmatpush2.msra.mxu0 0.0
        %465 = vmatprep.mubr.f32.mxu0 0.0
        %466 = vmatmul.mubr.f32.gmra.mxu0 %v399
        %v467 = vpop.f32.mrf.mxu0
        %v468 = vadd.f32 0.0, %v467
        %v469 = vpop.f32.mrf.mxu0
        %470 = vdwg.mxu0
        %v471 = vadd.f32 %v392, %v468
        %v472 = vxor.u32 %v471, 2147483648
        %v473 = vmul.f32 %v472, 1.442695
        %v474 = vpow.pop %v473
        %v475 = vadd.f32 %v474, 1.0
        %v476 = vrcp.pop %v475
        %v477 = vmul.f32 1.0, %v476
        %v478 = vtanh.pop %v471
        %v479 = vmul.f32 %v390, %v391
        %481 = vrot.lane.b32.xlu0 %v478, 96
        %v482 = vpop.permute.xlu0 %481
        %v484 = vmul.f32 %v477, %v482
        %v485 = vadd.f32 %v479, %v484
        %v486 = vtanh.pop %v485
        %488 = vrot.lane.b32.xlu0 %v486, 64
        %v489 = vpop.permute.xlu0 %488
        %v491 = vmul.f32 %v477, %v489
        %493 = vrot.lane.b32.xlu0 %v491, 64
        %v494 = vpop.permute.xlu0 %493
        %496 = vst.msk [vmem:[#allocation5] sm:$0xff] %vm397, %v494
        %s497 = scalar_lea.vmem [#allocation4], 8
        %v498 = vld [vmem:[%s497] sm:$0xff]
        %v499 = vld [vmem:[%s3] sm:$0xff]
        %v500 = vld [vmem:[%s3 + $0x8] sm:$0xff]
        %v501 = vld [vmem:[%s3 + $0x10] sm:$0xff]
        %v502 = vld [vmem:[%s3 + $0x18] sm:$0xff]
        %v503 = vsel %vm397, %v494, 0
        %505 = vmatprep.subr.mxu0 0.0
        %506 = vmatpush1.msra.mxu0 0.0
        %507 = vmatprep.subr.mxu0 0.0
        %508 = vmatpush1.msra.mxu0 0.0
        %509 = vmatprep.subr.mxu0 0.0
        %510 = vmatpush1.msra.mxu0 0.0
        %511 = vmatprep.subr.mxu0 0.0
        %512 = vmatpush1.msra.mxu0 0.0
        %513 = vmatprep.subr.mxu0 0.0
        %514 = vmatpush1.msra.mxu0 0.0
        %515 = vmatprep.subr.mxu0 0.0
        %516 = vmatpush1.msra.mxu0 0.0
        %517 = vmatprep.subr.mxu0 0.0
        %518 = vmatpush1.msra.mxu0 0.0
        %519 = vmatprep.subr.mxu0 0.0
        %520 = vmatpush1.msra.mxu0 0.0
        %521 = vmatprep.subr.mxu0 0.0
        %522 = vmatpush1.msra.mxu0 0.0
        %523 = vmatprep.subr.mxu0 0.0
        %524 = vmatpush1.msra.mxu0 0.0
        %525 = vmatprep.subr.mxu0 0.0
        %526 = vmatpush1.msra.mxu0 0.0
        %527 = vmatprep.subr.mxu0 0.0
        %528 = vmatpush1.msra.mxu0 0.0
        %529 = vmatprep.subr.mxu0 0.0
        %530 = vmatpush1.msra.mxu0 %v502
        %531 = vmatprep.subr.mxu0 0.0
        %532 = vmatpush1.msra.mxu0 %v501
        %533 = vmatprep.subr.mxu0 0.0
        %534 = vmatpush1.msra.mxu0 %v500
        %535 = vmatprep.subr.mxu0 0.0
        %536 = vmatpush1.msra.mxu0 %v499
        %537 = vmatprep.subr.mxu0 0.0
        %538 = vmatpush2.msra.mxu0 0.0
        %539 = vmatprep.subr.mxu0 0.0
        %540 = vmatpush2.msra.mxu0 0.0
        %541 = vmatprep.subr.mxu0 0.0
        %542 = vmatpush2.msra.mxu0 0.0
        %543 = vmatprep.subr.mxu0 0.0
        %544 = vmatpush2.msra.mxu0 0.0
        %545 = vmatprep.subr.mxu0 0.0
        %546 = vmatpush2.msra.mxu0 0.0
        %547 = vmatprep.subr.mxu0 0.0
        %548 = vmatpush2.msra.mxu0 0.0
        %549 = vmatprep.subr.mxu0 0.0
        %550 = vmatpush2.msra.mxu0 0.0
        %551 = vmatprep.subr.mxu0 0.0
        %552 = vmatpush2.msra.mxu0 0.0
        %553 = vmatprep.subr.mxu0 0.0
        %554 = vmatpush2.msra.mxu0 0.0
        %555 = vmatprep.subr.mxu0 0.0
        %556 = vmatpush2.msra.mxu0 0.0
        %557 = vmatprep.subr.mxu0 0.0
        %558 = vmatpush2.msra.mxu0 0.0
        %559 = vmatprep.subr.mxu0 0.0
        %560 = vmatpush2.msra.mxu0 0.0
        %561 = vmatprep.subr.mxu0 0.0
        %562 = vmatpush2.msra.mxu0 0.0
        %563 = vmatprep.subr.mxu0 0.0
        %564 = vmatpush2.msra.mxu0 0.0
        %565 = vmatprep.subr.mxu0 0.0
        %566 = vmatpush2.msra.mxu0 0.0
        %567 = vmatprep.subr.mxu0 0.0
        %568 = vmatpush2.msra.mxu0 0.0
        %569 = vmatprep.mubr.f32.mxu0 0.0
        %570 = vmatmul.mubr.f32.gmra.mxu0 %v503
        %v571 = vpop.f32.mrf.mxu0
        %v572 = vadd.f32 0.0, %v571
        %v573 = vpop.f32.mrf.mxu0
        %574 = vdwg.mxu0
        %v575 = vadd.f32 %v498, %v572
        %v576 = vxor.u32 %v575, 2147483648
        %v577 = vmul.f32 %v576, 1.442695
        %v578 = vpow.pop %v577
        %v579 = vadd.f32 %v578, 1.0
        %v580 = vrcp.pop %v579
        %v581 = vmul.f32 1.0, %v580
        %v582 = vtanh.pop %v575
        %584 = vrot.lane.b32.xlu0 %v485, 64
        %v585 = vpop.permute.xlu0 %584
        %v587 = vmul.f32 %v491, %v585
        %589 = vrot.lane.b32.xlu0 %v582, 96
        %v590 = vpop.permute.xlu0 %589
        %v592 = vmul.f32 %v581, %v590
        %594 = vrot.lane.b32.xlu0 %v592, 64
        %v595 = vpop.permute.xlu0 %594
        %v597 = vadd.f32 %v587, %v595
        %v598 = vtanh.pop %v597
        %v599 = vmul.f32 %v581, %v598
        %601 = vrot.lane.b32.xlu0 %v599, 64
        %v602 = vpop.permute.xlu0 %601
        %s604 = scalar_lea.vmem [#allocation5], 8
        %605 = vst.msk [vmem:[%s604] sm:$0xff] %vm397, %v602
        %s606 = scalar_lea.vmem [#allocation4], 16
        %v607 = vld [vmem:[%s606] sm:$0xff]
        %v608 = vld [vmem:[%s3] sm:$0xff]
        %v609 = vld [vmem:[%s3 + $0x8] sm:$0xff]
        %v610 = vld [vmem:[%s3 + $0x10] sm:$0xff]
        %v611 = vld [vmem:[%s3 + $0x18] sm:$0xff]
        %v612 = vsel %vm397, %v602, 0
        %614 = vmatprep.subr.mxu0 0.0
        %615 = vmatpush1.msra.mxu0 0.0
        %616 = vmatprep.subr.mxu0 0.0
        %617 = vmatpush1.msra.mxu0 0.0
        %618 = vmatprep.subr.mxu0 0.0
        %619 = vmatpush1.msra.mxu0 0.0
        %620 = vmatprep.subr.mxu0 0.0
        %621 = vmatpush1.msra.mxu0 0.0
        %622 = vmatprep.subr.mxu0 0.0
        %623 = vmatpush1.msra.mxu0 0.0
        %624 = vmatprep.subr.mxu0 0.0
        %625 = vmatpush1.msra.mxu0 0.0
        %626 = vmatprep.subr.mxu0 0.0
        %627 = vmatpush1.msra.mxu0 0.0
        %628 = vmatprep.subr.mxu0 0.0
        %629 = vmatpush1.msra.mxu0 0.0
        %630 = vmatprep.subr.mxu0 0.0
        %631 = vmatpush1.msra.mxu0 0.0
        %632 = vmatprep.subr.mxu0 0.0
        %633 = vmatpush1.msra.mxu0 0.0
        %634 = vmatprep.subr.mxu0 0.0
        %635 = vmatpush1.msra.mxu0 0.0
        %636 = vmatprep.subr.mxu0 0.0
        %637 = vmatpush1.msra.mxu0 0.0
        %638 = vmatprep.subr.mxu0 0.0
        %639 = vmatpush1.msra.mxu0 %v611
        %640 = vmatprep.subr.mxu0 0.0
        %641 = vmatpush1.msra.mxu0 %v610
        %642 = vmatprep.subr.mxu0 0.0
        %643 = vmatpush1.msra.mxu0 %v609
        %644 = vmatprep.subr.mxu0 0.0
        %645 = vmatpush1.msra.mxu0 %v608
        %646 = vmatprep.subr.mxu0 0.0
        %647 = vmatpush2.msra.mxu0 0.0
        %648 = vmatprep.subr.mxu0 0.0
        %649 = vmatpush2.msra.mxu0 0.0
        %650 = vmatprep.subr.mxu0 0.0
        %651 = vmatpush2.msra.mxu0 0.0
        %652 = vmatprep.subr.mxu0 0.0
        %653 = vmatpush2.msra.mxu0 0.0
        %654 = vmatprep.subr.mxu0 0.0
        %655 = vmatpush2.msra.mxu0 0.0
        %656 = vmatprep.subr.mxu0 0.0
        %657 = vmatpush2.msra.mxu0 0.0
        %658 = vmatprep.subr.mxu0 0.0
        %659 = vmatpush2.msra.mxu0 0.0
        %660 = vmatprep.subr.mxu0 0.0
        %661 = vmatpush2.msra.mxu0 0.0
        %662 = vmatprep.subr.mxu0 0.0
        %663 = vmatpush2.msra.mxu0 0.0
        %664 = vmatprep.subr.mxu0 0.0
        %665 = vmatpush2.msra.mxu0 0.0
        %666 = vmatprep.subr.mxu0 0.0
        %667 = vmatpush2.msra.mxu0 0.0
        %668 = vmatprep.subr.mxu0 0.0
        %669 = vmatpush2.msra.mxu0 0.0
        %670 = vmatprep.subr.mxu0 0.0
        %671 = vmatpush2.msra.mxu0 0.0
        %672 = vmatprep.subr.mxu0 0.0
        %673 = vmatpush2.msra.mxu0 0.0
        %674 = vmatprep.subr.mxu0 0.0
        %675 = vmatpush2.msra.mxu0 0.0
        %676 = vmatprep.subr.mxu0 0.0
        %677 = vmatpush2.msra.mxu0 0.0
        %678 = vmatprep.mubr.f32.mxu0 0.0
        %679 = vmatmul.mubr.f32.gmra.mxu0 %v612
        %v680 = vpop.f32.mrf.mxu0
        %v681 = vadd.f32 0.0, %v680
        %v682 = vpop.f32.mrf.mxu0
        %683 = vdwg.mxu0
        %v684 = vadd.f32 %v607, %v681
        %v685 = vxor.u32 %v684, 2147483648
        %v686 = vmul.f32 %v685, 1.442695
        %v687 = vpow.pop %v686
        %v688 = vadd.f32 %v687, 1.0
        %v689 = vrcp.pop %v688
        %v690 = vmul.f32 1.0, %v689
        %v691 = vtanh.pop %v684
        %v692 = vmul.f32 %v599, %v597
        %694 = vrot.lane.b32.xlu0 %v691, 96
        %v695 = vpop.permute.xlu0 %694
        %v697 = vmul.f32 %v690, %v695
        %699 = vrot.lane.b32.xlu0 %v697, 64
        %v700 = vpop.permute.xlu0 %699
        %v702 = vadd.f32 %v692, %v700
        %v703 = vtanh.pop %v702
        %v704 = vmul.f32 %v690, %v703
        %706 = vrot.lane.b32.xlu0 %v704, 64
        %v707 = vpop.permute.xlu0 %706
        %s709 = scalar_lea.vmem [#allocation5], 16
        %710 = vst.msk [vmem:[%s709] sm:$0xff] %vm397, %v707
        %s711 = scalar_lea.vmem [#allocation4], 24
        %v712 = vld [vmem:[%s711] sm:$0xff]
        %v713 = vld [vmem:[%s3] sm:$0xff]
        %v714 = vld [vmem:[%s3 + $0x8] sm:$0xff]
        %v715 = vld [vmem:[%s3 + $0x10] sm:$0xff]
        %v716 = vld [vmem:[%s3 + $0x18] sm:$0xff]
        %v717 = vsel %vm397, %v707, 0
        %719 = vmatprep.subr.mxu0 0.0
        %720 = vmatpush1.msra.mxu0 0.0
        %721 = vmatprep.subr.mxu0 0.0
        %722 = vmatpush1.msra.mxu0 0.0
        %723 = vmatprep.subr.mxu0 0.0
        %724 = vmatpush1.msra.mxu0 0.0
        %725 = vmatprep.subr.mxu0 0.0
        %726 = vmatpush1.msra.mxu0 0.0
        %727 = vmatprep.subr.mxu0 0.0
        %728 = vmatpush1.msra.mxu0 0.0
        %729 = vmatprep.subr.mxu0 0.0
        %730 = vmatpush1.msra.mxu0 0.0
        %731 = vmatprep.subr.mxu0 0.0
        %732 = vmatpush1.msra.mxu0 0.0
        %733 = vmatprep.subr.mxu0 0.0
        %734 = vmatpush1.msra.mxu0 0.0
        %735 = vmatprep.subr.mxu0 0.0
        %736 = vmatpush1.msra.mxu0 0.0
        %737 = vmatprep.subr.mxu0 0.0
        %738 = vmatpush1.msra.mxu0 0.0
        %739 = vmatprep.subr.mxu0 0.0
        %740 = vmatpush1.msra.mxu0 0.0
        %741 = vmatprep.subr.mxu0 0.0
        %742 = vmatpush1.msra.mxu0 0.0
        %743 = vmatprep.subr.mxu0 0.0
        %744 = vmatpush1.msra.mxu0 %v716
        %745 = vmatprep.subr.mxu0 0.0
        %746 = vmatpush1.msra.mxu0 %v715
        %747 = vmatprep.subr.mxu0 0.0
        %748 = vmatpush1.msra.mxu0 %v714
        %749 = vmatprep.subr.mxu0 0.0
        %750 = vmatpush1.msra.mxu0 %v713
        %751 = vmatprep.subr.mxu0 0.0
        %752 = vmatpush2.msra.mxu0 0.0
        %753 = vmatprep.subr.mxu0 0.0
        %754 = vmatpush2.msra.mxu0 0.0
        %755 = vmatprep.subr.mxu0 0.0
        %756 = vmatpush2.msra.mxu0 0.0
        %757 = vmatprep.subr.mxu0 0.0
        %758 = vmatpush2.msra.mxu0 0.0
        %759 = vmatprep.subr.mxu0 0.0
        %760 = vmatpush2.msra.mxu0 0.0
        %761 = vmatprep.subr.mxu0 0.0
        %762 = vmatpush2.msra.mxu0 0.0
        %763 = vmatprep.subr.mxu0 0.0
        %764 = vmatpush2.msra.mxu0 0.0
        %765 = vmatprep.subr.mxu0 0.0
        %766 = vmatpush2.msra.mxu0 0.0
        %767 = vmatprep.subr.mxu0 0.0
        %768 = vmatpush2.msra.mxu0 0.0
        %769 = vmatprep.subr.mxu0 0.0
        %770 = vmatpush2.msra.mxu0 0.0
        %771 = vmatprep.subr.mxu0 0.0
        %772 = vmatpush2.msra.mxu0 0.0
        %773 = vmatprep.subr.mxu0 0.0
        %774 = vmatpush2.msra.mxu0 0.0
        %775 = vmatprep.subr.mxu0 0.0
        %776 = vmatpush2.msra.mxu0 0.0
        %777 = vmatprep.subr.mxu0 0.0
        %778 = vmatpush2.msra.mxu0 0.0
        %779 = vmatprep.subr.mxu0 0.0
        %780 = vmatpush2.msra.mxu0 0.0
        %781 = vmatprep.subr.mxu0 0.0
        %782 = vmatpush2.msra.mxu0 0.0
        %783 = vmatprep.mubr.f32.mxu0 0.0
        %784 = vmatmul.mubr.f32.gmra.mxu0 %v717
        %v785 = vpop.f32.mrf.mxu0
        %v786 = vadd.f32 0.0, %v785
        %v787 = vpop.f32.mrf.mxu0
        %788 = vdwg.mxu0
        %v789 = vadd.f32 %v712, %v786
        %v790 = vxor.u32 %v789, 2147483648
        %v791 = vmul.f32 %v790, 1.442695
        %v792 = vpow.pop %v791
        %v793 = vadd.f32 %v792, 1.0
        %v794 = vrcp.pop %v793
        %v795 = vmul.f32 1.0, %v794
        %v796 = vtanh.pop %v789
        %v797 = vmul.f32 %v704, %v702
        %799 = vrot.lane.b32.xlu0 %v796, 96
        %v800 = vpop.permute.xlu0 %799
        %v802 = vmul.f32 %v795, %v800
        %804 = vrot.lane.b32.xlu0 %v802, 64
        %v805 = vpop.permute.xlu0 %804
        %v807 = vadd.f32 %v797, %v805
        %v808 = vtanh.pop %v807
        %v809 = vmul.f32 %v795, %v808
        %811 = vrot.lane.b32.xlu0 %v809, 64
        %v812 = vpop.permute.xlu0 %811
        %s814 = scalar_lea.vmem [#allocation5], 24
        %815 = vst.msk [vmem:[%s814] sm:$0xff] %vm397, %v812
        %s816 = scalar_lea.vmem [#allocation4], 32
        %v817 = vld [vmem:[%s816] sm:$0xff]
        %v818 = vld [vmem:[%s3] sm:$0xff]
        %v819 = vld [vmem:[%s3 + $0x8] sm:$0xff]
        %v820 = vld [vmem:[%s3 + $0x10] sm:$0xff]
        %v821 = vld [vmem:[%s3 + $0x18] sm:$0xff]
        %v822 = vsel %vm397, %v812, 0
        %824 = vmatprep.subr.mxu0 0.0
        %825 = vmatpush1.msra.mxu0 0.0
        %826 = vmatprep.subr.mxu0 0.0
        %827 = vmatpush1.msra.mxu0 0.0
        %828 = vmatprep.subr.mxu0 0.0
        %829 = vmatpush1.msra.mxu0 0.0
        %830 = vmatprep.subr.mxu0 0.0
        %831 = vmatpush1.msra.mxu0 0.0
        %832 = vmatprep.subr.mxu0 0.0
        %833 = vmatpush1.msra.mxu0 0.0
        %834 = vmatprep.subr.mxu0 0.0
        %835 = vmatpush1.msra.mxu0 0.0
        %836 = vmatprep.subr.mxu0 0.0
        %837 = vmatpush1.msra.mxu0 0.0
        %838 = vmatprep.subr.mxu0 0.0
        %839 = vmatpush1.msra.mxu0 0.0
        %840 = vmatprep.subr.mxu0 0.0
        %841 = vmatpush1.msra.mxu0 0.0
        %842 = vmatprep.subr.mxu0 0.0
        %843 = vmatpush1.msra.mxu0 0.0
        %844 = vmatprep.subr.mxu0 0.0
        %845 = vmatpush1.msra.mxu0 0.0
        %846 = vmatprep.subr.mxu0 0.0
        %847 = vmatpush1.msra.mxu0 0.0
        %848 = vmatprep.subr.mxu0 0.0
        %849 = vmatpush1.msra.mxu0 %v821
        %850 = vmatprep.subr.mxu0 0.0
        %851 = vmatpush1.msra.mxu0 %v820
        %852 = vmatprep.subr.mxu0 0.0
        %853 = vmatpush1.msra.mxu0 %v819
        %854 = vmatprep.subr.mxu0 0.0
        %855 = vmatpush1.msra.mxu0 %v818
        %856 = vmatprep.subr.mxu0 0.0
        %857 = vmatpush2.msra.mxu0 0.0
        %858 = vmatprep.subr.mxu0 0.0
        %859 = vmatpush2.msra.mxu0 0.0
        %860 = vmatprep.subr.mxu0 0.0
        %861 = vmatpush2.msra.mxu0 0.0
        %862 = vmatprep.subr.mxu0 0.0
        %863 = vmatpush2.msra.mxu0 0.0
        %864 = vmatprep.subr.mxu0 0.0
        %865 = vmatpush2.msra.mxu0 0.0
        %866 = vmatprep.subr.mxu0 0.0
        %867 = vmatpush2.msra.mxu0 0.0
        %868 = vmatprep.subr.mxu0 0.0
        %869 = vmatpush2.msra.mxu0 0.0
        %870 = vmatprep.subr.mxu0 0.0
        %871 = vmatpush2.msra.mxu0 0.0
        %872 = vmatprep.subr.mxu0 0.0
        %873 = vmatpush2.msra.mxu0 0.0
        %874 = vmatprep.subr.mxu0 0.0
        %875 = vmatpush2.msra.mxu0 0.0
        %876 = vmatprep.subr.mxu0 0.0
        %877 = vmatpush2.msra.mxu0 0.0
        %878 = vmatprep.subr.mxu0 0.0
        %879 = vmatpush2.msra.mxu0 0.0
        %880 = vmatprep.subr.mxu0 0.0
        %881 = vmatpush2.msra.mxu0 0.0
        %882 = vmatprep.subr.mxu0 0.0
        %883 = vmatpush2.msra.mxu0 0.0
        %884 = vmatprep.subr.mxu0 0.0
        %885 = vmatpush2.msra.mxu0 0.0
        %886 = vmatprep.subr.mxu0 0.0
        %887 = vmatpush2.msra.mxu0 0.0
        %888 = vmatprep.mubr.f32.mxu0 0.0
        %889 = vmatmul.mubr.f32.gmra.mxu0 %v822
        %v890 = vpop.f32.mrf.mxu0
        %v891 = vadd.f32 0.0, %v890
        %v892 = vpop.f32.mrf.mxu0
        %893 = vdwg.mxu0
        %v894 = vadd.f32 %v817, %v891
        %v895 = vxor.u32 %v894, 2147483648
        %v896 = vmul.f32 %v895, 1.442695
        %v897 = vpow.pop %v896
        %v898 = vadd.f32 %v897, 1.0
        %v899 = vrcp.pop %v898
        %v900 = vmul.f32 1.0, %v899
        %v901 = vtanh.pop %v894
        %v902 = vmul.f32 %v809, %v807
        %904 = vrot.lane.b32.xlu0 %v901, 96
        %v905 = vpop.permute.xlu0 %904
        %v907 = vmul.f32 %v900, %v905
        %909 = vrot.lane.b32.xlu0 %v907, 64
        %v910 = vpop.permute.xlu0 %909
        %v912 = vadd.f32 %v902, %v910
        %v913 = vtanh.pop %v912
        %v914 = vmul.f32 %v900, %v913
        %916 = vrot.lane.b32.xlu0 %v914, 64
        %v917 = vpop.permute.xlu0 %916
        %s919 = scalar_lea.vmem [#allocation5], 32
        %920 = vst.msk [vmem:[%s919] sm:$0xff] %vm397, %v917
        %s921 = scalar_lea.vmem [#allocation4], 40
        %v922 = vld [vmem:[%s921] sm:$0xff]
        %v923 = vld [vmem:[%s3] sm:$0xff]
        %v924 = vld [vmem:[%s3 + $0x8] sm:$0xff]
        %v925 = vld [vmem:[%s3 + $0x10] sm:$0xff]
        %v926 = vld [vmem:[%s3 + $0x18] sm:$0xff]
        %v927 = vsel %vm397, %v917, 0
        %929 = vmatprep.subr.mxu0 0.0
        %930 = vmatpush1.msra.mxu0 0.0
        %931 = vmatprep.subr.mxu0 0.0
        %932 = vmatpush1.msra.mxu0 0.0
        %933 = vmatprep.subr.mxu0 0.0
        %934 = vmatpush1.msra.mxu0 0.0
        %935 = vmatprep.subr.mxu0 0.0
        %936 = vmatpush1.msra.mxu0 0.0
        %937 = vmatprep.subr.mxu0 0.0
        %938 = vmatpush1.msra.mxu0 0.0
        %939 = vmatprep.subr.mxu0 0.0
        %940 = vmatpush1.msra.mxu0 0.0
        %941 = vmatprep.subr.mxu0 0.0
        %942 = vmatpush1.msra.mxu0 0.0
        %943 = vmatprep.subr.mxu0 0.0
        %944 = vmatpush1.msra.mxu0 0.0
        %945 = vmatprep.subr.mxu0 0.0
        %946 = vmatpush1.msra.mxu0 0.0
        %947 = vmatprep.subr.mxu0 0.0
        %948 = vmatpush1.msra.mxu0 0.0
        %949 = vmatprep.subr.mxu0 0.0
        %950 = vmatpush1.msra.mxu0 0.0
        %951 = vmatprep.subr.mxu0 0.0
        %952 = vmatpush1.msra.mxu0 0.0
        %953 = vmatprep.subr.mxu0 0.0
        %954 = vmatpush1.msra.mxu0 %v926
        %955 = vmatprep.subr.mxu0 0.0
        %956 = vmatpush1.msra.mxu0 %v925
        %957 = vmatprep.subr.mxu0 0.0
        %958 = vmatpush1.msra.mxu0 %v924
        %959 = vmatprep.subr.mxu0 0.0
        %960 = vmatpush1.msra.mxu0 %v923
        %961 = vmatprep.subr.mxu0 0.0
        %962 = vmatpush2.msra.mxu0 0.0
        %963 = vmatprep.subr.mxu0 0.0
        %964 = vmatpush2.msra.mxu0 0.0
        %965 = vmatprep.subr.mxu0 0.0
        %966 = vmatpush2.msra.mxu0 0.0
        %967 = vmatprep.subr.mxu0 0.0
        %968 = vmatpush2.msra.mxu0 0.0
        %969 = vmatprep.subr.mxu0 0.0
        %970 = vmatpush2.msra.mxu0 0.0
        %971 = vmatprep.subr.mxu0 0.0
        %972 = vmatpush2.msra.mxu0 0.0
        %973 = vmatprep.subr.mxu0 0.0
        %974 = vmatpush2.msra.mxu0 0.0
        %975 = vmatprep.subr.mxu0 0.0
        %976 = vmatpush2.msra.mxu0 0.0
        %977 = vmatprep.subr.mxu0 0.0
        %978 = vmatpush2.msra.mxu0 0.0
        %979 = vmatprep.subr.mxu0 0.0
        %980 = vmatpush2.msra.mxu0 0.0
        %981 = vmatprep.subr.mxu0 0.0
        %982 = vmatpush2.msra.mxu0 0.0
        %983 = vmatprep.subr.mxu0 0.0
        %984 = vmatpush2.msra.mxu0 0.0
        %985 = vmatprep.subr.mxu0 0.0
        %986 = vmatpush2.msra.mxu0 0.0
        %987 = vmatprep.subr.mxu0 0.0
        %988 = vmatpush2.msra.mxu0 0.0
        %989 = vmatprep.subr.mxu0 0.0
        %990 = vmatpush2.msra.mxu0 0.0
        %991 = vmatprep.subr.mxu0 0.0
        %992 = vmatpush2.msra.mxu0 0.0
        %993 = vmatprep.mubr.f32.mxu0 0.0
        %994 = vmatmul.mubr.f32.gmra.mxu0 %v927
        %v995 = vpop.f32.mrf.mxu0
        %v996 = vadd.f32 0.0, %v995
        %v997 = vpop.f32.mrf.mxu0
        %998 = vdwg.mxu0
        %v999 = vadd.f32 %v922, %v996
        %v1000 = vxor.u32 %v999, 2147483648
        %v1001 = vmul.f32 %v1000, 1.442695
        %v1002 = vpow.pop %v1001
        %v1003 = vadd.f32 %v1002, 1.0
        %v1004 = vrcp.pop %v1003
        %v1005 = vmul.f32 1.0, %v1004
        %v1006 = vtanh.pop %v999
        %v1007 = vmul.f32 %v914, %v912
        %1009 = vrot.lane.b32.xlu0 %v1006, 96
        %v1010 = vpop.permute.xlu0 %1009
        %v1012 = vmul.f32 %v1005, %v1010
        %1014 = vrot.lane.b32.xlu0 %v1012, 64
        %v1015 = vpop.permute.xlu0 %1014
        %v1017 = vadd.f32 %v1007, %v1015
        %v1018 = vtanh.pop %v1017
        %v1019 = vmul.f32 %v1005, %v1018
        %1021 = vrot.lane.b32.xlu0 %v1019, 64
        %v1022 = vpop.permute.xlu0 %1021
        %s1024 = scalar_lea.vmem [#allocation5], 40
        %1025 = vst.msk [vmem:[%s1024] sm:$0xff] %vm397, %v1022
        %s1026 = scalar_lea.vmem [#allocation4], 48
        %v1027 = vld [vmem:[%s1026] sm:$0xff]
        %v1028 = vld [vmem:[%s3] sm:$0xff]
        %v1029 = vld [vmem:[%s3 + $0x8] sm:$0xff]
        %v1030 = vld [vmem:[%s3 + $0x10] sm:$0xff]
        %v1031 = vld [vmem:[%s3 + $0x18] sm:$0xff]
        %v1032 = vsel %vm397, %v1022, 0
        %1034 = vmatprep.subr.mxu0 0.0
        %1035 = vmatpush1.msra.mxu0 0.0
        %1036 = vmatprep.subr.mxu0 0.0
        %1037 = vmatpush1.msra.mxu0 0.0
        %1038 = vmatprep.subr.mxu0 0.0
        %1039 = vmatpush1.msra.mxu0 0.0
        %1040 = vmatprep.subr.mxu0 0.0
        %1041 = vmatpush1.msra.mxu0 0.0
        %1042 = vmatprep.subr.mxu0 0.0
        %1043 = vmatpush1.msra.mxu0 0.0
        %1044 = vmatprep.subr.mxu0 0.0
        %1045 = vmatpush1.msra.mxu0 0.0
        %1046 = vmatprep.subr.mxu0 0.0
        %1047 = vmatpush1.msra.mxu0 0.0
        %1048 = vmatprep.subr.mxu0 0.0
        %1049 = vmatpush1.msra.mxu0 0.0
        %1050 = vmatprep.subr.mxu0 0.0
        %1051 = vmatpush1.msra.mxu0 0.0
        %1052 = vmatprep.subr.mxu0 0.0
        %1053 = vmatpush1.msra.mxu0 0.0
        %1054 = vmatprep.subr.mxu0 0.0
        %1055 = vmatpush1.msra.mxu0 0.0
        %1056 = vmatprep.subr.mxu0 0.0
        %1057 = vmatpush1.msra.mxu0 0.0
        %1058 = vmatprep.subr.mxu0 0.0
        %1059 = vmatpush1.msra.mxu0 %v1031
        %1060 = vmatprep.subr.mxu0 0.0
        %1061 = vmatpush1.msra.mxu0 %v1030
        %1062 = vmatprep.subr.mxu0 0.0
        %1063 = vmatpush1.msra.mxu0 %v1029
        %1064 = vmatprep.subr.mxu0 0.0
        %1065 = vmatpush1.msra.mxu0 %v1028
        %1066 = vmatprep.subr.mxu0 0.0
        %1067 = vmatpush2.msra.mxu0 0.0
        %1068 = vmatprep.subr.mxu0 0.0
        %1069 = vmatpush2.msra.mxu0 0.0
        %1070 = vmatprep.subr.mxu0 0.0
        %1071 = vmatpush2.msra.mxu0 0.0
        %1072 = vmatprep.subr.mxu0 0.0
        %1073 = vmatpush2.msra.mxu0 0.0
        %1074 = vmatprep.subr.mxu0 0.0
        %1075 = vmatpush2.msra.mxu0 0.0
        %1076 = vmatprep.subr.mxu0 0.0
        %1077 = vmatpush2.msra.mxu0 0.0
        %1078 = vmatprep.subr.mxu0 0.0
        %1079 = vmatpush2.msra.mxu0 0.0
        %1080 = vmatprep.subr.mxu0 0.0
        %1081 = vmatpush2.msra.mxu0 0.0
        %1082 = vmatprep.subr.mxu0 0.0
        %1083 = vmatpush2.msra.mxu0 0.0
        %1084 = vmatprep.subr.mxu0 0.0
        %1085 = vmatpush2.msra.mxu0 0.0
        %1086 = vmatprep.subr.mxu0 0.0
        %1087 = vmatpush2.msra.mxu0 0.0
        %1088 = vmatprep.subr.mxu0 0.0
        %1089 = vmatpush2.msra.mxu0 0.0
        %1090 = vmatprep.subr.mxu0 0.0
        %1091 = vmatpush2.msra.mxu0 0.0
        %1092 = vmatprep.subr.mxu0 0.0
        %1093 = vmatpush2.msra.mxu0 0.0
        %1094 = vmatprep.subr.mxu0 0.0
        %1095 = vmatpush2.msra.mxu0 0.0
        %1096 = vmatprep.subr.mxu0 0.0
        %1097 = vmatpush2.msra.mxu0 0.0
        %1098 = vmatprep.mubr.f32.mxu0 0.0
        %1099 = vmatmul.mubr.f32.gmra.mxu0 %v1032
        %v1100 = vpop.f32.mrf.mxu0
        %v1101 = vadd.f32 0.0, %v1100
        %v1102 = vpop.f32.mrf.mxu0
        %1103 = vdwg.mxu0
        %v1104 = vadd.f32 %v1027, %v1101
        %v1105 = vxor.u32 %v1104, 2147483648
        %v1106 = vmul.f32 %v1105, 1.442695
        %v1107 = vpow.pop %v1106
        %v1108 = vadd.f32 %v1107, 1.0
        %v1109 = vrcp.pop %v1108
        %v1110 = vmul.f32 1.0, %v1109
        %v1111 = vtanh.pop %v1104
        %v1112 = vmul.f32 %v1019, %v1017
        %1114 = vrot.lane.b32.xlu0 %v1111, 96
        %v1115 = vpop.permute.xlu0 %1114
        %v1117 = vmul.f32 %v1110, %v1115
        %1119 = vrot.lane.b32.xlu0 %v1117, 64
        %v1120 = vpop.permute.xlu0 %1119
        %v1122 = vadd.f32 %v1112, %v1120
        %v1123 = vtanh.pop %v1122
        %v1124 = vmul.f32 %v1110, %v1123
        %1126 = vrot.lane.b32.xlu0 %v1124, 64
        %v1127 = vpop.permute.xlu0 %1126
        %s1129 = scalar_lea.vmem [#allocation5], 48
        %1130 = vst.msk [vmem:[%s1129] sm:$0xff] %vm397, %v1127
        %s1131 = scalar_lea.vmem [#allocation4], 56
        %v1132 = vld [vmem:[%s1131] sm:$0xff]
        %v1133 = vld [vmem:[%s3] sm:$0xff]
        %v1134 = vld [vmem:[%s3 + $0x8] sm:$0xff]
        %v1135 = vld [vmem:[%s3 + $0x10] sm:$0xff]
        %v1136 = vld [vmem:[%s3 + $0x18] sm:$0xff]
        %v1137 = vsel %vm397, %v1127, 0
        %1139 = vmatprep.subr.mxu0 0.0
        %1140 = vmatpush1.msra.mxu0 0.0
        %1141 = vmatprep.subr.mxu0 0.0
        %1142 = vmatpush1.msra.mxu0 0.0
        %1143 = vmatprep.subr.mxu0 0.0
        %1144 = vmatpush1.msra.mxu0 0.0
        %1145 = vmatprep.subr.mxu0 0.0
        %1146 = vmatpush1.msra.mxu0 0.0
        %1147 = vmatprep.subr.mxu0 0.0
        %1148 = vmatpush1.msra.mxu0 0.0
        %1149 = vmatprep.subr.mxu0 0.0
        %1150 = vmatpush1.msra.mxu0 0.0
        %1151 = vmatprep.subr.mxu0 0.0
        %1152 = vmatpush1.msra.mxu0 0.0
        %1153 = vmatprep.subr.mxu0 0.0
        %1154 = vmatpush1.msra.mxu0 0.0
        %1155 = vmatprep.subr.mxu0 0.0
        %1156 = vmatpush1.msra.mxu0 0.0
        %1157 = vmatprep.subr.mxu0 0.0
        %1158 = vmatpush1.msra.mxu0 0.0
        %1159 = vmatprep.subr.mxu0 0.0
        %1160 = vmatpush1.msra.mxu0 0.0
        %1161 = vmatprep.subr.mxu0 0.0
        %1162 = vmatpush1.msra.mxu0 0.0
        %1163 = vmatprep.subr.mxu0 0.0
        %1164 = vmatpush1.msra.mxu0 %v1136
        %1165 = vmatprep.subr.mxu0 0.0
        %1166 = vmatpush1.msra.mxu0 %v1135
        %1167 = vmatprep.subr.mxu0 0.0
        %1168 = vmatpush1.msra.mxu0 %v1134
        %1169 = vmatprep.subr.mxu0 0.0
        %1170 = vmatpush1.msra.mxu0 %v1133
        %1171 = vmatprep.subr.mxu0 0.0
        %1172 = vmatpush2.msra.mxu0 0.0
        %1173 = vmatprep.subr.mxu0 0.0
        %1174 = vmatpush2.msra.mxu0 0.0
        %1175 = vmatprep.subr.mxu0 0.0
        %1176 = vmatpush2.msra.mxu0 0.0
        %1177 = vmatprep.subr.mxu0 0.0
        %1178 = vmatpush2.msra.mxu0 0.0
        %1179 = vmatprep.subr.mxu0 0.0
        %1180 = vmatpush2.msra.mxu0 0.0
        %1181 = vmatprep.subr.mxu0 0.0
        %1182 = vmatpush2.msra.mxu0 0.0
        %1183 = vmatprep.subr.mxu0 0.0
        %1184 = vmatpush2.msra.mxu0 0.0
        %1185 = vmatprep.subr.mxu0 0.0
        %1186 = vmatpush2.msra.mxu0 0.0
        %1187 = vmatprep.subr.mxu0 0.0
        %1188 = vmatpush2.msra.mxu0 0.0
        %1189 = vmatprep.subr.mxu0 0.0
        %1190 = vmatpush2.msra.mxu0 0.0
        %1191 = vmatprep.subr.mxu0 0.0
        %1192 = vmatpush2.msra.mxu0 0.0
        %1193 = vmatprep.subr.mxu0 0.0
        %1194 = vmatpush2.msra.mxu0 0.0
        %1195 = vmatprep.subr.mxu0 0.0
        %1196 = vmatpush2.msra.mxu0 0.0
        %1197 = vmatprep.subr.mxu0 0.0
        %1198 = vmatpush2.msra.mxu0 0.0
        %1199 = vmatprep.subr.mxu0 0.0
        %1200 = vmatpush2.msra.mxu0 0.0
        %1201 = vmatprep.subr.mxu0 0.0
        %1202 = vmatpush2.msra.mxu0 0.0
        %1203 = vmatprep.mubr.f32.mxu0 0.0
        %1204 = vmatmul.mubr.f32.gmra.mxu0 %v1137
        %v1205 = vpop.f32.mrf.mxu0
        %v1206 = vadd.f32 0.0, %v1205
        %v1207 = vpop.f32.mrf.mxu0
        %1208 = vdwg.mxu0
        %v1209 = vadd.f32 %v1132, %v1206
        %v1210 = vxor.u32 %v1209, 2147483648
        %v1211 = vmul.f32 %v1210, 1.442695
        %v1212 = vpow.pop %v1211
        %v1213 = vadd.f32 %v1212, 1.0
        %v1214 = vrcp.pop %v1213
        %v1215 = vmul.f32 1.0, %v1214
        %v1216 = vtanh.pop %v1209
        %v1217 = vmul.f32 %v1124, %v1122
        %1219 = vrot.lane.b32.xlu0 %v1216, 96
        %v1220 = vpop.permute.xlu0 %1219
        %v1222 = vmul.f32 %v1215, %v1220
        %1224 = vrot.lane.b32.xlu0 %v1222, 64
        %v1225 = vpop.permute.xlu0 %1224
        %v1227 = vadd.f32 %v1217, %v1225
        %v1228 = vtanh.pop %v1227
        %v1229 = vmul.f32 %v1215, %v1228
        %1231 = vrot.lane.b32.xlu0 %v1229, 64
        %v1232 = vpop.permute.xlu0 %1231
        %s1234 = scalar_lea.vmem [#allocation5], 56
        %1235 = vst.msk [vmem:[%s1234] sm:$0xff] %vm397, %v1232
        %1236 = vst.msk [vmem:[#allocation2] sm:$0xff] %vm397, %v1232
        %1238 = vrot.lane.b32.xlu0 %v1227, 64
        %v1239 = vpop.permute.xlu0 %1238
        %1241 = vst.msk [vmem:[#allocation3] sm:$0xff] %vm397, %v1239
        %v1242 = vld [vmem:[#allocation5] sm:$0xff]
        %v1244 = vcombine.high %v1242, %v1242
        %v1246 = vunpack.c.l.s4 1966171168
        %v1247 = vunpack.c.0.s8 %v1246
        %v1248 = vlaneseq
        %v1249 = vshrl.u32 %v1248, 7
        %v1250 = vsub.s32 %v1247, %v1249
        %v1251 = vrot.slane %v1242, %v1250
        %v1253 = vunpack.c.l.s4 1966171168
        %v1254 = vunpack.c.0.s8 %v1253
        %v1255 = vlaneseq
        %v1256 = vshrl.u32 %v1255, 7
        %v1257 = vsub.s32 %v1254, %v1256
        %v1258 = vrot.slane %v1244, %v1257
        %v1259 = vcombine.high %v1251, %v1251
        %v1260 = vcombine.high %v1258, %v1258
        %v1262 = vunpack.c.l.s4 1966171168
        %v1263 = vunpack.c.0.s8 %v1262
        %v1264 = vlaneseq
        %v1265 = vshrl.u32 %v1264, 7
        %v1266 = vsub.s32 %v1263, %v1265
        %v1267 = vrot.slane %v1251, %v1266
        %v1269 = vunpack.c.l.s4 1966171168
        %v1270 = vunpack.c.0.s8 %v1269
        %v1271 = vlaneseq
        %v1272 = vshrl.u32 %v1271, 7
        %v1273 = vsub.s32 %v1270, %v1272
        %v1274 = vrot.slane %v1258, %v1273
        %v1276 = vunpack.c.l.s4 1966171168
        %v1277 = vunpack.c.0.s8 %v1276
        %v1278 = vlaneseq
        %v1279 = vshrl.u32 %v1278, 7
        %v1280 = vsub.s32 %v1277, %v1279
        %v1281 = vrot.slane %v1259, %v1280
        %v1283 = vunpack.c.l.s4 1966171168
        %v1284 = vunpack.c.0.s8 %v1283
        %v1285 = vlaneseq
        %v1286 = vshrl.u32 %v1285, 7
        %v1287 = vsub.s32 %v1284, %v1286
        %v1288 = vrot.slane %v1260, %v1287
        %v1289 = vcombine.high %v1267, %v1267
        %v1290 = vcombine.high %v1274, %v1274
        %v1291 = vcombine.high %v1281, %v1281
        %v1292 = vcombine.high %v1288, %v1288
        %vm1301 = vcmask 253952
        %1302 = vst.msk [vmem:[%s215] sm:$0x1] %vm1301, %v1267
        %1303 = vst.msk [vmem:[%s215 + $0x8] sm:$0x1] %vm1301, %v1281
        %1304 = vst.msk [vmem:[%s215 + $0x10] sm:$0x1] %vm1301, %v1289
        %1305 = vst.msk [vmem:[%s215 + $0x18] sm:$0x1] %vm1301, %v1291
        %1306 = vst.msk [vmem:[%s215 + $0x20] sm:$0x1] %vm1301, %v1274
        %1307 = vst.msk [vmem:[%s215 + $0x28] sm:$0x1] %vm1301, %v1288
        %1308 = vst.msk [vmem:[%s215 + $0x30] sm:$0x1] %vm1301, %v1290
        %1309 = vst.msk [vmem:[%s215 + $0x38] sm:$0x1] %vm1301, %v1292
        %v1310 = vld [vmem:[%s604] sm:$0xff]
        %v1312 = vcombine.high %v1310, %v1310
        %v1314 = vunpack.c.l.s4 1966171168
        %v1315 = vunpack.c.0.s8 %v1314
        %v1316 = vlaneseq
        %v1317 = vshrl.u32 %v1316, 7
        %v1318 = vsub.s32 %v1315, %v1317
        %v1319 = vrot.slane %v1310, %v1318
        %v1321 = vunpack.c.l.s4 1966171168
        %v1322 = vunpack.c.0.s8 %v1321
        %v1323 = vlaneseq
        %v1324 = vshrl.u32 %v1323, 7
        %v1325 = vsub.s32 %v1322, %v1324
        %v1326 = vrot.slane %v1312, %v1325
        %v1327 = vcombine.high %v1319, %v1319
        %v1328 = vcombine.high %v1326, %v1326
        %v1330 = vunpack.c.l.s4 1966171168
        %v1331 = vunpack.c.0.s8 %v1330
        %v1332 = vlaneseq
        %v1333 = vshrl.u32 %v1332, 7
        %v1334 = vsub.s32 %v1331, %v1333
        %v1335 = vrot.slane %v1319, %v1334
        %v1337 = vunpack.c.l.s4 1966171168
        %v1338 = vunpack.c.0.s8 %v1337
        %v1339 = vlaneseq
        %v1340 = vshrl.u32 %v1339, 7
        %v1341 = vsub.s32 %v1338, %v1340
        %v1342 = vrot.slane %v1326, %v1341
        %v1344 = vunpack.c.l.s4 1966171168
        %v1345 = vunpack.c.0.s8 %v1344
        %v1346 = vlaneseq
        %v1347 = vshrl.u32 %v1346, 7
        %v1348 = vsub.s32 %v1345, %v1347
        %v1349 = vrot.slane %v1327, %v1348
        %v1351 = vunpack.c.l.s4 1966171168
        %v1352 = vunpack.c.0.s8 %v1351
        %v1353 = vlaneseq
        %v1354 = vshrl.u32 %v1353, 7
        %v1355 = vsub.s32 %v1352, %v1354
        %v1356 = vrot.slane %v1328, %v1355
        %v1357 = vcombine.high %v1335, %v1335
        %v1358 = vcombine.high %v1342, %v1342
        %v1359 = vcombine.high %v1349, %v1349
        %v1360 = vcombine.high %v1356, %v1356
        %1369 = vst.msk [vmem:[%s215 + $0x1] sm:$0x1] %vm1301, %v1335
        %1370 = vst.msk [vmem:[%s215 + $0x9] sm:$0x1] %vm1301, %v1349
        %1371 = vst.msk [vmem:[%s215 + $0x11] sm:$0x1] %vm1301, %v1357
        %1372 = vst.msk [vmem:[%s215 + $0x19] sm:$0x1] %vm1301, %v1359
        %1373 = vst.msk [vmem:[%s215 + $0x21] sm:$0x1] %vm1301, %v1342
        %1374 = vst.msk [vmem:[%s215 + $0x29] sm:$0x1] %vm1301, %v1356
        %1375 = vst.msk [vmem:[%s215 + $0x31] sm:$0x1] %vm1301, %v1358
        %1376 = vst.msk [vmem:[%s215 + $0x39] sm:$0x1] %vm1301, %v1360
        %v1377 = vld [vmem:[%s709] sm:$0xff]
        %v1379 = vcombine.high %v1377, %v1377
        %v1381 = vunpack.c.l.s4 1966171168
        %v1382 = vunpack.c.0.s8 %v1381
        %v1383 = vlaneseq
        %v1384 = vshrl.u32 %v1383, 7
        %v1385 = vsub.s32 %v1382, %v1384
        %v1386 = vrot.slane %v1377, %v1385
        %v1388 = vunpack.c.l.s4 1966171168
        %v1389 = vunpack.c.0.s8 %v1388
        %v1390 = vlaneseq
        %v1391 = vshrl.u32 %v1390, 7
        %v1392 = vsub.s32 %v1389, %v1391
        %v1393 = vrot.slane %v1379, %v1392
        %v1394 = vcombine.high %v1386, %v1386
        %v1395 = vcombine.high %v1393, %v1393
        %v1397 = vunpack.c.l.s4 1966171168
        %v1398 = vunpack.c.0.s8 %v1397
        %v1399 = vlaneseq
        %v1400 = vshrl.u32 %v1399, 7
        %v1401 = vsub.s32 %v1398, %v1400
        %v1402 = vrot.slane %v1386, %v1401
        %v1404 = vunpack.c.l.s4 1966171168
        %v1405 = vunpack.c.0.s8 %v1404
        %v1406 = vlaneseq
        %v1407 = vshrl.u32 %v1406, 7
        %v1408 = vsub.s32 %v1405, %v1407
        %v1409 = vrot.slane %v1393, %v1408
        %v1411 = vunpack.c.l.s4 1966171168
        %v1412 = vunpack.c.0.s8 %v1411
        %v1413 = vlaneseq
        %v1414 = vshrl.u32 %v1413, 7
        %v1415 = vsub.s32 %v1412, %v1414
        %v1416 = vrot.slane %v1394, %v1415
        %v1418 = vunpack.c.l.s4 1966171168
        %v1419 = vunpack.c.0.s8 %v1418
        %v1420 = vlaneseq
        %v1421 = vshrl.u32 %v1420, 7
        %v1422 = vsub.s32 %v1419, %v1421
        %v1423 = vrot.slane %v1395, %v1422
        %v1424 = vcombine.high %v1402, %v1402
        %v1425 = vcombine.high %v1409, %v1409
        %v1426 = vcombine.high %v1416, %v1416
        %v1427 = vcombine.high %v1423, %v1423
        %1436 = vst.msk [vmem:[%s215 + $0x2] sm:$0x1] %vm1301, %v1402
        %1437 = vst.msk [vmem:[%s215 + $0xa] sm:$0x1] %vm1301, %v1416
        %1438 = vst.msk [vmem:[%s215 + $0x12] sm:$0x1] %vm1301, %v1424
        %1439 = vst.msk [vmem:[%s215 + $0x1a] sm:$0x1] %vm1301, %v1426
        %1440 = vst.msk [vmem:[%s215 + $0x22] sm:$0x1] %vm1301, %v1409
        %1441 = vst.msk [vmem:[%s215 + $0x2a] sm:$0x1] %vm1301, %v1423
        %1442 = vst.msk [vmem:[%s215 + $0x32] sm:$0x1] %vm1301, %v1425
        %1443 = vst.msk [vmem:[%s215 + $0x3a] sm:$0x1] %vm1301, %v1427
        %v1444 = vld [vmem:[%s814] sm:$0xff]
        %v1446 = vcombine.high %v1444, %v1444
        %v1448 = vunpack.c.l.s4 1966171168
        %v1449 = vunpack.c.0.s8 %v1448
        %v1450 = vlaneseq
        %v1451 = vshrl.u32 %v1450, 7
        %v1452 = vsub.s32 %v1449, %v1451
        %v1453 = vrot.slane %v1444, %v1452
        %v1455 = vunpack.c.l.s4 1966171168
        %v1456 = vunpack.c.0.s8 %v1455
        %v1457 = vlaneseq
        %v1458 = vshrl.u32 %v1457, 7
        %v1459 = vsub.s32 %v1456, %v1458
        %v1460 = vrot.slane %v1446, %v1459
        %v1461 = vcombine.high %v1453, %v1453
        %v1462 = vcombine.high %v1460, %v1460
        %v1464 = vunpack.c.l.s4 1966171168
        %v1465 = vunpack.c.0.s8 %v1464
        %v1466 = vlaneseq
        %v1467 = vshrl.u32 %v1466, 7
        %v1468 = vsub.s32 %v1465, %v1467
        %v1469 = vrot.slane %v1453, %v1468
        %v1471 = vunpack.c.l.s4 1966171168
        %v1472 = vunpack.c.0.s8 %v1471
        %v1473 = vlaneseq
        %v1474 = vshrl.u32 %v1473, 7
        %v1475 = vsub.s32 %v1472, %v1474
        %v1476 = vrot.slane %v1460, %v1475
        %v1478 = vunpack.c.l.s4 1966171168
        %v1479 = vunpack.c.0.s8 %v1478
        %v1480 = vlaneseq
        %v1481 = vshrl.u32 %v1480, 7
        %v1482 = vsub.s32 %v1479, %v1481
        %v1483 = vrot.slane %v1461, %v1482
        %v1485 = vunpack.c.l.s4 1966171168
        %v1486 = vunpack.c.0.s8 %v1485
        %v1487 = vlaneseq
        %v1488 = vshrl.u32 %v1487, 7
        %v1489 = vsub.s32 %v1486, %v1488
        %v1490 = vrot.slane %v1462, %v1489
        %v1491 = vcombine.high %v1469, %v1469
        %v1492 = vcombine.high %v1476, %v1476
        %v1493 = vcombine.high %v1483, %v1483
        %v1494 = vcombine.high %v1490, %v1490
        %1503 = vst.msk [vmem:[%s215 + $0x3] sm:$0x1] %vm1301, %v1469
        %1504 = vst.msk [vmem:[%s215 + $0xb] sm:$0x1] %vm1301, %v1483
        %1505 = vst.msk [vmem:[%s215 + $0x13] sm:$0x1] %vm1301, %v1491
        %1506 = vst.msk [vmem:[%s215 + $0x1b] sm:$0x1] %vm1301, %v1493
        %1507 = vst.msk [vmem:[%s215 + $0x23] sm:$0x1] %vm1301, %v1476
        %1508 = vst.msk [vmem:[%s215 + $0x2b] sm:$0x1] %vm1301, %v1490
        %1509 = vst.msk [vmem:[%s215 + $0x33] sm:$0x1] %vm1301, %v1492
        %1510 = vst.msk [vmem:[%s215 + $0x3b] sm:$0x1] %vm1301, %v1494
        %v1511 = vld [vmem:[%s919] sm:$0xff]
        %v1513 = vcombine.high %v1511, %v1511
        %v1515 = vunpack.c.l.s4 1966171168
        %v1516 = vunpack.c.0.s8 %v1515
        %v1517 = vlaneseq
        %v1518 = vshrl.u32 %v1517, 7
        %v1519 = vsub.s32 %v1516, %v1518
        %v1520 = vrot.slane %v1511, %v1519
        %v1522 = vunpack.c.l.s4 1966171168
        %v1523 = vunpack.c.0.s8 %v1522
        %v1524 = vlaneseq
        %v1525 = vshrl.u32 %v1524, 7
        %v1526 = vsub.s32 %v1523, %v1525
        %v1527 = vrot.slane %v1513, %v1526
        %v1528 = vcombine.high %v1520, %v1520
        %v1529 = vcombine.high %v1527, %v1527
        %v1531 = vunpack.c.l.s4 1966171168
        %v1532 = vunpack.c.0.s8 %v1531
        %v1533 = vlaneseq
        %v1534 = vshrl.u32 %v1533, 7
        %v1535 = vsub.s32 %v1532, %v1534
        %v1536 = vrot.slane %v1520, %v1535
        %v1538 = vunpack.c.l.s4 1966171168
        %v1539 = vunpack.c.0.s8 %v1538
        %v1540 = vlaneseq
        %v1541 = vshrl.u32 %v1540, 7
        %v1542 = vsub.s32 %v1539, %v1541
        %v1543 = vrot.slane %v1527, %v1542
        %v1545 = vunpack.c.l.s4 1966171168
        %v1546 = vunpack.c.0.s8 %v1545
        %v1547 = vlaneseq
        %v1548 = vshrl.u32 %v1547, 7
        %v1549 = vsub.s32 %v1546, %v1548
        %v1550 = vrot.slane %v1528, %v1549
        %v1552 = vunpack.c.l.s4 1966171168
        %v1553 = vunpack.c.0.s8 %v1552
        %v1554 = vlaneseq
        %v1555 = vshrl.u32 %v1554, 7
        %v1556 = vsub.s32 %v1553, %v1555
        %v1557 = vrot.slane %v1529, %v1556
        %v1558 = vcombine.high %v1536, %v1536
        %v1559 = vcombine.high %v1543, %v1543
        %v1560 = vcombine.high %v1550, %v1550
        %v1561 = vcombine.high %v1557, %v1557
        %1570 = vst.msk [vmem:[%s215 + $0x4] sm:$0x1] %vm1301, %v1536
        %1571 = vst.msk [vmem:[%s215 + $0xc] sm:$0x1] %vm1301, %v1550
        %1572 = vst.msk [vmem:[%s215 + $0x14] sm:$0x1] %vm1301, %v1558
        %1573 = vst.msk [vmem:[%s215 + $0x1c] sm:$0x1] %vm1301, %v1560
        %1574 = vst.msk [vmem:[%s215 + $0x24] sm:$0x1] %vm1301, %v1543
        %1575 = vst.msk [vmem:[%s215 + $0x2c] sm:$0x1] %vm1301, %v1557
        %1576 = vst.msk [vmem:[%s215 + $0x34] sm:$0x1] %vm1301, %v1559
        %1577 = vst.msk [vmem:[%s215 + $0x3c] sm:$0x1] %vm1301, %v1561
        %v1578 = vld [vmem:[%s1024] sm:$0xff]
        %v1580 = vcombine.high %v1578, %v1578
        %v1582 = vunpack.c.l.s4 1966171168
        %v1583 = vunpack.c.0.s8 %v1582
        %v1584 = vlaneseq
        %v1585 = vshrl.u32 %v1584, 7
        %v1586 = vsub.s32 %v1583, %v1585
        %v1587 = vrot.slane %v1578, %v1586
        %v1589 = vunpack.c.l.s4 1966171168
        %v1590 = vunpack.c.0.s8 %v1589
        %v1591 = vlaneseq
        %v1592 = vshrl.u32 %v1591, 7
        %v1593 = vsub.s32 %v1590, %v1592
        %v1594 = vrot.slane %v1580, %v1593
        %v1595 = vcombine.high %v1587, %v1587
        %v1596 = vcombine.high %v1594, %v1594
        %v1598 = vunpack.c.l.s4 1966171168
        %v1599 = vunpack.c.0.s8 %v1598
        %v1600 = vlaneseq
        %v1601 = vshrl.u32 %v1600, 7
        %v1602 = vsub.s32 %v1599, %v1601
        %v1603 = vrot.slane %v1587, %v1602
        %v1605 = vunpack.c.l.s4 1966171168
        %v1606 = vunpack.c.0.s8 %v1605
        %v1607 = vlaneseq
        %v1608 = vshrl.u32 %v1607, 7
        %v1609 = vsub.s32 %v1606, %v1608
        %v1610 = vrot.slane %v1594, %v1609
        %v1612 = vunpack.c.l.s4 1966171168
        %v1613 = vunpack.c.0.s8 %v1612
        %v1614 = vlaneseq
        %v1615 = vshrl.u32 %v1614, 7
        %v1616 = vsub.s32 %v1613, %v1615
        %v1617 = vrot.slane %v1595, %v1616
        %v1619 = vunpack.c.l.s4 1966171168
        %v1620 = vunpack.c.0.s8 %v1619
        %v1621 = vlaneseq
        %v1622 = vshrl.u32 %v1621, 7
        %v1623 = vsub.s32 %v1620, %v1622
        %v1624 = vrot.slane %v1596, %v1623
        %v1625 = vcombine.high %v1603, %v1603
        %v1626 = vcombine.high %v1610, %v1610
        %v1627 = vcombine.high %v1617, %v1617
        %v1628 = vcombine.high %v1624, %v1624
        %1637 = vst.msk [vmem:[%s215 + $0x5] sm:$0x1] %vm1301, %v1603
        %1638 = vst.msk [vmem:[%s215 + $0xd] sm:$0x1] %vm1301, %v1617
        %1639 = vst.msk [vmem:[%s215 + $0x15] sm:$0x1] %vm1301, %v1625
        %1640 = vst.msk [vmem:[%s215 + $0x1d] sm:$0x1] %vm1301, %v1627
        %1641 = vst.msk [vmem:[%s215 + $0x25] sm:$0x1] %vm1301, %v1610
        %1642 = vst.msk [vmem:[%s215 + $0x2d] sm:$0x1] %vm1301, %v1624
        %1643 = vst.msk [vmem:[%s215 + $0x35] sm:$0x1] %vm1301, %v1626
        %1644 = vst.msk [vmem:[%s215 + $0x3d] sm:$0x1] %vm1301, %v1628
        %v1645 = vld [vmem:[%s1129] sm:$0xff]
        %v1647 = vcombine.high %v1645, %v1645
        %v1649 = vunpack.c.l.s4 1966171168
        %v1650 = vunpack.c.0.s8 %v1649
        %v1651 = vlaneseq
        %v1652 = vshrl.u32 %v1651, 7
        %v1653 = vsub.s32 %v1650, %v1652
        %v1654 = vrot.slane %v1645, %v1653
        %v1656 = vunpack.c.l.s4 1966171168
        %v1657 = vunpack.c.0.s8 %v1656
        %v1658 = vlaneseq
        %v1659 = vshrl.u32 %v1658, 7
        %v1660 = vsub.s32 %v1657, %v1659
        %v1661 = vrot.slane %v1647, %v1660
        %v1662 = vcombine.high %v1654, %v1654
        %v1663 = vcombine.high %v1661, %v1661
        %v1665 = vunpack.c.l.s4 1966171168
        %v1666 = vunpack.c.0.s8 %v1665
        %v1667 = vlaneseq
        %v1668 = vshrl.u32 %v1667, 7
        %v1669 = vsub.s32 %v1666, %v1668
        %v1670 = vrot.slane %v1654, %v1669
        %v1672 = vunpack.c.l.s4 1966171168
        %v1673 = vunpack.c.0.s8 %v1672
        %v1674 = vlaneseq
        %v1675 = vshrl.u32 %v1674, 7
        %v1676 = vsub.s32 %v1673, %v1675
        %v1677 = vrot.slane %v1661, %v1676
        %v1679 = vunpack.c.l.s4 1966171168
        %v1680 = vunpack.c.0.s8 %v1679
        %v1681 = vlaneseq
        %v1682 = vshrl.u32 %v1681, 7
        %v1683 = vsub.s32 %v1680, %v1682
        %v1684 = vrot.slane %v1662, %v1683
        %v1686 = vunpack.c.l.s4 1966171168
        %v1687 = vunpack.c.0.s8 %v1686
        %v1688 = vlaneseq
        %v1689 = vshrl.u32 %v1688, 7
        %v1690 = vsub.s32 %v1687, %v1689
        %v1691 = vrot.slane %v1663, %v1690
        %v1692 = vcombine.high %v1670, %v1670
        %v1693 = vcombine.high %v1677, %v1677
        %v1694 = vcombine.high %v1684, %v1684
        %v1695 = vcombine.high %v1691, %v1691
        %1704 = vst.msk [vmem:[%s215 + $0x6] sm:$0x1] %vm1301, %v1670
        %1705 = vst.msk [vmem:[%s215 + $0xe] sm:$0x1] %vm1301, %v1684
        %1706 = vst.msk [vmem:[%s215 + $0x16] sm:$0x1] %vm1301, %v1692
        %1707 = vst.msk [vmem:[%s215 + $0x1e] sm:$0x1] %vm1301, %v1694
        %1708 = vst.msk [vmem:[%s215 + $0x26] sm:$0x1] %vm1301, %v1677
        %1709 = vst.msk [vmem:[%s215 + $0x2e] sm:$0x1] %vm1301, %v1691
        %1710 = vst.msk [vmem:[%s215 + $0x36] sm:$0x1] %vm1301, %v1693
        %1711 = vst.msk [vmem:[%s215 + $0x3e] sm:$0x1] %vm1301, %v1695
        %v1712 = vld [vmem:[%s1234] sm:$0xff]
        %v1714 = vcombine.high %v1712, %v1712
        %v1716 = vunpack.c.l.s4 1966171168
        %v1717 = vunpack.c.0.s8 %v1716
        %v1718 = vlaneseq
        %v1719 = vshrl.u32 %v1718, 7
        %v1720 = vsub.s32 %v1717, %v1719
        %v1721 = vrot.slane %v1712, %v1720
        %v1723 = vunpack.c.l.s4 1966171168
        %v1724 = vunpack.c.0.s8 %v1723
        %v1725 = vlaneseq
        %v1726 = vshrl.u32 %v1725, 7
        %v1727 = vsub.s32 %v1724, %v1726
        %v1728 = vrot.slane %v1714, %v1727
        %v1729 = vcombine.high %v1721, %v1721
        %v1730 = vcombine.high %v1728, %v1728
        %v1732 = vunpack.c.l.s4 1966171168
        %v1733 = vunpack.c.0.s8 %v1732
        %v1734 = vlaneseq
        %v1735 = vshrl.u32 %v1734, 7
        %v1736 = vsub.s32 %v1733, %v1735
        %v1737 = vrot.slane %v1721, %v1736
        %v1739 = vunpack.c.l.s4 1966171168
        %v1740 = vunpack.c.0.s8 %v1739
        %v1741 = vlaneseq
        %v1742 = vshrl.u32 %v1741, 7
        %v1743 = vsub.s32 %v1740, %v1742
        %v1744 = vrot.slane %v1728, %v1743
        %v1746 = vunpack.c.l.s4 1966171168
        %v1747 = vunpack.c.0.s8 %v1746
        %v1748 = vlaneseq
        %v1749 = vshrl.u32 %v1748, 7
        %v1750 = vsub.s32 %v1747, %v1749
        %v1751 = vrot.slane %v1729, %v1750
        %v1753 = vunpack.c.l.s4 1966171168
        %v1754 = vunpack.c.0.s8 %v1753
        %v1755 = vlaneseq
        %v1756 = vshrl.u32 %v1755, 7
        %v1757 = vsub.s32 %v1754, %v1756
        %v1758 = vrot.slane %v1730, %v1757
        %v1759 = vcombine.high %v1737, %v1737
        %v1760 = vcombine.high %v1744, %v1744
        %v1761 = vcombine.high %v1751, %v1751
        %v1762 = vcombine.high %v1758, %v1758
        %1771 = vst.msk [vmem:[%s215 + $0x7] sm:$0x1] %vm1301, %v1737
        %1772 = vst.msk [vmem:[%s215 + $0xf] sm:$0x1] %vm1301, %v1751
        %1773 = vst.msk [vmem:[%s215 + $0x17] sm:$0x1] %vm1301, %v1759
        %1774 = vst.msk [vmem:[%s215 + $0x1f] sm:$0x1] %vm1301, %v1761
        %1775 = vst.msk [vmem:[%s215 + $0x27] sm:$0x1] %vm1301, %v1744
        %1776 = vst.msk [vmem:[%s215 + $0x2f] sm:$0x1] %vm1301, %v1758
        %1777 = vst.msk [vmem:[%s215 + $0x37] sm:$0x1] %vm1301, %v1760
        %1778 = vst.msk [vmem:[%s215 + $0x3f] sm:$0x1] %vm1301, %v1762
        %s1779 = sand.u32 %s131, 1
        %s1780 = scalar_lea.sflag [#allocation7], %s1779
        %s1781 = sand.u32 %s131, 1
        %s1782 = smul.addr %s1781, 64
        %s1783 = scalar_lea.vmem [#allocation6], %s1782
        // Predicated region
        $region41: #{tpu_custom_call.1} parent=35 // pred_check
          %p1784 = pneg %p141
        $region42: #{tpu_custom_call.1} parent=35 // pred_check_branch
          %1786 = sbr.rel (%p1784) target = $region44
        $region43: #{tpu_custom_call.1} parent=35 // pred_region
          %s1787 = smul.u32 8, %s22
          %s1789 = ssub.s32 1024, 1024
          %1790 = vsyncadd %s1780, %s1789
          %s1791 = smul.addr %s1787, 2
          %s1792 = sadd.s32 %s23, %s1791
          %s1793 = smul.addr %s1792, 128
          %s1794 = scalar_lea.hbm %s4, %s1793
          %s1795 = sshll.u32 %s1783, 4
          %s1796 = int_to_ptr.vmem [resolvable:$true] %s1795
          %1801 = dma.vmem_to_hbm [thread:$0]  %s1796, 1024, %s1794, %s1780, 128, 256, 8
        $region44: #{tpu_custom_call.1} parent=35 // pred_fallthru
          _
      $region36: #{tpu_custom_call.1} parent=5 // pred_fallthru
        _
      %p1802 = scmp.le.s32.totalorder 2, %s13
      // Predicated region
      $region45: #{tpu_custom_call.1} parent=5 // pred_check
        %p1803 = pneg %p1802
      $region46: #{tpu_custom_call.1} parent=5 // pred_check_branch
        %1805 = sbr.rel (%p1803) target = $region48
      $region47: #{tpu_custom_call.1} parent=5 // pred_region
        %s1806 = ssub.s32 %s13, 2
        // Predicated region
        $region49: #{tpu_custom_call.1} parent=47 // pred_check
          %p1807 = pneg %p147
        $region50: #{tpu_custom_call.1} parent=47 // pred_check_branch
          %1809 = sbr.rel (%p1807) target = $region52
        $region51: #{tpu_custom_call.1} parent=47 // pred_region
          %s1810 = sand.u32 %s132, 1
          %s1811 = scalar_lea.sflag [#allocation7], %s1810
          %s1812 = sand.u32 %s132, 1
          %s1813 = smul.addr %s1812, 64
          %s1814 = scalar_lea.vmem [#allocation6], %s1813
          %1815 = dma.done %s1811, 1024
        $region52: #{tpu_custom_call.1} parent=47 // pred_fallthru
          _
      $region48: #{tpu_custom_call.1} parent=5 // pred_fallthru
        _
    $region6: #{tpu_custom_call.1} parent=1 // loop_footer
      %s17 = sadd.s32 1, %s13
    $region7: #{tpu_custom_call.1} parent=1 // loop_footer_branch
      %12 = sbr.rel target = $region3
    $region8: #{tpu_custom_call.1} parent=1 // loop_exit
      _
    %1816 = vsyncpa [#allocation7], 1
    %s1817 = scalar_lea.sflag [#allocation7], 1
    %1818 = vsyncpa %s1817, 1

// kernel: tpu_custom_call.1
$region0: #{tpu_custom_call.1}
  #allocation0 [shape = 'u32[]', space=smem, size = 0x4, offset = 0x4, fixed_abs, tag = 'smem constant byte address 0x4 - core index']
  #allocation1 [shape = 'u32[144,128]{1,0:T(1,128)}', space=vmem, size = 0x12000, scoped, tag = 'internal scratch']
  #allocation2 [shape = 'f32[8,32]{1,0:T(8,128)}', space=vmem, size = 0x1000, scoped, tag = 'scratch operand']
  #allocation3 [shape = 'f32[8,32]{1,0:T(8,128)}', space=vmem, size = 0x1000, scoped, tag = 'scratch operand']
  #allocation4 [shape = 'f32[64,96]{1,0:T(8,128)}', space=vmem, size = 0x8000, scoped, tag = 'scratch operand']
  #allocation5 [shape = 'f32[8,8,32]{2,1,0:T(8,128)}', space=vmem, size = 0x8000, scoped, tag = 'scratch operand']
  %s0 = inlined_call_operand.vmem [shape: f32[1,128,16], index: 0, kind: input, shape index: {}]
  %s1 = inlined_call_operand.vmem [shape: f32[16,96], index: 1, kind: input, shape index: {}]
  %s2 = inlined_call_operand.vmem [shape: f32[1,96], index: 2, kind: input, shape index: {}]
  %s3 = inlined_call_operand.vmem [shape: f32[32,96], index: 3, kind: input, shape index: {}]
  %s4 = inlined_call_operand.hbm [shape: f32[8,16,32], index: 4, kind: output, shape index: {}]
  %s5 = sld [smem:[#allocation0]]
  $region53: #{tpu_custom_call.1} parent=0
    _
  %s7 = ssub.s32 1, %s5
  %s8 = scalar_select 0, %s7, %s5
  $region1: #{tpu_custom_call.1} parent=0
    #allocation6 [shape = 'u8[65536]{0}', space=vmem, size = 0x10000, scoped, tag = 'output window, operand 0']
    #allocation7 [shape = 's32[2]{0}', space=sflag, size = 0x8, scoped, tag = 'scoped memory for tpu_custom_call.1']
    %9 = vsyncpa [#allocation7], 0
    %s10 = scalar_lea.sflag [#allocation7], 1
    %11 = vsyncpa %s10, 0
    loop: start=0, step=1, limit=4
    $region2: #{tpu_custom_call.1} parent=1 // loop_pre_header
      _
    $region3: #{tpu_custom_call.1} parent=1 // loop_header
      %s13 = sphi 0, %s17
      %p14 = scmp.ge.s32.totalorder %s13, 4
      %s20 = sphi 0, %s32
      %s21 = sphi 0, %s28
      %s22 = sphi 0, %s20
      %s23 = sphi 0, %s21
      %s24 = sphi 0, %s22
      %s25 = sphi 0, %s23
      %s37 = sphi 0, %s39
      %s40 = sphi 0, %s37
      %s41 = sphi 0, %s40
      %s57 = sphi 0, %s41
      %s61 = sphi 0, %s61
      %s63 = sphi 0, %s61
      %s64 = sphi 0, %s63
      %s78 = sphi 0, %s64
      %s82 = sphi 0, %s82
      %s84 = sphi 0, %s82
      %s85 = sphi 0, %s84
      %s99 = sphi 0, %s85
      %s103 = sphi 0, %s103
      %s105 = sphi 0, %s103
      %s106 = sphi 0, %s105
      %s120 = sphi 0, %s106
      %s128 = sphi 0, %s130
      %s131 = sphi 0, %s128
      %s132 = sphi 0, %s131
      %s148 = sphi 0, %s132
    $region4: #{tpu_custom_call.1} parent=1 // loop_header_branch
      %16 = sbr.rel (%p14) target = $region8
    $region5: #{tpu_custom_call.1} parent=1 // loop_body
      %s18 = ssub.s32 %s13, 1
      %s19 = ssub.s32 %s13, 2
      %s26 = sadd.s32 1, %s21
      %p27 = scmp.ge.s32.totalorder %s26, 2
      %s28 = scalar_select %p27, 0, %s26
      %s29 = sadd.s32 1, %s20
      %s30 = scalar_select %p27, %s29, %s20
      %p31 = scmp.ge.s32.totalorder %s30, 1
      %s32 = scalar_select %p31, 0, %s30
      %s33 = ssub.s32 %s20, %s32
      %s34 = ssub.s32 %s21, %s28
      %s35 = sor.u32 %s33, %s34
      %p36 = scmp.eq.s32.totalorder %s35, 0
      %s38 = sadd.s32 %s37, 1
      %s39 = scalar_select %p36, %s37, %s38
      %p42 = pneg %p36
      %p43 = scmp.eq.s32.totalorder %s13, 1
      %p44 = por %p42, %p43
      %p45 = scmp.ne.s32.totalorder %s37, %s40
      %p46 = scmp.eq.s32.totalorder %s13, 0
      %p47 = por %p45, %p46
      %p48 = scmp.ne.s32.totalorder %s37, %s40
      %p49 = scmp.eq.s32.totalorder %s18, 1
      %p50 = por %p48, %p49
      %p51 = scmp.ne.s32.totalorder %s40, %s41
      %p52 = scmp.eq.s32.totalorder %s18, 0
      %p53 = por %p51, %p52
      %p54 = scmp.ne.s32.totalorder %s40, %s41
      %p55 = scmp.eq.s32.totalorder %s19, 1
      %p56 = por %p54, %p55
      %p58 = scmp.ne.s32.totalorder %s41, %s57
      %p59 = scmp.eq.s32.totalorder %s19, 0
      %p60 = por %p58, %p59
      %s62 = sadd.s32 %s61, 1
      %p65 = scmp.eq.s32.totalorder %s13, 1
      %p66 = scmp.ne.s32.totalorder %s61, %s63
      %p67 = scmp.eq.s32.totalorder %s13, 0
      %p68 = por %p66, %p67
      %p69 = scmp.ne.s32.totalorder %s61, %s63
      %p70 = scmp.eq.s32.totalorder %s18, 1
      %p71 = por %p69, %p70
      %p72 = scmp.ne.s32.totalorder %s63, %s64
      %p73 = scmp.eq.s32.totalorder %s18, 0
      %p74 = por %p72, %p73
      %p75 = scmp.ne.s32.totalorder %s63, %s64
      %p76 = scmp.eq.s32.totalorder %s19, 1
      %p77 = por %p75, %p76
      %p79 = scmp.ne.s32.totalorder %s64, %s78
      %p80 = scmp.eq.s32.totalorder %s19, 0
      %p81 = por %p79, %p80
      %s83 = sadd.s32 %s82, 1
      %p86 = scmp.eq.s32.totalorder %s13, 1
      %p87 = scmp.ne.s32.totalorder %s82, %s84
      %p88 = scmp.eq.s32.totalorder %s13, 0
      %p89 = por %p87, %p88
      %p90 = scmp.ne.s32.totalorder %s82, %s84
      %p91 = scmp.eq.s32.totalorder %s18, 1
      %p92 = por %p90, %p91
      %p93 = scmp.ne.s32.totalorder %s84, %s85
      %p94 = scmp.eq.s32.totalorder %s18, 0
      %p95 = por %p93, %p94
      %p96 = scmp.ne.s32.totalorder %s84, %s85
      %p97 = scmp.eq.s32.totalorder %s19, 1
      %p98 = por %p96, %p97
      %p100 = scmp.ne.s32.totalorder %s85, %s99
      %p101 = scmp.eq.s32.totalorder %s19, 0
      %p102 = por %p100, %p101
      %s104 = sadd.s32 %s103, 1
      %p107 = scmp.eq.s32.totalorder %s13, 1
      %p108 = scmp.ne.s32.totalorder %s103, %s105
      %p109 = scmp.eq.s32.totalorder %s13, 0
      %p110 = por %p108, %p109
      %p111 = scmp.ne.s32.totalorder %s103, %s105
      %p112 = scmp.eq.s32.totalorder %s18, 1
      %p113 = por %p111, %p112
      %p114 = scmp.ne.s32.totalorder %s105, %s106
      %p115 = scmp.eq.s32.totalorder %s18, 0
      %p116 = por %p114, %p115
      %p117 = scmp.ne.s32.totalorder %s105, %s106
      %p118 = scmp.eq.s32.totalorder %s19, 1
      %p119 = por %p117, %p118
      %p121 = scmp.ne.s32.totalorder %s106, %s120
      %p122 = scmp.eq.s32.totalorder %s19, 0
      %p123 = por %p121, %p122
      %s124 = ssub.s32 %s20, %s32
      %s125 = ssub.s32 %s21, %s28
      %s126 = sor.u32 %s124, %s125
      %p127 = scmp.eq.s32.totalorder %s126, 0
      %s129 = sadd.s32 %s128, 1
      %s130 = scalar_select %p127, %s128, %s129
      %p133 = pneg %p127
      %p134 = scmp.eq.s32.totalorder %s13, 1
      %p135 = por %p133, %p134
      %p136 = scmp.ne.s32.totalorder %s128, %s131
      %p137 = scmp.eq.s32.totalorder %s13, 0
      %p138 = por %p136, %p137
      %p139 = scmp.ne.s32.totalorder %s128, %s131
      %p140 = scmp.eq.s32.totalorder %s18, 1
      %p141 = por %p139, %p140
      %p142 = scmp.ne.s32.totalorder %s131, %s132
      %p143 = scmp.eq.s32.totalorder %s18, 0
      %p144 = por %p142, %p143
      %p145 = scmp.ne.s32.totalorder %s131, %s132
      %p146 = scmp.eq.s32.totalorder %s19, 1
      %p147 = por %p145, %p146
      %p149 = scmp.ne.s32.totalorder %s132, %s148
      %p150 = scmp.eq.s32.totalorder %s19, 0
      %p151 = por %p149, %p150
      %p152 = scmp.le.s32.totalorder 1, %s13
      %p153 = scmp.lt.s32.totalorder %s13, 3
      %p154 = pnand %p152, %p153
      %p155 = pneg %p154
      // Predicated region
      $region9: #{tpu_custom_call.1} parent=5 // pred_check
        _
      $region10: #{tpu_custom_call.1} parent=5 // pred_check_branch
        %157 = sbr.rel (%p154) target = $region12
      $region11: #{tpu_custom_call.1} parent=5 // pred_region
        %s158 = ssub.s32 %s13, 1
        // Predicated region
        $region13: #{tpu_custom_call.1} parent=11 // pred_check
          %p159 = pneg %p74
        $region14: #{tpu_custom_call.1} parent=11 // pred_check_branch
          %161 = sbr.rel (%p159) target = $region16
        $region15: #{tpu_custom_call.1} parent=11 // pred_region
          _
        $region16: #{tpu_custom_call.1} parent=11 // pred_fallthru
          _
        // Predicated region
        $region17: #{tpu_custom_call.1} parent=11 // pred_check
          %p162 = pneg %p95
        $region18: #{tpu_custom_call.1} parent=11 // pred_check_branch
          %164 = sbr.rel (%p162) target = $region20
        $region19: #{tpu_custom_call.1} parent=11 // pred_region
          _
        $region20: #{tpu_custom_call.1} parent=11 // pred_fallthru
          _
        // Predicated region
        $region21: #{tpu_custom_call.1} parent=11 // pred_check
          %p165 = pneg %p116
        $region22: #{tpu_custom_call.1} parent=11 // pred_check_branch
          %167 = sbr.rel (%p165) target = $region24
        $region23: #{tpu_custom_call.1} parent=11 // pred_region
          _
        $region24: #{tpu_custom_call.1} parent=11 // pred_fallthru
          _
      $region12: #{tpu_custom_call.1} parent=5 // pred_fallthru
        _
      %p168 = scmp.lt.s32.totalorder %s13, 2
      // Predicated region
      $region25: #{tpu_custom_call.1} parent=5 // pred_check
        %p169 = pneg %p168
      $region26: #{tpu_custom_call.1} parent=5 // pred_check_branch
        %171 = sbr.rel (%p169) target = $region28
      $region27: #{tpu_custom_call.1} parent=5 // pred_region
        // Predicated region
        $region29: #{tpu_custom_call.1} parent=27 // pred_check
          %p172 = pneg %p47
        $region30: #{tpu_custom_call.1} parent=27 // pred_check_branch
          %174 = sbr.rel (%p172) target = $region32
        $region31: #{tpu_custom_call.1} parent=27 // pred_region
          %s175 = smul.u32 8, %s21
          %p176 = scmp.lt.s32.totalorder %s20, 0
          %s177 = scalar_select %p176, %s20, 0
          %p178 = scmp.lt.s32.totalorder %s175, 15
          %s179 = scalar_select %p178, %s175, 15
          %s180 = smul.addr %s177, 16
          %s181 = sadd.s32 %s179, %s180
          %s182 = smul.addr %s181, 8
          %s183 = scalar_lea.vmem %s0, %s182
          %s184 = smul.u32 8, %s21
        $region32: #{tpu_custom_call.1} parent=27 // pred_fallthru
          _
      $region28: #{tpu_custom_call.1} parent=5 // pred_fallthru
        _
      %p185 = scmp.le.s32.totalorder 1, %s13
      %p186 = scmp.lt.s32.totalorder %s13, 3
      %p187 = pnand %p185, %p186
      %p188 = pneg %p187
      // Predicated region
      $region33: #{tpu_custom_call.1} parent=5 // pred_check
        _
      $region34: #{tpu_custom_call.1} parent=5 // pred_check_branch
        %190 = sbr.rel (%p187) target = $region36
      $region35: #{tpu_custom_call.1} parent=5 // pred_region
        %s191 = ssub.s32 %s13, 1
        %s192 = smul.u32 8, %s23
        %p193 = scmp.lt.s32.totalorder %s22, 0
        %s194 = scalar_select %p193, %s22, 0
        %p195 = scmp.lt.s32.totalorder %s192, 15
        %s196 = scalar_select %p195, %s192, 15
        %s197 = smul.addr %s194, 16
        %s198 = sadd.s32 %s196, %s197
        %s199 = smul.addr %s198, 8
        %s200 = scalar_lea.vmem %s0, %s199
        %p201 = pneg %p53
        %p202 = pneg %p50
        %p203 = pneg %p74
        %p204 = pneg %p71
        %p205 = pneg %p95
        %p206 = pneg %p92
        %p207 = pneg %p116
        %p208 = pneg %p113
        %p209 = pneg %p144
        %p210 = pneg %p141
        %s211 = sand.u32 %s131, 1
        %s212 = scalar_lea.sflag [#allocation7], %s211
        %s213 = sand.u32 %s131, 1
        %s214 = smul.addr %s213, 64
        %s215 = scalar_lea.vmem [#allocation6], %s214
        %s216 = smul.u32 8, %s23
        %p217 = scmp.lt.s32.totalorder %s22, 0
        %s218 = scalar_select %p217, %s22, 0
        %p219 = scmp.lt.s32.totalorder %s216, 15
        %s220 = scalar_select %p219, %s216, 15
        %s221 = smul.addr %s218, 16
        %s222 = sadd.s32 %s220, %s221
        %s223 = smul.addr %s222, 8
        %s224 = scalar_lea.vmem %s0, %s223
        %s225 = smul.u32 8, %s23
        %s226 = smul.u32 8, %s22
        %p227 = scmp.eq.s32.totalorder %s23, 0
        // Predicated region
        $region37: #{tpu_custom_call.1} parent=35 // pred_check
          %p228 = pneg %p227
        $region38: #{tpu_custom_call.1} parent=35 // pred_check_branch
          %230 = sbr.rel (%p228) target = $region40
        $region39: #{tpu_custom_call.1} parent=35 // pred_region
          %vm231 = vcmask 261120
          %232 = vst.msk [vmem:[#allocation2] sm:$0xff] %vm231, 0.0
          %233 = vst.msk [vmem:[#allocation3] sm:$0xff] %vm231, 0.0
        $region40: #{tpu_custom_call.1} parent=35 // pred_fallthru
          _
        %v234 = vld [vmem:[%s224] sm:$0xff]
        %v235 = vld [vmem:[%s224 + $0x8] sm:$0xff]
        %v236 = vld [vmem:[%s224 + $0x10] sm:$0xff]
        %v237 = vld [vmem:[%s224 + $0x18] sm:$0xff]
        %v238 = vld [vmem:[%s224 + $0x20] sm:$0xff]
        %v239 = vld [vmem:[%s224 + $0x28] sm:$0xff]
        %v240 = vld [vmem:[%s224 + $0x30] sm:$0xff]
        %v241 = vld [vmem:[%s224 + $0x38] sm:$0xff]
        %v242 = vld [vmem:[%s1] sm:$0xff]
        %v243 = vld [vmem:[%s1 + $0x8] sm:$0xff]
        %v244 = vld [vmem:[%s2] sm:$0x1]
        %v246 = vlaneseq
        %v247 = vshrl.u32 %v246, 7
        %v248 = vsub.s32 0, %v247
        %v249 = vrot.slane %v244, %v248
        %vm251 = vcmask 130048
        %v253 = vsel %vm251, %v234, 0
        %v256 = vsel %vm251, %v235, 0
        %v259 = vsel %vm251, %v236, 0
        %v262 = vsel %vm251, %v237, 0
        %v265 = vsel %vm251, %v238, 0
        %v268 = vsel %vm251, %v239, 0
        %v271 = vsel %vm251, %v240, 0
        %v274 = vsel %vm251, %v241, 0
        %276 = vmatprep.subr.mxu0 0.0
        %277 = vmatpush1.msra.mxu0 0.0
        %278 = vmatprep.subr.mxu0 0.0
        %279 = vmatpush1.msra.mxu0 0.0
        %280 = vmatprep.subr.mxu0 0.0
        %281 = vmatpush1.msra.mxu0 0.0
        %282 = vmatprep.subr.mxu0 0.0
        %283 = vmatpush1.msra.mxu0 0.0
        %284 = vmatprep.subr.mxu0 0.0
        %285 = vmatpush1.msra.mxu0 0.0
        %286 = vmatprep.subr.mxu0 0.0
        %287 = vmatpush1.msra.mxu0 0.0
        %288 = vmatprep.subr.mxu0 0.0
        %289 = vmatpush1.msra.mxu0 0.0
        %290 = vmatprep.subr.mxu0 0.0
        %291 = vmatpush1.msra.mxu0 0.0
        %292 = vmatprep.subr.mxu0 0.0
        %293 = vmatpush1.msra.mxu0 0.0
        %294 = vmatprep.subr.mxu0 0.0
        %295 = vmatpush1.msra.mxu0 0.0
        %296 = vmatprep.subr.mxu0 0.0
        %297 = vmatpush1.msra.mxu0 0.0
        %298 = vmatprep.subr.mxu0 0.0
        %299 = vmatpush1.msra.mxu0 0.0
        %300 = vmatprep.subr.mxu0 0.0
        %301 = vmatpush1.msra.mxu0 0.0
        %302 = vmatprep.subr.mxu0 0.0
        %303 = vmatpush1.msra.mxu0 0.0
        %304 = vmatprep.subr.mxu0 0.0
        %305 = vmatpush1.msra.mxu0 %v243
        %306 = vmatprep.subr.mxu0 0.0
        %307 = vmatpush1.msra.mxu0 %v242
        %308 = vmatprep.subr.mxu0 0.0
        %309 = vmatpush2.msra.mxu0 0.0
        %310 = vmatprep.subr.mxu0 0.0
        %311 = vmatpush2.msra.mxu0 0.0
        %312 = vmatprep.subr.mxu0 0.0
        %313 = vmatpush2.msra.mxu0 0.0
        %314 = vmatprep.subr.mxu0 0.0
        %315 = vmatpush2.msra.mxu0 0.0
        %316 = vmatprep.subr.mxu0 0.0
        %317 = vmatpush2.msra.mxu0 0.0
        %318 = vmatprep.subr.mxu0 0.0
        %319 = vmatpush2.msra.mxu0 0.0
        %320 = vmatprep.subr.mxu0 0.0
        %321 = vmatpush2.msra.mxu0 0.0
        %322 = vmatprep.subr.mxu0 0.0
        %323 = vmatpush2.msra.mxu0 0.0
        %324 = vmatprep.subr.mxu0 0.0
        %325 = vmatpush2.msra.mxu0 0.0
        %326 = vmatprep.subr.mxu0 0.0
        %327 = vmatpush2.msra.mxu0 0.0
        %328 = vmatprep.subr.mxu0 0.0
        %329 = vmatpush2.msra.mxu0 0.0
        %330 = vmatprep.subr.mxu0 0.0
        %331 = vmatpush2.msra.mxu0 0.0
        %332 = vmatprep.subr.mxu0 0.0
        %333 = vmatpush2.msra.mxu0 0.0
        %334 = vmatprep.subr.mxu0 0.0
        %335 = vmatpush2.msra.mxu0 0.0
        %336 = vmatprep.subr.mxu0 0.0
        %337 = vmatpush2.msra.mxu0 0.0
        %338 = vmatprep.subr.mxu0 0.0
        %339 = vmatpush2.msra.mxu0 0.0
        %340 = vmatprep.mubr.f32.mxu0 0.0
        %341 = vmatmul.mubr.f32.gmra.mxu0 %v253
        %v342 = vpop.f32.mrf.mxu0
        %v343 = vadd.f32 %v249, %v342
        %v344 = vpop.f32.mrf.mxu0
        %345 = vmatprep.mubr.f32.mxu0 0.0
        %346 = vmatmul.mubr.f32.gmra.mxu0 %v256
        %v347 = vpop.f32.mrf.mxu0
        %v348 = vadd.f32 %v249, %v347
        %v349 = vpop.f32.mrf.mxu0
        %350 = vmatprep.mubr.f32.mxu0 0.0
        %351 = vmatmul.mubr.f32.gmra.mxu0 %v259
        %v352 = vpop.f32.mrf.mxu0
        %v353 = vadd.f32 %v249, %v352
        %v354 = vpop.f32.mrf.mxu0
        %355 = vmatprep.mubr.f32.mxu0 0.0
        %356 = vmatmul.mubr.f32.gmra.mxu0 %v262
        %v357 = vpop.f32.mrf.mxu0
        %v358 = vadd.f32 %v249, %v357
        %v359 = vpop.f32.mrf.mxu0
        %360 = vmatprep.mubr.f32.mxu0 0.0
        %361 = vmatmul.mubr.f32.gmra.mxu0 %v265
        %v362 = vpop.f32.mrf.mxu0
        %v363 = vadd.f32 %v249, %v362
        %v364 = vpop.f32.mrf.mxu0
        %365 = vmatprep.mubr.f32.mxu0 0.0
        %366 = vmatmul.mubr.f32.gmra.mxu0 %v268
        %v367 = vpop.f32.mrf.mxu0
        %v368 = vadd.f32 %v249, %v367
        %v369 = vpop.f32.mrf.mxu0
        %370 = vmatprep.mubr.f32.mxu0 0.0
        %371 = vmatmul.mubr.f32.gmra.mxu0 %v271
        %v372 = vpop.f32.mrf.mxu0
        %v373 = vadd.f32 %v249, %v372
        %v374 = vpop.f32.mrf.mxu0
        %375 = vmatprep.mubr.f32.mxu0 0.0
        %376 = vmatmul.mubr.f32.gmra.mxu0 %v274
        %v377 = vpop.f32.mrf.mxu0
        %v378 = vadd.f32 %v249, %v377
        %v379 = vpop.f32.mrf.mxu0
        %380 = vdwg.mxu0
        %vm381 = vcmask 785408
        %382 = vst.msk [vmem:[#allocation4] sm:$0xff] %vm381, %v343
        %383 = vst.msk [vmem:[#allocation4 + $0x8] sm:$0xff] %vm381, %v348
        %384 = vst.msk [vmem:[#allocation4 + $0x10] sm:$0xff] %vm381, %v353
        %385 = vst.msk [vmem:[#allocation4 + $0x18] sm:$0xff] %vm381, %v358
        %386 = vst.msk [vmem:[#allocation4 + $0x20] sm:$0xff] %vm381, %v363
        %387 = vst.msk [vmem:[#allocation4 + $0x28] sm:$0xff] %vm381, %v368
        %388 = vst.msk [vmem:[#allocation4 + $0x30] sm:$0xff] %vm381, %v373
        %389 = vst.msk [vmem:[#allocation4 + $0x38] sm:$0xff] %vm381, %v378
        %v390 = vld [vmem:[#allocation2] sm:$0xff]
        %v391 = vld [vmem:[#allocation3] sm:$0xff]
        %v392 = vld [vmem:[#allocation4] sm:$0xff]
        %v393 = vld [vmem:[%s3] sm:$0xff]
        %v394 = vld [vmem:[%s3 + $0x8] sm:$0xff]
        %v395 = vld [vmem:[%s3 + $0x10] sm:$0xff]
        %v396 = vld [vmem:[%s3 + $0x18] sm:$0xff]
        %vm397 = vcmask 261120
        %v399 = vsel %vm397, %v390, 0
        %401 = vmatprep.subr.mxu0 0.0
        %402 = vmatpush1.msra.mxu0 0.0
        %403 = vmatprep.subr.mxu0 0.0
        %404 = vmatpush1.msra.mxu0 0.0
        %405 = vmatprep.subr.mxu0 0.0
        %406 = vmatpush1.msra.mxu0 0.0
        %407 = vmatprep.subr.mxu0 0.0
        %408 = vmatpush1.msra.mxu0 0.0
        %409 = vmatprep.subr.mxu0 0.0
        %410 = vmatpush1.msra.mxu0 0.0
        %411 = vmatprep.subr.mxu0 0.0
        %412 = vmatpush1.msra.mxu0 0.0
        %413 = vmatprep.subr.mxu0 0.0
        %414 = vmatpush1.msra.mxu0 0.0
        %415 = vmatprep.subr.mxu0 0.0
        %416 = vmatpush1.msra.mxu0 0.0
        %417 = vmatprep.subr.mxu0 0.0
        %418 = vmatpush1.msra.mxu0 0.0
        %419 = vmatprep.subr.mxu0 0.0
        %420 = vmatpush1.msra.mxu0 0.0
        %421 = vmatprep.subr.mxu0 0.0
        %422 = vmatpush1.msra.mxu0 0.0
        %423 = vmatprep.subr.mxu0 0.0
        %424 = vmatpush1.msra.mxu0 0.0
        %425 = vmatprep.subr.mxu0 0.0
        %426 = vmatpush1.msra.mxu0 %v396
        %427 = vmatprep.subr.mxu0 0.0
        %428 = vmatpush1.msra.mxu0 %v395
        %429 = vmatprep.subr.mxu0 0.0
        %430 = vmatpush1.msra.mxu0 %v394
        %431 = vmatprep.subr.mxu0 0.0
        %432 = vmatpush1.msra.mxu0 %v393
        %433 = vmatprep.subr.mxu0 0.0
        %434 = vmatpush2.msra.mxu0 0.0
        %435 = vmatprep.subr.mxu0 0.0
        %436 = vmatpush2.msra.mxu0 0.0
        %437 = vmatprep.subr.mxu0 0.0
        %438 = vmatpush2.msra.mxu0 0.0
        %439 = vmatprep.subr.mxu0 0.0
        %440 = vmatpush2.msra.mxu0 0.0
        %441 = vmatprep.subr.mxu0 0.0
        %442 = vmatpush2.msra.mxu0 0.0
        %443 = vmatprep.subr.mxu0 0.0
        %444 = vmatpush2.msra.mxu0 0.0
        %445 = vmatprep.subr.mxu0 0.0
        %446 = vmatpush2.msra.mxu0 0.0
        %447 = vmatprep.subr.mxu0 0.0
        %448 = vmatpush2.msra.mxu0 0.0
        %449 = vmatprep.subr.mxu0 0.0
        %450 = vmatpush2.msra.mxu0 0.0
        %451 = vmatprep.subr.mxu0 0.0
        %452 = vmatpush2.msra.mxu0 0.0
        %453 = vmatprep.subr.mxu0 0.0
        %454 = vmatpush2.msra.mxu0 0.0
        %455 = vmatprep.subr.mxu0 0.0
        %456 = vmatpush2.msra.mxu0 0.0
        %457 = vmatprep.subr.mxu0 0.0
        %458 = vmatpush2.msra.mxu0 0.0
        %459 = vmatprep.subr.mxu0 0.0
        %460 = vmatpush2.msra.mxu0 0.0
        %461 = vmatprep.subr.mxu0 0.0
        %462 = vmatpush2.msra.mxu0 0.0
        %463 = vmatprep.subr.mxu0 0.0
        %464 = vmatpush2.msra.mxu0 0.0
        %465 = vmatprep.mubr.f32.mxu0 0.0
        %466 = vmatmul.mubr.f32.gmra.mxu0 %v399
        %v467 = vpop.f32.mrf.mxu0
        %v468 = vadd.f32 0.0, %v467
        %v469 = vpop.f32.mrf.mxu0
        %470 = vdwg.mxu0
        %v471 = vadd.f32 %v392, %v468
        %v472 = vxor.u32 %v471, 2147483648
        %v473 = vmul.f32 %v472, 1.442695
        %v474 = vpow.pop %v473
        %v475 = vadd.f32 %v474, 1.0
        %v476 = vrcp.pop %v475
        %v477 = vmul.f32 1.0, %v476
        %v478 = vtanh.pop %v471
        %v479 = vmul.f32 %v390, %v391
        %481 = vrot.lane.b32.xlu0 %v478, 96
        %v482 = vpop.permute.xlu0 %481
        %v484 = vmul.f32 %v477, %v482
        %v485 = vadd.f32 %v479, %v484
        %v486 = vtanh.pop %v485
        %488 = vrot.lane.b32.xlu0 %v486, 64
        %v489 = vpop.permute.xlu0 %488
        %v491 = vmul.f32 %v477, %v489
        %493 = vrot.lane.b32.xlu0 %v491, 64
        %v494 = vpop.permute.xlu0 %493
        %496 = vst.msk [vmem:[#allocation5] sm:$0xff] %vm397, %v494
        %s497 = scalar_lea.vmem [#allocation4], 8
        %v498 = vld [vmem:[%s497] sm:$0xff]
        %v499 = vld [vmem:[%s3] sm:$0xff]
        %v500 = vld [vmem:[%s3 + $0x8] sm:$0xff]
        %v501 = vld [vmem:[%s3 + $0x10] sm:$0xff]
        %v502 = vld [vmem:[%s3 + $0x18] sm:$0xff]
        %v503 = vsel %vm397, %v494, 0
        %505 = vmatprep.subr.mxu0 0.0
        %506 = vmatpush1.msra.mxu0 0.0
        %507 = vmatprep.subr.mxu0 0.0
        %508 = vmatpush1.msra.mxu0 0.0
        %509 = vmatprep.subr.mxu0 0.0
        %510 = vmatpush1.msra.mxu0 0.0
        %511 = vmatprep.subr.mxu0 0.0
        %512 = vmatpush1.msra.mxu0 0.0
        %513 = vmatprep.subr.mxu0 0.0
        %514 = vmatpush1.msra.mxu0 0.0
        %515 = vmatprep.subr.mxu0 0.0
        %516 = vmatpush1.msra.mxu0 0.0
        %517 = vmatprep.subr.mxu0 0.0
        %518 = vmatpush1.msra.mxu0 0.0
        %519 = vmatprep.subr.mxu0 0.0
        %520 = vmatpush1.msra.mxu0 0.0
        %521 = vmatprep.subr.mxu0 0.0
        %522 = vmatpush1.msra.mxu0 0.0
        %523 = vmatprep.subr.mxu0 0.0
        %524 = vmatpush1.msra.mxu0 0.0
        %525 = vmatprep.subr.mxu0 0.0
        %526 = vmatpush1.msra.mxu0 0.0
        %527 = vmatprep.subr.mxu0 0.0
        %528 = vmatpush1.msra.mxu0 0.0
        %529 = vmatprep.subr.mxu0 0.0
        %530 = vmatpush1.msra.mxu0 %v502
        %531 = vmatprep.subr.mxu0 0.0
        %532 = vmatpush1.msra.mxu0 %v501
        %533 = vmatprep.subr.mxu0 0.0
        %534 = vmatpush1.msra.mxu0 %v500
        %535 = vmatprep.subr.mxu0 0.0
        %536 = vmatpush1.msra.mxu0 %v499
        %537 = vmatprep.subr.mxu0 0.0
        %538 = vmatpush2.msra.mxu0 0.0
        %539 = vmatprep.subr.mxu0 0.0
        %540 = vmatpush2.msra.mxu0 0.0
        %541 = vmatprep.subr.mxu0 0.0
        %542 = vmatpush2.msra.mxu0 0.0
        %543 = vmatprep.subr.mxu0 0.0
        %544 = vmatpush2.msra.mxu0 0.0
        %545 = vmatprep.subr.mxu0 0.0
        %546 = vmatpush2.msra.mxu0 0.0
        %547 = vmatprep.subr.mxu0 0.0
        %548 = vmatpush2.msra.mxu0 0.0
        %549 = vmatprep.subr.mxu0 0.0
        %550 = vmatpush2.msra.mxu0 0.0
        %551 = vmatprep.subr.mxu0 0.0
        %552 = vmatpush2.msra.mxu0 0.0
        %553 = vmatprep.subr.mxu0 0.0
        %554 = vmatpush2.msra.mxu0 0.0
        %555 = vmatprep.subr.mxu0 0.0
        %556 = vmatpush2.msra.mxu0 0.0
        %557 = vmatprep.subr.mxu0 0.0
        %558 = vmatpush2.msra.mxu0 0.0
        %559 = vmatprep.subr.mxu0 0.0
        %560 = vmatpush2.msra.mxu0 0.0
        %561 = vmatprep.subr.mxu0 0.0
        %562 = vmatpush2.msra.mxu0 0.0
        %563 = vmatprep.subr.mxu0 0.0
        %564 = vmatpush2.msra.mxu0 0.0
        %565 = vmatprep.subr.mxu0 0.0
        %566 = vmatpush2.msra.mxu0 0.0
        %567 = vmatprep.subr.mxu0 0.0
        %568 = vmatpush2.msra.mxu0 0.0
        %569 = vmatprep.mubr.f32.mxu0 0.0
        %570 = vmatmul.mubr.f32.gmra.mxu0 %v503
        %v571 = vpop.f32.mrf.mxu0
        %v572 = vadd.f32 0.0, %v571
        %v573 = vpop.f32.mrf.mxu0
        %574 = vdwg.mxu0
        %v575 = vadd.f32 %v498, %v572
        %v576 = vxor.u32 %v575, 2147483648
        %v577 = vmul.f32 %v576, 1.442695
        %v578 = vpow.pop %v577
        %v579 = vadd.f32 %v578, 1.0
        %v580 = vrcp.pop %v579
        %v581 = vmul.f32 1.0, %v580
        %v582 = vtanh.pop %v575
        %584 = vrot.lane.b32.xlu0 %v485, 64
        %v585 = vpop.permute.xlu0 %584
        %v587 = vmul.f32 %v491, %v585
        %589 = vrot.lane.b32.xlu0 %v582, 96
        %v590 = vpop.permute.xlu0 %589
        %v592 = vmul.f32 %v581, %v590
        %594 = vrot.lane.b32.xlu0 %v592, 64
        %v595 = vpop.permute.xlu0 %594
        %v597 = vadd.f32 %v587, %v595
        %v598 = vtanh.pop %v597
        %v599 = vmul.f32 %v581, %v598
        %601 = vrot.lane.b32.xlu0 %v599, 64
        %v602 = vpop.permute.xlu0 %601
        %s604 = scalar_lea.vmem [#allocation5], 8
        %605 = vst.msk [vmem:[%s604] sm:$0xff] %vm397, %v602
        %s606 = scalar_lea.vmem [#allocation4], 16
        %v607 = vld [vmem:[%s606] sm:$0xff]
        %v608 = vld [vmem:[%s3] sm:$0xff]
        %v609 = vld [vmem:[%s3 + $0x8] sm:$0xff]
        %v610 = vld [vmem:[%s3 + $0x10] sm:$0xff]
        %v611 = vld [vmem:[%s3 + $0x18] sm:$0xff]
        %v612 = vsel %vm397, %v602, 0
        %614 = vmatprep.subr.mxu0 0.0
        %615 = vmatpush1.msra.mxu0 0.0
        %616 = vmatprep.subr.mxu0 0.0
        %617 = vmatpush1.msra.mxu0 0.0
        %618 = vmatprep.subr.mxu0 0.0
        %619 = vmatpush1.msra.mxu0 0.0
        %620 = vmatprep.subr.mxu0 0.0
        %621 = vmatpush1.msra.mxu0 0.0
        %622 = vmatprep.subr.mxu0 0.0
        %623 = vmatpush1.msra.mxu0 0.0
        %624 = vmatprep.subr.mxu0 0.0
        %625 = vmatpush1.msra.mxu0 0.0
        %626 = vmatprep.subr.mxu0 0.0
        %627 = vmatpush1.msra.mxu0 0.0
        %628 = vmatprep.subr.mxu0 0.0
        %629 = vmatpush1.msra.mxu0 0.0
        %630 = vmatprep.subr.mxu0 0.0
        %631 = vmatpush1.msra.mxu0 0.0
        %632 = vmatprep.subr.mxu0 0.0
        %633 = vmatpush1.msra.mxu0 0.0
        %634 = vmatprep.subr.mxu0 0.0
        %635 = vmatpush1.msra.mxu0 0.0
        %636 = vmatprep.subr.mxu0 0.0
        %637 = vmatpush1.msra.mxu0 0.0
        %638 = vmatprep.subr.mxu0 0.0
        %639 = vmatpush1.msra.mxu0 %v611
        %640 = vmatprep.subr.mxu0 0.0
        %641 = vmatpush1.msra.mxu0 %v610
        %642 = vmatprep.subr.mxu0 0.0
        %643 = vmatpush1.msra.mxu0 %v609
        %644 = vmatprep.subr.mxu0 0.0
        %645 = vmatpush1.msra.mxu0 %v608
        %646 = vmatprep.subr.mxu0 0.0
        %647 = vmatpush2.msra.mxu0 0.0
        %648 = vmatprep.subr.mxu0 0.0
        %649 = vmatpush2.msra.mxu0 0.0
        %650 = vmatprep.subr.mxu0 0.0
        %651 = vmatpush2.msra.mxu0 0.0
        %652 = vmatprep.subr.mxu0 0.0
        %653 = vmatpush2.msra.mxu0 0.0
        %654 = vmatprep.subr.mxu0 0.0
        %655 = vmatpush2.msra.mxu0 0.0
        %656 = vmatprep.subr.mxu0 0.0
        %657 = vmatpush2.msra.mxu0 0.0
        %658 = vmatprep.subr.mxu0 0.0
        %659 = vmatpush2.msra.mxu0 0.0
        %660 = vmatprep.subr.mxu0 0.0
        %661 = vmatpush2.msra.mxu0 0.0
        %662 = vmatprep.subr.mxu0 0.0
        %663 = vmatpush2.msra.mxu0 0.0
        %664 = vmatprep.subr.mxu0 0.0
        %665 = vmatpush2.msra.mxu0 0.0
        %666 = vmatprep.subr.mxu0 0.0
        %667 = vmatpush2.msra.mxu0 0.0
        %668 = vmatprep.subr.mxu0 0.0
        %669 = vmatpush2.msra.mxu0 0.0
        %670 = vmatprep.subr.mxu0 0.0
        %671 = vmatpush2.msra.mxu0 0.0
        %672 = vmatprep.subr.mxu0 0.0
        %673 = vmatpush2.msra.mxu0 0.0
        %674 = vmatprep.subr.mxu0 0.0
        %675 = vmatpush2.msra.mxu0 0.0
        %676 = vmatprep.subr.mxu0 0.0
        %677 = vmatpush2.msra.mxu0 0.0
        %678 = vmatprep.mubr.f32.mxu0 0.0
        %679 = vmatmul.mubr.f32.gmra.mxu0 %v612
        %v680 = vpop.f32.mrf.mxu0
        %v681 = vadd.f32 0.0, %v680
        %v682 = vpop.f32.mrf.mxu0
        %683 = vdwg.mxu0
        %v684 = vadd.f32 %v607, %v681
        %v685 = vxor.u32 %v684, 2147483648
        %v686 = vmul.f32 %v685, 1.442695
        %v687 = vpow.pop %v686
        %v688 = vadd.f32 %v687, 1.0
        %v689 = vrcp.pop %v688
        %v690 = vmul.f32 1.0, %v689
        %v691 = vtanh.pop %v684
        %v692 = vmul.f32 %v599, %v597
        %694 = vrot.lane.b32.xlu0 %v691, 96
        %v695 = vpop.permute.xlu0 %694
        %v697 = vmul.f32 %v690, %v695
        %699 = vrot.lane.b32.xlu0 %v697, 64
        %v700 = vpop.permute.xlu0 %699
        %v702 = vadd.f32 %v692, %v700
        %v703 = vtanh.pop %v702
        %v704 = vmul.f32 %v690, %v703
        %706 = vrot.lane.b32.xlu0 %v704, 64
        %v707 = vpop.permute.xlu0 %706
        %s709 = scalar_lea.vmem [#allocation5], 16
        %710 = vst.msk [vmem:[%s709] sm:$0xff] %vm397, %v707
        %s711 = scalar_lea.vmem [#allocation4], 24
        %v712 = vld [vmem:[%s711] sm:$0xff]
        %v713 = vld [vmem:[%s3] sm:$0xff]
        %v714 = vld [vmem:[%s3 + $0x8] sm:$0xff]
        %v715 = vld [vmem:[%s3 + $0x10] sm:$0xff]
        %v716 = vld [vmem:[%s3 + $0x18] sm:$0xff]
        %v717 = vsel %vm397, %v707, 0
        %719 = vmatprep.subr.mxu0 0.0
        %720 = vmatpush1.msra.mxu0 0.0
        %721 = vmatprep.subr.mxu0 0.0
        %722 = vmatpush1.msra.mxu0 0.0
        %723 = vmatprep.subr.mxu0 0.0
        %724 = vmatpush1.msra.mxu0 0.0
        %725 = vmatprep.subr.mxu0 0.0
        %726 = vmatpush1.msra.mxu0 0.0
        %727 = vmatprep.subr.mxu0 0.0
        %728 = vmatpush1.msra.mxu0 0.0
        %729 = vmatprep.subr.mxu0 0.0
        %730 = vmatpush1.msra.mxu0 0.0
        %731 = vmatprep.subr.mxu0 0.0
        %732 = vmatpush1.msra.mxu0 0.0
        %733 = vmatprep.subr.mxu0 0.0
        %734 = vmatpush1.msra.mxu0 0.0
        %735 = vmatprep.subr.mxu0 0.0
        %736 = vmatpush1.msra.mxu0 0.0
        %737 = vmatprep.subr.mxu0 0.0
        %738 = vmatpush1.msra.mxu0 0.0
        %739 = vmatprep.subr.mxu0 0.0
        %740 = vmatpush1.msra.mxu0 0.0
        %741 = vmatprep.subr.mxu0 0.0
        %742 = vmatpush1.msra.mxu0 0.0
        %743 = vmatprep.subr.mxu0 0.0
        %744 = vmatpush1.msra.mxu0 %v716
        %745 = vmatprep.subr.mxu0 0.0
        %746 = vmatpush1.msra.mxu0 %v715
        %747 = vmatprep.subr.mxu0 0.0
        %748 = vmatpush1.msra.mxu0 %v714
        %749 = vmatprep.subr.mxu0 0.0
        %750 = vmatpush1.msra.mxu0 %v713
        %751 = vmatprep.subr.mxu0 0.0
        %752 = vmatpush2.msra.mxu0 0.0
        %753 = vmatprep.subr.mxu0 0.0
        %754 = vmatpush2.msra.mxu0 0.0
        %755 = vmatprep.subr.mxu0 0.0
        %756 = vmatpush2.msra.mxu0 0.0
        %757 = vmatprep.subr.mxu0 0.0
        %758 = vmatpush2.msra.mxu0 0.0
        %759 = vmatprep.subr.mxu0 0.0
        %760 = vmatpush2.msra.mxu0 0.0
        %761 = vmatprep.subr.mxu0 0.0
        %762 = vmatpush2.msra.mxu0 0.0
        %763 = vmatprep.subr.mxu0 0.0
        %764 = vmatpush2.msra.mxu0 0.0
        %765 = vmatprep.subr.mxu0 0.0
        %766 = vmatpush2.msra.mxu0 0.0
        %767 = vmatprep.subr.mxu0 0.0
        %768 = vmatpush2.msra.mxu0 0.0
        %769 = vmatprep.subr.mxu0 0.0
        %770 = vmatpush2.msra.mxu0 0.0
        %771 = vmatprep.subr.mxu0 0.0
        %772 = vmatpush2.msra.mxu0 0.0
        %773 = vmatprep.subr.mxu0 0.0
        %774 = vmatpush2.msra.mxu0 0.0
        %775 = vmatprep.subr.mxu0 0.0
        %776 = vmatpush2.msra.mxu0 0.0
        %777 = vmatprep.subr.mxu0 0.0
        %778 = vmatpush2.msra.mxu0 0.0
        %779 = vmatprep.subr.mxu0 0.0
        %780 = vmatpush2.msra.mxu0 0.0
        %781 = vmatprep.subr.mxu0 0.0
        %782 = vmatpush2.msra.mxu0 0.0
        %783 = vmatprep.mubr.f32.mxu0 0.0
        %784 = vmatmul.mubr.f32.gmra.mxu0 %v717
        %v785 = vpop.f32.mrf.mxu0
        %v786 = vadd.f32 0.0, %v785
        %v787 = vpop.f32.mrf.mxu0
        %788 = vdwg.mxu0
        %v789 = vadd.f32 %v712, %v786
        %v790 = vxor.u32 %v789, 2147483648
        %v791 = vmul.f32 %v790, 1.442695
        %v792 = vpow.pop %v791
        %v793 = vadd.f32 %v792, 1.0
        %v794 = vrcp.pop %v793
        %v795 = vmul.f32 1.0, %v794
        %v796 = vtanh.pop %v789
        %v797 = vmul.f32 %v704, %v702
        %799 = vrot.lane.b32.xlu0 %v796, 96
        %v800 = vpop.permute.xlu0 %799
        %v802 = vmul.f32 %v795, %v800
        %804 = vrot.lane.b32.xlu0 %v802, 64
        %v805 = vpop.permute.xlu0 %804
        %v807 = vadd.f32 %v797, %v805
        %v808 = vtanh.pop %v807
        %v809 = vmul.f32 %v795, %v808
        %811 = vrot.lane.b32.xlu0 %v809, 64
        %v812 = vpop.permute.xlu0 %811
        %s814 = scalar_lea.vmem [#allocation5], 24
        %815 = vst.msk [vmem:[%s814] sm:$0xff] %vm397, %v812
        %s816 = scalar_lea.vmem [#allocation4], 32
        %v817 = vld [vmem:[%s816] sm:$0xff]
        %v818 = vld [vmem:[%s3] sm:$0xff]
        %v819 = vld [vmem:[%s3 + $0x8] sm:$0xff]
        %v820 = vld [vmem:[%s3 + $0x10] sm:$0xff]
        %v821 = vld [vmem:[%s3 + $0x18] sm:$0xff]
        %v822 = vsel %vm397, %v812, 0
        %824 = vmatprep.subr.mxu0 0.0
        %825 = vmatpush1.msra.mxu0 0.0
        %826 = vmatprep.subr.mxu0 0.0
        %827 = vmatpush1.msra.mxu0 0.0
        %828 = vmatprep.subr.mxu0 0.0
        %829 = vmatpush1.msra.mxu0 0.0
        %830 = vmatprep.subr.mxu0 0.0
        %831 = vmatpush1.msra.mxu0 0.0
        %832 = vmatprep.subr.mxu0 0.0
        %833 = vmatpush1.msra.mxu0 0.0
        %834 = vmatprep.subr.mxu0 0.0
        %835 = vmatpush1.msra.mxu0 0.0
        %836 = vmatprep.subr.mxu0 0.0
        %837 = vmatpush1.msra.mxu0 0.0
        %838 = vmatprep.subr.mxu0 0.0
        %839 = vmatpush1.msra.mxu0 0.0
        %840 = vmatprep.subr.mxu0 0.0
        %841 = vmatpush1.msra.mxu0 0.0
        %842 = vmatprep.subr.mxu0 0.0
        %843 = vmatpush1.msra.mxu0 0.0
        %844 = vmatprep.subr.mxu0 0.0
        %845 = vmatpush1.msra.mxu0 0.0
        %846 = vmatprep.subr.mxu0 0.0
        %847 = vmatpush1.msra.mxu0 0.0
        %848 = vmatprep.subr.mxu0 0.0
        %849 = vmatpush1.msra.mxu0 %v821
        %850 = vmatprep.subr.mxu0 0.0
        %851 = vmatpush1.msra.mxu0 %v820
        %852 = vmatprep.subr.mxu0 0.0
        %853 = vmatpush1.msra.mxu0 %v819
        %854 = vmatprep.subr.mxu0 0.0
        %855 = vmatpush1.msra.mxu0 %v818
        %856 = vmatprep.subr.mxu0 0.0
        %857 = vmatpush2.msra.mxu0 0.0
        %858 = vmatprep.subr.mxu0 0.0
        %859 = vmatpush2.msra.mxu0 0.0
        %860 = vmatprep.subr.mxu0 0.0
        %861 = vmatpush2.msra.mxu0 0.0
        %862 = vmatprep.subr.mxu0 0.0
        %863 = vmatpush2.msra.mxu0 0.0
        %864 = vmatprep.subr.mxu0 0.0
        %865 = vmatpush2.msra.mxu0 0.0
        %866 = vmatprep.subr.mxu0 0.0
        %867 = vmatpush2.msra.mxu0 0.0
        %868 = vmatprep.subr.mxu0 0.0
        %869 = vmatpush2.msra.mxu0 0.0
        %870 = vmatprep.subr.mxu0 0.0
        %871 = vmatpush2.msra.mxu0 0.0
        %872 = vmatprep.subr.mxu0 0.0
        %873 = vmatpush2.msra.mxu0 0.0
        %874 = vmatprep.subr.mxu0 0.0
        %875 = vmatpush2.msra.mxu0 0.0
        %876 = vmatprep.subr.mxu0 0.0
        %877 = vmatpush2.msra.mxu0 0.0
        %878 = vmatprep.subr.mxu0 0.0
        %879 = vmatpush2.msra.mxu0 0.0
        %880 = vmatprep.subr.mxu0 0.0
        %881 = vmatpush2.msra.mxu0 0.0
        %882 = vmatprep.subr.mxu0 0.0
        %883 = vmatpush2.msra.mxu0 0.0
        %884 = vmatprep.subr.mxu0 0.0
        %885 = vmatpush2.msra.mxu0 0.0
        %886 = vmatprep.subr.mxu0 0.0
        %887 = vmatpush2.msra.mxu0 0.0
        %888 = vmatprep.mubr.f32.mxu0 0.0
        %889 = vmatmul.mubr.f32.gmra.mxu0 %v822
        %v890 = vpop.f32.mrf.mxu0
        %v891 = vadd.f32 0.0, %v890
        %v892 = vpop.f32.mrf.mxu0
        %893 = vdwg.mxu0
        %v894 = vadd.f32 %v817, %v891
        %v895 = vxor.u32 %v894, 2147483648
        %v896 = vmul.f32 %v895, 1.442695
        %v897 = vpow.pop %v896
        %v898 = vadd.f32 %v897, 1.0
        %v899 = vrcp.pop %v898
        %v900 = vmul.f32 1.0, %v899
        %v901 = vtanh.pop %v894
        %v902 = vmul.f32 %v809, %v807
        %904 = vrot.lane.b32.xlu0 %v901, 96
        %v905 = vpop.permute.xlu0 %904
        %v907 = vmul.f32 %v900, %v905
        %909 = vrot.lane.b32.xlu0 %v907, 64
        %v910 = vpop.permute.xlu0 %909
        %v912 = vadd.f32 %v902, %v910
        %v913 = vtanh.pop %v912
        %v914 = vmul.f32 %v900, %v913
        %916 = vrot.lane.b32.xlu0 %v914, 64
        %v917 = vpop.permute.xlu0 %916
        %s919 = scalar_lea.vmem [#allocation5], 32
        %920 = vst.msk [vmem:[%s919] sm:$0xff] %vm397, %v917
        %s921 = scalar_lea.vmem [#allocation4], 40
        %v922 = vld [vmem:[%s921] sm:$0xff]
        %v923 = vld [vmem:[%s3] sm:$0xff]
        %v924 = vld [vmem:[%s3 + $0x8] sm:$0xff]
        %v925 = vld [vmem:[%s3 + $0x10] sm:$0xff]
        %v926 = vld [vmem:[%s3 + $0x18] sm:$0xff]
        %v927 = vsel %vm397, %v917, 0
        %929 = vmatprep.subr.mxu0 0.0
        %930 = vmatpush1.msra.mxu0 0.0
        %931 = vmatprep.subr.mxu0 0.0
        %932 = vmatpush1.msra.mxu0 0.0
        %933 = vmatprep.subr.mxu0 0.0
        %934 = vmatpush1.msra.mxu0 0.0
        %935 = vmatprep.subr.mxu0 0.0
        %936 = vmatpush1.msra.mxu0 0.0
        %937 = vmatprep.subr.mxu0 0.0
        %938 = vmatpush1.msra.mxu0 0.0
        %939 = vmatprep.subr.mxu0 0.0
        %940 = vmatpush1.msra.mxu0 0.0
        %941 = vmatprep.subr.mxu0 0.0
        %942 = vmatpush1.msra.mxu0 0.0
        %943 = vmatprep.subr.mxu0 0.0
        %944 = vmatpush1.msra.mxu0 0.0
        %945 = vmatprep.subr.mxu0 0.0
        %946 = vmatpush1.msra.mxu0 0.0
        %947 = vmatprep.subr.mxu0 0.0
        %948 = vmatpush1.msra.mxu0 0.0
        %949 = vmatprep.subr.mxu0 0.0
        %950 = vmatpush1.msra.mxu0 0.0
        %951 = vmatprep.subr.mxu0 0.0
        %952 = vmatpush1.msra.mxu0 0.0
        %953 = vmatprep.subr.mxu0 0.0
        %954 = vmatpush1.msra.mxu0 %v926
        %955 = vmatprep.subr.mxu0 0.0
        %956 = vmatpush1.msra.mxu0 %v925
        %957 = vmatprep.subr.mxu0 0.0
        %958 = vmatpush1.msra.mxu0 %v924
        %959 = vmatprep.subr.mxu0 0.0
        %960 = vmatpush1.msra.mxu0 %v923
        %961 = vmatprep.subr.mxu0 0.0
        %962 = vmatpush2.msra.mxu0 0.0
        %963 = vmatprep.subr.mxu0 0.0
        %964 = vmatpush2.msra.mxu0 0.0
        %965 = vmatprep.subr.mxu0 0.0
        %966 = vmatpush2.msra.mxu0 0.0
        %967 = vmatprep.subr.mxu0 0.0
        %968 = vmatpush2.msra.mxu0 0.0
        %969 = vmatprep.subr.mxu0 0.0
        %970 = vmatpush2.msra.mxu0 0.0
        %971 = vmatprep.subr.mxu0 0.0
        %972 = vmatpush2.msra.mxu0 0.0
        %973 = vmatprep.subr.mxu0 0.0
        %974 = vmatpush2.msra.mxu0 0.0
        %975 = vmatprep.subr.mxu0 0.0
        %976 = vmatpush2.msra.mxu0 0.0
        %977 = vmatprep.subr.mxu0 0.0
        %978 = vmatpush2.msra.mxu0 0.0
        %979 = vmatprep.subr.mxu0 0.0
        %980 = vmatpush2.msra.mxu0 0.0
        %981 = vmatprep.subr.mxu0 0.0
        %982 = vmatpush2.msra.mxu0 0.0
        %983 = vmatprep.subr.mxu0 0.0
        %984 = vmatpush2.msra.mxu0 0.0
        %985 = vmatprep.subr.mxu0 0.0
        %986 = vmatpush2.msra.mxu0 0.0
        %987 = vmatprep.subr.mxu0 0.0
        %988 = vmatpush2.msra.mxu0 0.0
        %989 = vmatprep.subr.mxu0 0.0
        %990 = vmatpush2.msra.mxu0 0.0
        %991 = vmatprep.subr.mxu0 0.0
        %992 = vmatpush2.msra.mxu0 0.0
        %993 = vmatprep.mubr.f32.mxu0 0.0
        %994 = vmatmul.mubr.f32.gmra.mxu0 %v927
        %v995 = vpop.f32.mrf.mxu0
        %v996 = vadd.f32 0.0, %v995
        %v997 = vpop.f32.mrf.mxu0
        %998 = vdwg.mxu0
        %v999 = vadd.f32 %v922, %v996
        %v1000 = vxor.u32 %v999, 2147483648
        %v1001 = vmul.f32 %v1000, 1.442695
        %v1002 = vpow.pop %v1001
        %v1003 = vadd.f32 %v1002, 1.0
        %v1004 = vrcp.pop %v1003
        %v1005 = vmul.f32 1.0, %v1004
        %v1006 = vtanh.pop %v999
        %v1007 = vmul.f32 %v914, %v912
        %1009 = vrot.lane.b32.xlu0 %v1006, 96
        %v1010 = vpop.permute.xlu0 %1009
        %v1012 = vmul.f32 %v1005, %v1010
        %1014 = vrot.lane.b32.xlu0 %v1012, 64
        %v1015 = vpop.permute.xlu0 %1014
        %v1017 = vadd.f32 %v1007, %v1015
        %v1018 = vtanh.pop %v1017
        %v1019 = vmul.f32 %v1005, %v1018
        %1021 = vrot.lane.b32.xlu0 %v1019, 64
        %v1022 = vpop.permute.xlu0 %1021
        %s1024 = scalar_lea.vmem [#allocation5], 40
        %1025 = vst.msk [vmem:[%s1024] sm:$0xff] %vm397, %v1022
        %s1026 = scalar_lea.vmem [#allocation4], 48
        %v1027 = vld [vmem:[%s1026] sm:$0xff]
        %v1028 = vld [vmem:[%s3] sm:$0xff]
        %v1029 = vld [vmem:[%s3 + $0x8] sm:$0xff]
        %v1030 = vld [vmem:[%s3 + $0x10] sm:$0xff]
        %v1031 = vld [vmem:[%s3 + $0x18] sm:$0xff]
        %v1032 = vsel %vm397, %v1022, 0
        %1034 = vmatprep.subr.mxu0 0.0
        %1035 = vmatpush1.msra.mxu0 0.0
        %1036 = vmatprep.subr.mxu0 0.0
        %1037 = vmatpush1.msra.mxu0 0.0
        %1038 = vmatprep.subr.mxu0 0.0
        %1039 = vmatpush1.msra.mxu0 0.0
        %1040 = vmatprep.subr.mxu0 0.0
        %1041 = vmatpush1.msra.mxu0 0.0
        %1042 = vmatprep.subr.mxu0 0.0
        %1043 = vmatpush1.msra.mxu0 0.0
        %1044 = vmatprep.subr.mxu0 0.0
        %1045 = vmatpush1.msra.mxu0 0.0
        %1046 = vmatprep.subr.mxu0 0.0
        %1047 = vmatpush1.msra.mxu0 0.0
        %1048 = vmatprep.subr.mxu0 0.0
        %1049 = vmatpush1.msra.mxu0 0.0
        %1050 = vmatprep.subr.mxu0 0.0
        %1051 = vmatpush1.msra.mxu0 0.0
        %1052 = vmatprep.subr.mxu0 0.0
        %1053 = vmatpush1.msra.mxu0 0.0
        %1054 = vmatprep.subr.mxu0 0.0
        %1055 = vmatpush1.msra.mxu0 0.0
        %1056 = vmatprep.subr.mxu0 0.0
        %1057 = vmatpush1.msra.mxu0 0.0
        %1058 = vmatprep.subr.mxu0 0.0
        %1059 = vmatpush1.msra.mxu0 %v1031
        %1060 = vmatprep.subr.mxu0 0.0
        %1061 = vmatpush1.msra.mxu0 %v1030
        %1062 = vmatprep.subr.mxu0 0.0
        %1063 = vmatpush1.msra.mxu0 %v1029
        %1064 = vmatprep.subr.mxu0 0.0
        %1065 = vmatpush1.msra.mxu0 %v1028
        %1066 = vmatprep.subr.mxu0 0.0
        %1067 = vmatpush2.msra.mxu0 0.0
        %1068 = vmatprep.subr.mxu0 0.0
        %1069 = vmatpush2.msra.mxu0 0.0
        %1070 = vmatprep.subr.mxu0 0.0
        %1071 = vmatpush2.msra.mxu0 0.0
        %1072 = vmatprep.subr.mxu0 0.0
        %1073 = vmatpush2.msra.mxu0 0.0
        %1074 = vmatprep.subr.mxu0 0.0
        %1075 = vmatpush2.msra.mxu0 0.0
        %1076 = vmatprep.subr.mxu0 0.0
        %1077 = vmatpush2.msra.mxu0 0.0
        %1078 = vmatprep.subr.mxu0 0.0
        %1079 = vmatpush2.msra.mxu0 0.0
        %1080 = vmatprep.subr.mxu0 0.0
        %1081 = vmatpush2.msra.mxu0 0.0
        %1082 = vmatprep.subr.mxu0 0.0
        %1083 = vmatpush2.msra.mxu0 0.0
        %1084 = vmatprep.subr.mxu0 0.0
        %1085 = vmatpush2.msra.mxu0 0.0
        %1086 = vmatprep.subr.mxu0 0.0
        %1087 = vmatpush2.msra.mxu0 0.0
        %1088 = vmatprep.subr.mxu0 0.0
        %1089 = vmatpush2.msra.mxu0 0.0
        %1090 = vmatprep.subr.mxu0 0.0
        %1091 = vmatpush2.msra.mxu0 0.0
        %1092 = vmatprep.subr.mxu0 0.0
        %1093 = vmatpush2.msra.mxu0 0.0
        %1094 = vmatprep.subr.mxu0 0.0
        %1095 = vmatpush2.msra.mxu0 0.0
        %1096 = vmatprep.subr.mxu0 0.0
        %1097 = vmatpush2.msra.mxu0 0.0
        %1098 = vmatprep.mubr.f32.mxu0 0.0
        %1099 = vmatmul.mubr.f32.gmra.mxu0 %v1032
        %v1100 = vpop.f32.mrf.mxu0
        %v1101 = vadd.f32 0.0, %v1100
        %v1102 = vpop.f32.mrf.mxu0
        %1103 = vdwg.mxu0
        %v1104 = vadd.f32 %v1027, %v1101
        %v1105 = vxor.u32 %v1104, 2147483648
        %v1106 = vmul.f32 %v1105, 1.442695
        %v1107 = vpow.pop %v1106
        %v1108 = vadd.f32 %v1107, 1.0
        %v1109 = vrcp.pop %v1108
        %v1110 = vmul.f32 1.0, %v1109
        %v1111 = vtanh.pop %v1104
        %v1112 = vmul.f32 %v1019, %v1017
        %1114 = vrot.lane.b32.xlu0 %v1111, 96
        %v1115 = vpop.permute.xlu0 %1114
        %v1117 = vmul.f32 %v1110, %v1115
        %1119 = vrot.lane.b32.xlu0 %v1117, 64
        %v1120 = vpop.permute.xlu0 %1119
        %v1122 = vadd.f32 %v1112, %v1120
        %v1123 = vtanh.pop %v1122
        %v1124 = vmul.f32 %v1110, %v1123
        %1126 = vrot.lane.b32.xlu0 %v1124, 64
        %v1127 = vpop.permute.xlu0 %1126
        %s1129 = scalar_lea.vmem [#allocation5], 48
        %1130 = vst.msk [vmem:[%s1129] sm:$0xff] %vm397, %v1127
        %s1131 = scalar_lea.vmem [#allocation4], 56
        %v1132 = vld [vmem:[%s1131] sm:$0xff]
        %v1133 = vld [vmem:[%s3] sm:$0xff]
        %v1134 = vld [vmem:[%s3 + $0x8] sm:$0xff]
        %v1135 = vld [vmem:[%s3 + $0x10] sm:$0xff]
        %v1136 = vld [vmem:[%s3 + $0x18] sm:$0xff]
        %v1137 = vsel %vm397, %v1127, 0
        %1139 = vmatprep.subr.mxu0 0.0
        %1140 = vmatpush1.msra.mxu0 0.0
        %1141 = vmatprep.subr.mxu0 0.0
        %1142 = vmatpush1.msra.mxu0 0.0
        %1143 = vmatprep.subr.mxu0 0.0
        %1144 = vmatpush1.msra.mxu0 0.0
        %1145 = vmatprep.subr.mxu0 0.0
        %1146 = vmatpush1.msra.mxu0 0.0
        %1147 = vmatprep.subr.mxu0 0.0
        %1148 = vmatpush1.msra.mxu0 0.0
        %1149 = vmatprep.subr.mxu0 0.0
        %1150 = vmatpush1.msra.mxu0 0.0
        %1151 = vmatprep.subr.mxu0 0.0
        %1152 = vmatpush1.msra.mxu0 0.0
        %1153 = vmatprep.subr.mxu0 0.0
        %1154 = vmatpush1.msra.mxu0 0.0
        %1155 = vmatprep.subr.mxu0 0.0
        %1156 = vmatpush1.msra.mxu0 0.0
        %1157 = vmatprep.subr.mxu0 0.0
        %1158 = vmatpush1.msra.mxu0 0.0
        %1159 = vmatprep.subr.mxu0 0.0
        %1160 = vmatpush1.msra.mxu0 0.0
        %1161 = vmatprep.subr.mxu0 0.0
        %1162 = vmatpush1.msra.mxu0 0.0
        %1163 = vmatprep.subr.mxu0 0.0
        %1164 = vmatpush1.msra.mxu0 %v1136
        %1165 = vmatprep.subr.mxu0 0.0
        %1166 = vmatpush1.msra.mxu0 %v1135
        %1167 = vmatprep.subr.mxu0 0.0
        %1168 = vmatpush1.msra.mxu0 %v1134
        %1169 = vmatprep.subr.mxu0 0.0
        %1170 = vmatpush1.msra.mxu0 %v1133
        %1171 = vmatprep.subr.mxu0 0.0
        %1172 = vmatpush2.msra.mxu0 0.0
        %1173 = vmatprep.subr.mxu0 0.0
        %1174 = vmatpush2.msra.mxu0 0.0
        %1175 = vmatprep.subr.mxu0 0.0
        %1176 = vmatpush2.msra.mxu0 0.0
        %1177 = vmatprep.subr.mxu0 0.0
        %1178 = vmatpush2.msra.mxu0 0.0
        %1179 = vmatprep.subr.mxu0 0.0
        %1180 = vmatpush2.msra.mxu0 0.0
        %1181 = vmatprep.subr.mxu0 0.0
        %1182 = vmatpush2.msra.mxu0 0.0
        %1183 = vmatprep.subr.mxu0 0.0
        %1184 = vmatpush2.msra.mxu0 0.0
        %1185 = vmatprep.subr.mxu0 0.0
        %1186 = vmatpush2.msra.mxu0 0.0
        %1187 = vmatprep.subr.mxu0 0.0
        %1188 = vmatpush2.msra.mxu0 0.0
        %1189 = vmatprep.subr.mxu0 0.0
        %1190 = vmatpush2.msra.mxu0 0.0
        %1191 = vmatprep.subr.mxu0 0.0
        %1192 = vmatpush2.msra.mxu0 0.0
        %1193 = vmatprep.subr.mxu0 0.0
        %1194 = vmatpush2.msra.mxu0 0.0
        %1195 = vmatprep.subr.mxu0 0.0
        %1196 = vmatpush2.msra.mxu0 0.0
        %1197 = vmatprep.subr.mxu0 0.0
        %1198 = vmatpush2.msra.mxu0 0.0
        %1199 = vmatprep.subr.mxu0 0.0
        %1200 = vmatpush2.msra.mxu0 0.0
        %1201 = vmatprep.subr.mxu0 0.0
        %1202 = vmatpush2.msra.mxu0 0.0
        %1203 = vmatprep.mubr.f32.mxu0 0.0
        %1204 = vmatmul.mubr.f32.gmra.mxu0 %v1137
        %v1205 = vpop.f32.mrf.mxu0
        %v1206 = vadd.f32 0.0, %v1205
        %v1207 = vpop.f32.mrf.mxu0
        %1208 = vdwg.mxu0
        %v1209 = vadd.f32 %v1132, %v1206
        %v1210 = vxor.u32 %v1209, 2147483648
        %v1211 = vmul.f32 %v1210, 1.442695
        %v1212 = vpow.pop %v1211
        %v1213 = vadd.f32 %v1212, 1.0
        %v1214 = vrcp.pop %v1213
        %v1215 = vmul.f32 1.0, %v1214
        %v1216 = vtanh.pop %v1209
        %v1217 = vmul.f32 %v1124, %v1122
        %1219 = vrot.lane.b32.xlu0 %v1216, 96
        %v1220 = vpop.permute.xlu0 %1219
        %v1222 = vmul.f32 %v1215, %v1220
        %1224 = vrot.lane.b32.xlu0 %v1222, 64
        %v1225 = vpop.permute.xlu0 %1224
        %v1227 = vadd.f32 %v1217, %v1225
        %v1228 = vtanh.pop %v1227
        %v1229 = vmul.f32 %v1215, %v1228
        %1231 = vrot.lane.b32.xlu0 %v1229, 64
        %v1232 = vpop.permute.xlu0 %1231
        %s1234 = scalar_lea.vmem [#allocation5], 56
        %1235 = vst.msk [vmem:[%s1234] sm:$0xff] %vm397, %v1232
        %1236 = vst.msk [vmem:[#allocation2] sm:$0xff] %vm397, %v1232
        %1238 = vrot.lane.b32.xlu0 %v1227, 64
        %v1239 = vpop.permute.xlu0 %1238
        %1241 = vst.msk [vmem:[#allocation3] sm:$0xff] %vm397, %v1239
        %v1242 = vld [vmem:[#allocation5] sm:$0xff]
        %v1244 = vcombine.high %v1242, %v1242
        %v1246 = vunpack.c.l.s4 1966171168
        %v1247 = vunpack.c.0.s8 %v1246
        %v1248 = vlaneseq
        %v1249 = vshrl.u32 %v1248, 7
        %v1250 = vsub.s32 %v1247, %v1249
        %v1251 = vrot.slane %v1242, %v1250
        %v1253 = vunpack.c.l.s4 1966171168
        %v1254 = vunpack.c.0.s8 %v1253
        %v1255 = vlaneseq
        %v1256 = vshrl.u32 %v1255, 7
        %v1257 = vsub.s32 %v1254, %v1256
        %v1258 = vrot.slane %v1244, %v1257
        %v1259 = vcombine.high %v1251, %v1251
        %v1260 = vcombine.high %v1258, %v1258
        %v1262 = vunpack.c.l.s4 1966171168
        %v1263 = vunpack.c.0.s8 %v1262
        %v1264 = vlaneseq
        %v1265 = vshrl.u32 %v1264, 7
        %v1266 = vsub.s32 %v1263, %v1265
        %v1267 = vrot.slane %v1251, %v1266
        %v1269 = vunpack.c.l.s4 1966171168
        %v1270 = vunpack.c.0.s8 %v1269
        %v1271 = vlaneseq
        %v1272 = vshrl.u32 %v1271, 7
        %v1273 = vsub.s32 %v1270, %v1272
        %v1274 = vrot.slane %v1258, %v1273
        %v1276 = vunpack.c.l.s4 1966171168
        %v1277 = vunpack.c.0.s8 %v1276
        %v1278 = vlaneseq
        %v1279 = vshrl.u32 %v1278, 7
        %v1280 = vsub.s32 %v1277, %v1279
        %v1281 = vrot.slane %v1259, %v1280
        %v1283 = vunpack.c.l.s4 1966171168
        %v1284 = vunpack.c.0.s8 %v1283
        %v1285 = vlaneseq
        %v1286 = vshrl.u32 %v1285, 7
        %v1287 = vsub.s32 %v1284, %v1286
        %v1288 = vrot.slane %v1260, %v1287
        %v1289 = vcombine.high %v1267, %v1267
        %v1290 = vcombine.high %v1274, %v1274
        %v1291 = vcombine.high %v1281, %v1281
        %v1292 = vcombine.high %v1288, %v1288
        %vm1301 = vcmask 253952
        %1302 = vst.msk [vmem:[%s215] sm:$0x1] %vm1301, %v1267
        %1303 = vst.msk [vmem:[%s215 + $0x8] sm:$0x1] %vm1301, %v1281
        %1304 = vst.msk [vmem:[%s215 + $0x10] sm:$0x1] %vm1301, %v1289
        %1305 = vst.msk [vmem:[%s215 + $0x18] sm:$0x1] %vm1301, %v1291
        %1306 = vst.msk [vmem:[%s215 + $0x20] sm:$0x1] %vm1301, %v1274
        %1307 = vst.msk [vmem:[%s215 + $0x28] sm:$0x1] %vm1301, %v1288
        %1308 = vst.msk [vmem:[%s215 + $0x30] sm:$0x1] %vm1301, %v1290
        %1309 = vst.msk [vmem:[%s215 + $0x38] sm:$0x1] %vm1301, %v1292
        %v1310 = vld [vmem:[%s604] sm:$0xff]
        %v1312 = vcombine.high %v1310, %v1310
        %v1314 = vunpack.c.l.s4 1966171168
        %v1315 = vunpack.c.0.s8 %v1314
        %v1316 = vlaneseq
        %v1317 = vshrl.u32 %v1316, 7
        %v1318 = vsub.s32 %v1315, %v1317
        %v1319 = vrot.slane %v1310, %v1318
        %v1321 = vunpack.c.l.s4 1966171168
        %v1322 = vunpack.c.0.s8 %v1321
        %v1323 = vlaneseq
        %v1324 = vshrl.u32 %v1323, 7
        %v1325 = vsub.s32 %v1322, %v1324
        %v1326 = vrot.slane %v1312, %v1325
        %v1327 = vcombine.high %v1319, %v1319
        %v1328 = vcombine.high %v1326, %v1326
        %v1330 = vunpack.c.l.s4 1966171168
        %v1331 = vunpack.c.0.s8 %v1330
        %v1332 = vlaneseq
        %v1333 = vshrl.u32 %v1332, 7
        %v1334 = vsub.s32 %v1331, %v1333
        %v1335 = vrot.slane %v1319, %v1334
        %v1337 = vunpack.c.l.s4 1966171168
        %v1338 = vunpack.c.0.s8 %v1337
        %v1339 = vlaneseq
        %v1340 = vshrl.u32 %v1339, 7
        %v1341 = vsub.s32 %v1338, %v1340
        %v1342 = vrot.slane %v1326, %v1341
        %v1344 = vunpack.c.l.s4 1966171168
        %v1345 = vunpack.c.0.s8 %v1344
        %v1346 = vlaneseq
        %v1347 = vshrl.u32 %v1346, 7
        %v1348 = vsub.s32 %v1345, %v1347
        %v1349 = vrot.slane %v1327, %v1348
        %v1351 = vunpack.c.l.s4 1966171168
        %v1352 = vunpack.c.0.s8 %v1351
        %v1353 = vlaneseq
        %v1354 = vshrl.u32 %v1353, 7
        %v1355 = vsub.s32 %v1352, %v1354
        %v1356 = vrot.slane %v1328, %v1355
        %v1357 = vcombine.high %v1335, %v1335
        %v1358 = vcombine.high %v1342, %v1342
        %v1359 = vcombine.high %v1349, %v1349
        %v1360 = vcombine.high %v1356, %v1356
        %1369 = vst.msk [vmem:[%s215 + $0x1] sm:$0x1] %vm1301, %v1335
        %1370 = vst.msk [vmem:[%s215 + $0x9] sm:$0x1] %vm1301, %v1349
        %1371 = vst.msk [vmem:[%s215 + $0x11] sm:$0x1] %vm1301, %v1357
        %1372 = vst.msk [vmem:[%s215 + $0x19] sm:$0x1] %vm1301, %v1359
        %1373 = vst.msk [vmem:[%s215 + $0x21] sm:$0x1] %vm1301, %v1342
        %1374 = vst.msk [vmem:[%s215 + $0x29] sm:$0x1] %vm1301, %v1356
        %1375 = vst.msk [vmem:[%s215 + $0x31] sm:$0x1] %vm1301, %v1358
        %1376 = vst.msk [vmem:[%s215 + $0x39] sm:$0x1] %vm1301, %v1360
        %v1377 = vld [vmem:[%s709] sm:$0xff]
        %v1379 = vcombine.high %v1377, %v1377
        %v1381 = vunpack.c.l.s4 1966171168
        %v1382 = vunpack.c.0.s8 %v1381
        %v1383 = vlaneseq
        %v1384 = vshrl.u32 %v1383, 7
        %v1385 = vsub.s32 %v1382, %v1384
        %v1386 = vrot.slane %v1377, %v1385
        %v1388 = vunpack.c.l.s4 1966171168
        %v1389 = vunpack.c.0.s8 %v1388
        %v1390 = vlaneseq
        %v1391 = vshrl.u32 %v1390, 7
        %v1392 = vsub.s32 %v1389, %v1391
        %v1393 = vrot.slane %v1379, %v1392
        %v1394 = vcombine.high %v1386, %v1386
        %v1395 = vcombine.high %v1393, %v1393
        %v1397 = vunpack.c.l.s4 1966171168
        %v1398 = vunpack.c.0.s8 %v1397
        %v1399 = vlaneseq
        %v1400 = vshrl.u32 %v1399, 7
        %v1401 = vsub.s32 %v1398, %v1400
        %v1402 = vrot.slane %v1386, %v1401
        %v1404 = vunpack.c.l.s4 1966171168
        %v1405 = vunpack.c.0.s8 %v1404
        %v1406 = vlaneseq
        %v1407 = vshrl.u32 %v1406, 7
        %v1408 = vsub.s32 %v1405, %v1407
        %v1409 = vrot.slane %v1393, %v1408
        %v1411 = vunpack.c.l.s4 1966171168
        %v1412 = vunpack.c.0.s8 %v1411
        %v1413 = vlaneseq
        %v1414 = vshrl.u32 %v1413, 7
        %v1415 = vsub.s32 %v1412, %v1414
        %v1416 = vrot.slane %v1394, %v1415
        %v1418 = vunpack.c.l.s4 1966171168
        %v1419 = vunpack.c.0.s8 %v1418
        %v1420 = vlaneseq
        %v1421 = vshrl.u32 %v1420, 7
        %v1422 = vsub.s32 %v1419, %v1421
        %v1423 = vrot.slane %v1395, %v1422
        %v1424 = vcombine.high %v1402, %v1402
        %v1425 = vcombine.high %v1409, %v1409
        %v1426 = vcombine.high %v1416, %v1416
        %v1427 = vcombine.high %v1423, %v1423
        %1436 = vst.msk [vmem:[%s215 + $0x2] sm:$0x1] %vm1301, %v1402
        %1437 = vst.msk [vmem:[%s215 + $0xa] sm:$0x1] %vm1301, %v1416
        %1438 = vst.msk [vmem:[%s215 + $0x12] sm:$0x1] %vm1301, %v1424
        %1439 = vst.msk [vmem:[%s215 + $0x1a] sm:$0x1] %vm1301, %v1426
        %1440 = vst.msk [vmem:[%s215 + $0x22] sm:$0x1] %vm1301, %v1409
        %1441 = vst.msk [vmem:[%s215 + $0x2a] sm:$0x1] %vm1301, %v1423
        %1442 = vst.msk [vmem:[%s215 + $0x32] sm:$0x1] %vm1301, %v1425
        %1443 = vst.msk [vmem:[%s215 + $0x3a] sm:$0x1] %vm1301, %v1427
        %v1444 = vld [vmem:[%s814] sm:$0xff]
        %v1446 = vcombine.high %v1444, %v1444
        %v1448 = vunpack.c.l.s4 1966171168
        %v1449 = vunpack.c.0.s8 %v1448
        %v1450 = vlaneseq
        %v1451 = vshrl.u32 %v1450, 7
        %v1452 = vsub.s32 %v1449, %v1451
        %v1453 = vrot.slane %v1444, %v1452
        %v1455 = vunpack.c.l.s4 1966171168
        %v1456 = vunpack.c.0.s8 %v1455
        %v1457 = vlaneseq
        %v1458 = vshrl.u32 %v1457, 7
        %v1459 = vsub.s32 %v1456, %v1458
        %v1460 = vrot.slane %v1446, %v1459
        %v1461 = vcombine.high %v1453, %v1453
        %v1462 = vcombine.high %v1460, %v1460
        %v1464 = vunpack.c.l.s4 1966171168
        %v1465 = vunpack.c.0.s8 %v1464
        %v1466 = vlaneseq
        %v1467 = vshrl.u32 %v1466, 7
        %v1468 = vsub.s32 %v1465, %v1467
        %v1469 = vrot.slane %v1453, %v1468
        %v1471 = vunpack.c.l.s4 1966171168
        %v1472 = vunpack.c.0.s8 %v1471
        %v1473 = vlaneseq
        %v1474 = vshrl.u32 %v1473, 7
        %v1475 = vsub.s32 %v1472, %v1474
        %v1476 = vrot.slane %v1460, %v1475
        %v1478 = vunpack.c.l.s4 1966171168
        %v1479 = vunpack.c.0.s8 %v1478
        %v1480 = vlaneseq
        %v1481 = vshrl.u32 %v1480, 7
        %v1482 = vsub.s32 %v1479, %v1481
        %v1483 = vrot.slane %v1461, %v1482
        %v1485 = vunpack.c.l.s4 1966171168
        %v1486 = vunpack.c.0.s8 %v1485
        %v1487 = vlaneseq
        %v1488 = vshrl.u32 %v1487, 7
        %v1489 = vsub.s32 %v1486, %v1488
        %v1490 = vrot.slane %v1462, %v1489
        %v1491 = vcombine.high %v1469, %v1469
        %v1492 = vcombine.high %v1476, %v1476
        %v1493 = vcombine.high %v1483, %v1483
        %v1494 = vcombine.high %v1490, %v1490
        %1503 = vst.msk [vmem:[%s215 + $0x3] sm:$0x1] %vm1301, %v1469
        %1504 = vst.msk [vmem:[%s215 + $0xb] sm:$0x1] %vm1301, %v1483
        %1505 = vst.msk [vmem:[%s215 + $0x13] sm:$0x1] %vm1301, %v1491
        %1506 = vst.msk [vmem:[%s215 + $0x1b] sm:$0x1] %vm1301, %v1493
        %1507 = vst.msk [vmem:[%s215 + $0x23] sm:$0x1] %vm1301, %v1476
        %1508 = vst.msk [vmem:[%s215 + $0x2b] sm:$0x1] %vm1301, %v1490
        %1509 = vst.msk [vmem:[%s215 + $0x33] sm:$0x1] %vm1301, %v1492
        %1510 = vst.msk [vmem:[%s215 + $0x3b] sm:$0x1] %vm1301, %v1494
        %v1511 = vld [vmem:[%s919] sm:$0xff]
        %v1513 = vcombine.high %v1511, %v1511
        %v1515 = vunpack.c.l.s4 1966171168
        %v1516 = vunpack.c.0.s8 %v1515
        %v1517 = vlaneseq
        %v1518 = vshrl.u32 %v1517, 7
        %v1519 = vsub.s32 %v1516, %v1518
        %v1520 = vrot.slane %v1511, %v1519
        %v1522 = vunpack.c.l.s4 1966171168
        %v1523 = vunpack.c.0.s8 %v1522
        %v1524 = vlaneseq
        %v1525 = vshrl.u32 %v1524, 7
        %v1526 = vsub.s32 %v1523, %v1525
        %v1527 = vrot.slane %v1513, %v1526
        %v1528 = vcombine.high %v1520, %v1520
        %v1529 = vcombine.high %v1527, %v1527
        %v1531 = vunpack.c.l.s4 1966171168
        %v1532 = vunpack.c.0.s8 %v1531
        %v1533 = vlaneseq
        %v1534 = vshrl.u32 %v1533, 7
        %v1535 = vsub.s32 %v1532, %v1534
        %v1536 = vrot.slane %v1520, %v1535
        %v1538 = vunpack.c.l.s4 1966171168
        %v1539 = vunpack.c.0.s8 %v1538
        %v1540 = vlaneseq
        %v1541 = vshrl.u32 %v1540, 7
        %v1542 = vsub.s32 %v1539, %v1541
        %v1543 = vrot.slane %v1527, %v1542
        %v1545 = vunpack.c.l.s4 1966171168
        %v1546 = vunpack.c.0.s8 %v1545
        %v1547 = vlaneseq
        %v1548 = vshrl.u32 %v1547, 7
        %v1549 = vsub.s32 %v1546, %v1548
        %v1550 = vrot.slane %v1528, %v1549
        %v1552 = vunpack.c.l.s4 1966171168
        %v1553 = vunpack.c.0.s8 %v1552
        %v1554 = vlaneseq
        %v1555 = vshrl.u32 %v1554, 7
        %v1556 = vsub.s32 %v1553, %v1555
        %v1557 = vrot.slane %v1529, %v1556
        %v1558 = vcombine.high %v1536, %v1536
        %v1559 = vcombine.high %v1543, %v1543
        %v1560 = vcombine.high %v1550, %v1550
        %v1561 = vcombine.high %v1557, %v1557
        %1570 = vst.msk [vmem:[%s215 + $0x4] sm:$0x1] %vm1301, %v1536
        %1571 = vst.msk [vmem:[%s215 + $0xc] sm:$0x1] %vm1301, %v1550
        %1572 = vst.msk [vmem:[%s215 + $0x14] sm:$0x1] %vm1301, %v1558
        %1573 = vst.msk [vmem:[%s215 + $0x1c] sm:$0x1] %vm1301, %v1560
        %1574 = vst.msk [vmem:[%s215 + $0x24] sm:$0x1] %vm1301, %v1543
        %1575 = vst.msk [vmem:[%s215 + $0x2c] sm:$0x1] %vm1301, %v1557
        %1576 = vst.msk [vmem:[%s215 + $0x34] sm:$0x1] %vm1301, %v1559
        %1577 = vst.msk [vmem:[%s215 + $0x3c] sm:$0x1] %vm1301, %v1561
        %v1578 = vld [vmem:[%s1024] sm:$0xff]
        %v1580 = vcombine.high %v1578, %v1578
        %v1582 = vunpack.c.l.s4 1966171168
        %v1583 = vunpack.c.0.s8 %v1582
        %v1584 = vlaneseq
        %v1585 = vshrl.u32 %v1584, 7
        %v1586 = vsub.s32 %v1583, %v1585
        %v1587 = vrot.slane %v1578, %v1586
        %v1589 = vunpack.c.l.s4 1966171168
        %v1590 = vunpack.c.0.s8 %v1589
        %v1591 = vlaneseq
        %v1592 = vshrl.u32 %v1591, 7
        %v1593 = vsub.s32 %v1590, %v1592
        %v1594 = vrot.slane %v1580, %v1593
        %v1595 = vcombine.high %v1587, %v1587
        %v1596 = vcombine.high %v1594, %v1594
        %v1598 = vunpack.c.l.s4 1966171168
        %v1599 = vunpack.c.0.s8 %v1598
        %v1600 = vlaneseq
        %v1601 = vshrl.u32 %v1600, 7
        %v1602 = vsub.s32 %v1599, %v1601
        %v1603 = vrot.slane %v1587, %v1602
        %v1605 = vunpack.c.l.s4 1966171168
        %v1606 = vunpack.c.0.s8 %v1605
        %v1607 = vlaneseq
        %v1608 = vshrl.u32 %v1607, 7
        %v1609 = vsub.s32 %v1606, %v1608
        %v1610 = vrot.slane %v1594, %v1609
        %v1612 = vunpack.c.l.s4 1966171168
        %v1613 = vunpack.c.0.s8 %v1612
        %v1614 = vlaneseq
        %v1615 = vshrl.u32 %v1614, 7
        %v1616 = vsub.s32 %v1613, %v1615
        %v1617 = vrot.slane %v1595, %v1616
        %v1619 = vunpack.c.l.s4 1966171168
        %v1620 = vunpack.c.0.s8 %v1619
        %v1621 = vlaneseq
        %v1622 = vshrl.u32 %v1621, 7
        %v1623 = vsub.s32 %v1620, %v1622
        %v1624 = vrot.slane %v1596, %v1623
        %v1625 = vcombine.high %v1603, %v1603
        %v1626 = vcombine.high %v1610, %v1610
        %v1627 = vcombine.high %v1617, %v1617
        %v1628 = vcombine.high %v1624, %v1624
        %1637 = vst.msk [vmem:[%s215 + $0x5] sm:$0x1] %vm1301, %v1603
        %1638 = vst.msk [vmem:[%s215 + $0xd] sm:$0x1] %vm1301, %v1617
        %1639 = vst.msk [vmem:[%s215 + $0x15] sm:$0x1] %vm1301, %v1625
        %1640 = vst.msk [vmem:[%s215 + $0x1d] sm:$0x1] %vm1301, %v1627
        %1641 = vst.msk [vmem:[%s215 + $0x25] sm:$0x1] %vm1301, %v1610
        %1642 = vst.msk [vmem:[%s215 + $0x2d] sm:$0x1] %vm1301, %v1624
        %1643 = vst.msk [vmem:[%s215 + $0x35] sm:$0x1] %vm1301, %v1626
        %1644 = vst.msk [vmem:[%s215 + $0x3d] sm:$0x1] %vm1301, %v1628
        %v1645 = vld [vmem:[%s1129] sm:$0xff]
        %v1647 = vcombine.high %v1645, %v1645
        %v1649 = vunpack.c.l.s4 1966171168
        %v1650 = vunpack.c.0.s8 %v1649
        %v1651 = vlaneseq
        %v1652 = vshrl.u32 %v1651, 7
        %v1653 = vsub.s32 %v1650, %v1652
        %v1654 = vrot.slane %v1645, %v1653
        %v1656 = vunpack.c.l.s4 1966171168
        %v1657 = vunpack.c.0.s8 %v1656
        %v1658 = vlaneseq
        %v1659 = vshrl.u32 %v1658, 7
        %v1660 = vsub.s32 %v1657, %v1659
        %v1661 = vrot.slane %v1647, %v1660
        %v1662 = vcombine.high %v1654, %v1654
        %v1663 = vcombine.high %v1661, %v1661
        %v1665 = vunpack.c.l.s4 1966171168
        %v1666 = vunpack.c.0.s8 %v1665
        %v1667 = vlaneseq
        %v1668 = vshrl.u32 %v1667, 7
        %v1669 = vsub.s32 %v1666, %v1668
        %v1670 = vrot.slane %v1654, %v1669
        %v1672 = vunpack.c.l.s4 1966171168
        %v1673 = vunpack.c.0.s8 %v1672
        %v1674 = vlaneseq
        %v1675 = vshrl.u32 %v1674, 7
        %v1676 = vsub.s32 %v1673, %v1675
        %v1677 = vrot.slane %v1661, %v1676
        %v1679 = vunpack.c.l.s4 1966171168
        %v1680 = vunpack.c.0.s8 %v1679
        %v1681 = vlaneseq
        %v1682 = vshrl.u32 %v1681, 7
        %v1683 = vsub.s32 %v1680, %v1682
        %v1684 = vrot.slane %v1662, %v1683
        %v1686 = vunpack.c.l.s4 1966171168
        %v1687 = vunpack.c.0.s8 %v1686
        %v1688 = vlaneseq
        %v1689 = vshrl.u32 %v1688, 7
        %v1690 = vsub.s32 %v1687, %v1689
        %v1691 = vrot.slane %v1663, %v1690
        %v1692 = vcombine.high %v1670, %v1670
        %v1693 = vcombine.high %v1677, %v1677
        %v1694 = vcombine.high %v1684, %v1684
        %v1695 = vcombine.high %v1691, %v1691
        %1704 = vst.msk [vmem:[%s215 + $0x6] sm:$0x1] %vm1301, %v1670
        %1705 = vst.msk [vmem:[%s215 + $0xe] sm:$0x1] %vm1301, %v1684
        %1706 = vst.msk [vmem:[%s215 + $0x16] sm:$0x1] %vm1301, %v1692
        %1707 = vst.msk [vmem:[%s215 + $0x1e] sm:$0x1] %vm1301, %v1694
        %1708 = vst.msk [vmem:[%s215 + $0x26] sm:$0x1] %vm1301, %v1677
        %1709 = vst.msk [vmem:[%s215 + $0x2e] sm:$0x1] %vm1301, %v1691
        %1710 = vst.msk [vmem:[%s215 + $0x36] sm:$0x1] %vm1301, %v1693
        %1711 = vst.msk [vmem:[%s215 + $0x3e] sm:$0x1] %vm1301, %v1695
        %v1712 = vld [vmem:[%s1234] sm:$0xff]
        %v1714 = vcombine.high %v1712, %v1712
        %v1716 = vunpack.c.l.s4 1966171168
        %v1717 = vunpack.c.0.s8 %v1716
        %v1718 = vlaneseq
        %v1719 = vshrl.u32 %v1718, 7
        %v1720 = vsub.s32 %v1717, %v1719
        %v1721 = vrot.slane %v1712, %v1720
        %v1723 = vunpack.c.l.s4 1966171168
        %v1724 = vunpack.c.0.s8 %v1723
        %v1725 = vlaneseq
        %v1726 = vshrl.u32 %v1725, 7
        %v1727 = vsub.s32 %v1724, %v1726
        %v1728 = vrot.slane %v1714, %v1727
        %v1729 = vcombine.high %v1721, %v1721
        %v1730 = vcombine.high %v1728, %v1728
        %v1732 = vunpack.c.l.s4 1966171168
        %v1733 = vunpack.c.0.s8 %v1732
        %v1734 = vlaneseq
        %v1735 = vshrl.u32 %v1734, 7
        %v1736 = vsub.s32 %v1733, %v1735
        %v1737 = vrot.slane %v1721, %v1736
        %v1739 = vunpack.c.l.s4 1966171168
        %v1740 = vunpack.c.0.s8 %v1739
        %v1741 = vlaneseq
        %v1742 = vshrl.u32 %v1741, 7
        %v1743 = vsub.s32 %v1740, %v1742
        %v1744 = vrot.slane %v1728, %v1743
        %v1746 = vunpack.c.l.s4 1966171168
        %v1747 = vunpack.c.0.s8 %v1746
        %v1748 = vlaneseq
        %v1749 = vshrl.u32 %v1748, 7
        %v1750 = vsub.s32 %v1747, %v1749
        %v1751 = vrot.slane %v1729, %v1750
        %v1753 = vunpack.c.l.s4 1966171168
        %v1754 = vunpack.c.0.s8 %v1753
        %v1755 = vlaneseq
        %v1756 = vshrl.u32 %v1755, 7
        %v1757 = vsub.s32 %v1754, %v1756
        %v1758 = vrot.slane %v1730, %v1757
        %v1759 = vcombine.high %v1737, %v1737
        %v1760 = vcombine.high %v1744, %v1744
        %v1761 = vcombine.high %v1751, %v1751
        %v1762 = vcombine.high %v1758, %v1758
        %1771 = vst.msk [vmem:[%s215 + $0x7] sm:$0x1] %vm1301, %v1737
        %1772 = vst.msk [vmem:[%s215 + $0xf] sm:$0x1] %vm1301, %v1751
        %1773 = vst.msk [vmem:[%s215 + $0x17] sm:$0x1] %vm1301, %v1759
        %1774 = vst.msk [vmem:[%s215 + $0x1f] sm:$0x1] %vm1301, %v1761
        %1775 = vst.msk [vmem:[%s215 + $0x27] sm:$0x1] %vm1301, %v1744
        %1776 = vst.msk [vmem:[%s215 + $0x2f] sm:$0x1] %vm1301, %v1758
        %1777 = vst.msk [vmem:[%s215 + $0x37] sm:$0x1] %vm1301, %v1760
        %1778 = vst.msk [vmem:[%s215 + $0x3f] sm:$0x1] %vm1301, %v1762
        %s1779 = sand.u32 %s131, 1
        %s1780 = scalar_lea.sflag [#allocation7], %s1779
        %s1781 = sand.u32 %s131, 1
        %s1782 = smul.addr %s1781, 64
        %s1783 = scalar_lea.vmem [#allocation6], %s1782
        // Predicated region
        $region41: #{tpu_custom_call.1} parent=35 // pred_check
          %p1784 = pneg %p141
        $region42: #{tpu_custom_call.1} parent=35 // pred_check_branch
          %1786 = sbr.rel (%p1784) target = $region44
        $region43: #{tpu_custom_call.1} parent=35 // pred_region
          %s1787 = smul.u32 8, %s22
          %s1789 = ssub.s32 1024, 1024
          %1790 = vsyncadd %s1780, %s1789
          %s1791 = smul.addr %s1787, 2
          %s1792 = sadd.s32 %s23, %s1791
          %s1793 = smul.addr %s1792, 128
          %s1794 = scalar_lea.hbm %s4, %s1793
          %s1795 = sshll.u32 %s1783, 4
          %s1796 = int_to_ptr.vmem [resolvable:$true] %s1795
          %1801 = dma.vmem_to_hbm [thread:$0]  %s1796, 1024, %s1794, %s1780, 128, 256, 8
        $region44: #{tpu_custom_call.1} parent=35 // pred_fallthru
          _
      $region36: #{tpu_custom_call.1} parent=5 // pred_fallthru
        _
      %p1802 = scmp.le.s32.totalorder 2, %s13
      // Predicated region
      $region45: #{tpu_custom_call.1} parent=5 // pred_check
        %p1803 = pneg %p1802
      $region46: #{tpu_custom_call.1} parent=5 // pred_check_branch
        %1805 = sbr.rel (%p1803) target = $region48
      $region47: #{tpu_custom_call.1} parent=5 // pred_region
        %s1806 = ssub.s32 %s13, 2
        // Predicated region
        $region49: #{tpu_custom_call.1} parent=47 // pred_check
          %p1807 = pneg %p147
        $region50: #{tpu_custom_call.1} parent=47 // pred_check_branch
          %1809 = sbr.rel (%p1807) target = $region52
        $region51: #{tpu_custom_call.1} parent=47 // pred_region
          %s1810 = sand.u32 %s132, 1
          %s1811 = scalar_lea.sflag [#allocation7], %s1810
          %s1812 = sand.u32 %s132, 1
          %s1813 = smul.addr %s1812, 64
          %s1814 = scalar_lea.vmem [#allocation6], %s1813
          %1815 = dma.done %s1811, 1024
        $region52: #{tpu_custom_call.1} parent=47 // pred_fallthru
          _
      $region48: #{tpu_custom_call.1} parent=5 // pred_fallthru
        _
    $region6: #{tpu_custom_call.1} parent=1 // loop_footer
      %s17 = sadd.s32 1, %s13
    $region7: #{tpu_custom_call.1} parent=1 // loop_footer_branch
      %12 = sbr.rel target = $region3
    $region8: #{tpu_custom_call.1} parent=1 // loop_exit
      _
    %1816 = vsyncpa [#allocation7], 1
    %s1817 = scalar_lea.sflag [#allocation7], 1
    %1818 = vsyncpa %s1817, 1

</llo_original>
